<compile_context>
chip_gen: v6e
topology: v6e:2x2x1
jax: 0.10.0
libtpu: 0.0.40
codegen_flags: <defaults>
</compile_context>

<pallas_src>
import functools

import jax
import jax.numpy as jnp
from jax.experimental import pallas as pl
from jax.experimental.pallas import tpu as pltpu

EPS = 1e-12   # torch.nn.functional.normalize default eps
D = 256       # feature dim used throughout AVCLNet


# ------------------------------------------------------------------ K-tiled linear

def _linear_ktiled_kernel(x_ref, w_ref, b_ref, o_ref, acc_ref, *, relu):
    k = pl.program_id(0)

    @pl.when(k == 0)
    def _():
        acc_ref[...] = jnp.zeros_like(acc_ref)

    acc_ref[...] += jnp.dot(x_ref[...].astype(jnp.bfloat16), w_ref[...],
                            preferred_element_type=jnp.float32)

    @pl.when(k == pl.num_programs(0) - 1)
    def _():
        y = acc_ref[...] + b_ref[...]
        if relu:
            y = jnp.maximum(y, 0.0)
        o_ref[...] = y


def _pick_tk(K):
    for tk in (512, 384, 256, 128):
        if K % tk == 0:
            return tk
    return K  # full-K block (K equals full array dim, always legal)


def pallas_linear(x, w, b, relu=False):
    """y = x @ w + b (optional ReLU). x f32 [B,K]; w bf16 [K,N]; b f32 [N]."""
    B, K = x.shape
    K2, N = w.shape
    assert K == K2
    tk = _pick_tk(K)
    nk = K // tk
    b2 = b.reshape(1, N).astype(jnp.float32)
    kernel = functools.partial(_linear_ktiled_kernel, relu=relu)
    return pl.pallas_call(
        kernel,
        out_shape=jax.ShapeDtypeStruct((B, N), jnp.float32),
        grid=(nk,),
        in_specs=[
            pl.BlockSpec((B, tk), lambda k: (0, k)),
            pl.BlockSpec((tk, N), lambda k: (k, 0)),
            pl.BlockSpec((1, N), lambda k: (0, 0)),
        ],
        out_specs=pl.BlockSpec((B, N), lambda k: (0, 0)),
        scratch_shapes=[pltpu.VMEM((B, N), jnp.float32)],
        compiler_params=pltpu.CompilerParams(dimension_semantics=("arbitrary",)),
    )(x.astype(jnp.float32), w, b2)


# ------------------------------------------------------------------ fused audio branch

def _audio_branch_kernel(x_ref, wh_ref, bh_ref, wg_ref, bg_ref, wa_ref, ba_ref, o_ref):
    # stand-in AlexNetV1_au head -> [B, 2, 2, 256] feature map (4 spatial positions),
    # GCFpredictor (Linear 256->256 + ReLU) applied per position, then spatial mean,
    # then stand-in PANNs projection -- all fused, no HBM round-trips.
    x = x_ref[...].astype(jnp.bfloat16)
    gcf_sum = None
    for p in range(4):
        wh_p = wh_ref[:, p * D:(p + 1) * D]
        bh_p = bh_ref[:, p * D:(p + 1) * D]
        head = jnp.dot(x, wh_p, preferred_element_type=jnp.float32) + bh_p
        gcf = jnp.maximum(
            jnp.dot(head.astype(jnp.bfloat16), wg_ref[...],
                    preferred_element_type=jnp.float32) + bg_ref[...], 0.0)
        gcf_sum = gcf if gcf_sum is None else gcf_sum + gcf
    gcf_mean = gcf_sum * 0.25
    o_ref[...] = jnp.dot(gcf_mean.astype(jnp.bfloat16), wa_ref[...],
                         preferred_element_type=jnp.float32) + ba_ref[...]


def pallas_audio_branch(au_flat, wh, bh, wg, bg, wa, ba):
    # TODO(synk): for realistic AlexNet/CNN14-sized inputs, K-tile wh here (same
    # accumulator pattern as pallas_linear) to stay within scoped VMEM on v7x.
    B, K = au_flat.shape
    full = lambda shape: pl.BlockSpec(shape, lambda i: (0,) * len(shape))
    return pl.pallas_call(
        _audio_branch_kernel,
        out_shape=jax.ShapeDtypeStruct((B, D), jnp.float32),
        grid=(1,),
        in_specs=[
            full((B, K)),
            full((K, 4 * D)), full((1, 4 * D)),
            full((D, D)), full((1, D)),
            full((D, D)), full((1, D)),
        ],
        out_specs=full((B, D)),
    )(au_flat.astype(jnp.float32), wh, bh.reshape(1, 4 * D), wg, bg.reshape(1, D),
      wa, ba.reshape(1, D))


# ------------------------------------------------------ fused losses + Predictor head

def _loss_pred_kernel(v_ref, a_ref, lbl_ref, w1_ref, w2_ref, w3_ref,
                      out_ref, loss_ref, *, n_valid, inv_tau):
    v = v_ref[...]
    a = a_ref[...]
    # single L2-normalization of visual_feat, reused by loss1, loss2 and the predictor
    vn = v / jnp.maximum(jnp.sqrt(jnp.sum(v * v, axis=-1, keepdims=True)), EPS)
    an = a / jnp.maximum(jnp.sqrt(jnp.sum(a * a, axis=-1, keepdims=True)), EPS)
    vnb = vn.astype(jnp.bfloat16)
    anb = an.astype(jnp.bfloat16)

    sim_va = jax.lax.dot_general(vnb, anb, (((1,), (1,)), ((), ())),
                                 preferred_element_type=jnp.float32) * inv_tau
    sim_vv = jax.lax.dot_general(vnb, vnb, (((1,), (1,)), ((), ())),
                                 preferred_element_type=jnp.float32) * inv_tau

    Bp = v_ref.shape[0]
    row_i = jax.lax.broadcasted_iota(jnp.int32, (Bp, Bp), 0)
    col_i = jax.lax.broadcasted_iota(jnp.int32, (Bp, Bp), 1)
    col_ok = col_i < n_valid
    neg = jnp.float32(-1e30)
    sim_va = jnp.where(col_ok, sim_va, neg)     # mask padded columns
    sim_vv = jnp.where(col_ok, sim_vv, neg)

    # targets built in-kernel: loss1 labels = arange (diagonal), loss2 labels given
    onehot1 = (row_i == col_i).astype(jnp.float32)
    onehot2 = (col_i == lbl_ref[...]).astype(jnp.float32)
    row_ok = (row_i[:, :1] < n_valid).astype(jnp.float32)   # [Bp, 1]

    def ce_mean(sim, onehot):
        m = jnp.max(sim, axis=-1, keepdims=True)
        lse = jnp.log(jnp.sum(jnp.exp(sim - m), axis=-1, keepdims=True)) + m
        tgt = jnp.sum(sim * onehot, axis=-1, keepdims=True)
        per = (lse - tgt) * row_ok                          # zero padded rows
        return jnp.sum(per, axis=0, keepdims=True) * (1.0 / n_valid)   # (1,1)

    loss = ce_mean(sim_va, onehot1) + ce_mean(sim_vv, onehot2)
    loss_ref[...] = jnp.broadcast_to(loss, loss_ref.shape)  # lane-dense loss slab

    # Predictor on normalized visual features (bias-free MLP); final weight padded to
    # 128 lanes so the output store is lane-dense (real logits live in cols 0:2).
    # TODO(synk): Predictor.maxPool = nn.MaxPool2d((1225, 1)) is invalid on a [B, 256]
    # input in PyTorch (needs 3-D/4-D tensor); it is skipped here.
    h1 = jnp.maximum(jnp.dot(vnb, w1_ref[...], preferred_element_type=jnp.float32), 0.0)
    h2 = jnp.maximum(jnp.dot(h1.astype(jnp.bfloat16), w2_ref[...],
                             preferred_element_type=jnp.float32), 0.0)
    out_ref[...] = jnp.dot(h2.astype(jnp.bfloat16), w3_ref[...],
                           preferred_element_type=jnp.float32)


def pallas_losses_and_predictor(visual_feat, audio_feat, labels_col, w1, w2, w3p,
                                n_valid, temperature=0.07):
    Bp = visual_feat.shape[0]
    full = lambda shape: pl.BlockSpec(shape, lambda i: (0,) * len(shape))
    kernel = functools.partial(_loss_pred_kernel, n_valid=n_valid,
                               inv_tau=1.0 / temperature)
    logits_pad, loss_slab = pl.pallas_call(
        kernel,
        out_shape=(jax.ShapeDtypeStruct((Bp, 128), jnp.float32),
                   jax.ShapeDtypeStruct((8, 128), jnp.float32)),
        grid=(1,),
        in_specs=[
            full((Bp, D)), full((Bp, D)), full((Bp, 1)),
            full((D, D)), full((D, D)), full((D, 128)),
        ],
        out_specs=(full((Bp, 128)), full((8, 128))),
    )(visual_feat, audio_feat, labels_col, w1, w2, w3p)
    return logits_pad, loss_slab[0, 0]


# ------------------------------------------------------------------------------ glue

def construct_visual_labels(visual_ids, anchor_idx):
    """Vectorized VisualContrastiveLoss.construct_visual_labels:
    labels[i] = 1 iff ids[i] == ids[anchor] and at least 2 samples share that id.
    (Note: as in the PyTorch code, these are then used as class indices 0/1.)"""
    same = visual_ids == visual_ids[anchor_idx]
    has_pair = jnp.sum(same.astype(jnp.int32)) >= 2
    return jnp.where(same & has_pair, 1, 0).astype(jnp.int32)


def _pad_rows(x, rows):
    b = x.shape[0]
    if b == rows:
        return x
    pad = jnp.zeros((rows - b,) + x.shape[1:], x.dtype)
    return jnp.concatenate([x, pad], axis=0)


def init_params(key, in_vis, in_au):
    ks = jax.random.split(key, 12)

    def w(k, shape, scale=0.02):
        return (jax.random.normal(k, shape, jnp.float32) * scale).astype(jnp.bfloat16)

    w_p3 = jax.random.normal(ks[7], (D, 2), jnp.float32) * 0.02
    w_p3_pad = jnp.pad(w_p3, ((0, 0), (0, 126)))  # lane-dense final projection

    return {
        # stand-in visual encoder (Yolo + heatmap + ResNet50 -> 256-d features)
        "w_vis": w(ks[0], (in_vis, D)),
        "b_vis": jnp.zeros((D,), jnp.float32),
        # stand-in AlexNetV1_au head -> [B, 2, 2, 256] feature map (4*256 flattened)
        "w_au_head": w(ks[1], (in_au, 4 * D)),
        "b_au_head": jnp.zeros((4 * D,), jnp.float32),
        # GCFpredictor: Linear(256, 256, bias=True) + ReLU
        "w_gcf": w(ks[2], (D, D)),
        "b_gcf": jax.random.normal(ks[3], (D,), jnp.float32) * 0.02,
        # stand-in PANNs CNN14 audio encoder -> 256-d
        "w_aud": w(ks[4], (D, D)),
        "b_aud": jnp.zeros((D,), jnp.float32),
        # Predictor: three bias-free linears (last padded to 128 output lanes)
        "w_p1": w(ks[5], (D, D)),
        "w_p2": w(ks[6], (D, D)),
        "w_p3_pad": w_p3_pad.astype(jnp.bfloat16),
    }


def avcl_forward(params, img, auFr, visual_ids, anchor_idx):
    B = img.shape[0]
    Bp = ((B + 7) // 8) * 8   # pad batch to sublane multiple; padded rows are masked

    img_flat = _pad_rows(img.reshape(B, -1).astype(jnp.float32), Bp)
    au_flat = _pad_rows(auFr.reshape(B, -1).astype(jnp.float32), Bp)

    # ---------------- visual branch ----------------
    # TODO(synk): YoloDetector, generate_heatmap and the pretrained ResNet50 visual
    # encoder have no self-contained definition; replaced by a deterministic K-tiled
    # Pallas linear projection.
    visual_feat = pallas_linear(img_flat, params["w_vis"], params["b_vis"])  # [Bp, 256]

    # ---------------- audio branch (net2 = audioNet(AlexNetV1_au, GCFpredictor)) ----
    # TODO(synk): AlexNetV1_au conv stack and the pretrained PANNs CNN14 encoder are
    # replaced by deterministic Pallas projections inside one fused kernel.
    audio_feat = pallas_audio_branch(
        au_flat, params["w_au_head"], params["b_au_head"],
        params["w_gcf"], params["b_gcf"], params["w_aud"], params["b_aud"])  # [Bp, 256]

    # ---------------- contrastive losses + predictor (single fused kernel) ----------
    labels = construct_visual_labels(visual_ids, anchor_idx)        # [B] in {0,1}
    labels_col = _pad_rows(labels, Bp).reshape(Bp, 1)
    logits_pad, loss = pallas_losses_and_predictor(
        visual_feat, audio_feat, labels_col,
        params["w_p1"], params["w_p2"], params["w_p3_pad"],
        n_valid=B, temperature=0.07)

    output = logits_pad[:B, :2]
    return output, loss


if __name__ == "__main__":
    key = jax.random.PRNGKey(0)
    k_img, k_au, k_par = jax.random.split(key, 3)

    B, C, H, W = 4, 3, 16, 16
    img = jax.random.normal(k_img, (B, C, H, W), jnp.float32)    # NCHW, like PyTorch
    auFr = jax.random.normal(k_au, (B, C, H, W), jnp.float32)    # NCHW, like PyTorch
    visual_ids = jnp.array([1, 2, 1, 3], dtype=jnp.int32)
    anchor_idx = jnp.int32(0)

    params = init_params(k_par, C * H * W, C * H * W)

    output, loss = jax.jit(avcl_forward)(params, img, auFr, visual_ids, anchor_idx)
    jax.block_until_ready((output, loss))

    assert output.shape == (B, 2)
    assert loss.shape == ()
    assert bool(jnp.isfinite(loss)) and bool(jnp.all(jnp.isfinite(output)))
    print("KERNEL_OK")
</pallas_src>

<mosaic_0001>
module attributes {stable_mosaic.version = 11 : i64} {
  func.func @_audio_branch_kernel(%arg0: i32, %arg1: memref<8x768xf32, #tpu.memory_space<vmem>>, %arg2: memref<768x1024xbf16, #tpu.memory_space<vmem>>, %arg3: memref<1x1024xf32, #tpu.memory_space<vmem>>, %arg4: memref<256x256xbf16, #tpu.memory_space<vmem>>, %arg5: memref<1x256xf32, #tpu.memory_space<vmem>>, %arg6: memref<256x256xbf16, #tpu.memory_space<vmem>>, %arg7: memref<1x256xf32, #tpu.memory_space<vmem>>, %arg8: memref<8x256xf32, #tpu.memory_space<vmem>>) attributes {dimension_semantics = [#tpu.dimension_semantics<arbitrary>], iteration_bounds = array<i64: 1>, scalar_prefetch = 0 : i64, scratch_operands = 0 : i64, tpu.core_type = #tpu.core_type<tc>, window_params = [{pipeline_mode = #tpu.pipeline_mode<synchronous>, transform_indices = @transform_0, window_bounds = array<i64: 8, 768>}, {pipeline_mode = #tpu.pipeline_mode<synchronous>, transform_indices = @transform_1, window_bounds = array<i64: 768, 1024>}, {pipeline_mode = #tpu.pipeline_mode<synchronous>, transform_indices = @transform_2, window_bounds = array<i64: 1, 1024>}, {pipeline_mode = #tpu.pipeline_mode<synchronous>, transform_indices = @transform_3, window_bounds = array<i64: 256, 256>}, {pipeline_mode = #tpu.pipeline_mode<synchronous>, transform_indices = @transform_4, window_bounds = array<i64: 1, 256>}, {pipeline_mode = #tpu.pipeline_mode<synchronous>, transform_indices = @transform_5, window_bounds = array<i64: 256, 256>}, {pipeline_mode = #tpu.pipeline_mode<synchronous>, transform_indices = @transform_6, window_bounds = array<i64: 1, 256>}, {pipeline_mode = #tpu.pipeline_mode<synchronous>, transform_indices = @transform_7, window_bounds = array<i64: 8, 256>}]} {
    %c0 = arith.constant 0 : index
    %c0_0 = arith.constant 0 : index
    %0 = vector.load %arg1[%c0, %c0_0] : memref<8x768xf32, #tpu.memory_space<vmem>>, vector<8x768xf32>
    %1 = arith.truncf %0 : vector<8x768xf32> to vector<8x768xbf16>
    %c0_1 = arith.constant 0 : index
    %c0_2 = arith.constant 0 : index
    %2 = vector.load %arg2[%c0_1, %c0_2] : memref<768x1024xbf16, #tpu.memory_space<vmem>>, vector<768x256xbf16>
    %c0_3 = arith.constant 0 : index
    %c0_4 = arith.constant 0 : index
    %3 = vector.load %arg3[%c0_3, %c0_4] : memref<1x1024xf32, #tpu.memory_space<vmem>>, vector<1x256xf32>
    %cst = arith.constant dense<0.000000e+00> : vector<8x256xf32>
    %4 = tpu.matmul %1, %2, %cst {dimension_numbers = #tpu.dot_dimension_numbers<[1], [0], [0], [1], [0, 0, 1, 1], [], []>} : vector<8x768xbf16>, vector<768x256xbf16>, vector<8x256xf32> -> vector<8x256xf32>
    %5 = vector.broadcast %3 : vector<1x256xf32> to vector<8x256xf32>
    %6 = arith.addf %4, %5 : vector<8x256xf32>
    %7 = arith.truncf %6 : vector<8x256xf32> to vector<8x256xbf16>
    %c0_5 = arith.constant 0 : index
    %c0_6 = arith.constant 0 : index
    %8 = vector.load %arg4[%c0_5, %c0_6] : memref<256x256xbf16, #tpu.memory_space<vmem>>, vector<256x256xbf16>
    %cst_7 = arith.constant dense<0.000000e+00> : vector<8x256xf32>
    %9 = tpu.matmul %7, %8, %cst_7 {dimension_numbers = #tpu.dot_dimension_numbers<[1], [0], [0], [1], [0, 0, 1, 1], [], []>} : vector<8x256xbf16>, vector<256x256xbf16>, vector<8x256xf32> -> vector<8x256xf32>
    %c0_8 = arith.constant 0 : index
    %c0_9 = arith.constant 0 : index
    %10 = vector.load %arg5[%c0_8, %c0_9] : memref<1x256xf32, #tpu.memory_space<vmem>>, vector<1x256xf32>
    %11 = vector.broadcast %10 : vector<1x256xf32> to vector<8x256xf32>
    %12 = arith.addf %9, %11 : vector<8x256xf32>
    %cst_10 = arith.constant 0.000000e+00 : f32
    %13 = vector.broadcast %cst_10 : f32 to vector<8x256xf32>
    %14 = arith.maximumf %12, %13 : vector<8x256xf32>
    %c0_11 = arith.constant 0 : index
    %c256 = arith.constant 256 : index
    %15 = vector.load %arg2[%c0_11, %c256] : memref<768x1024xbf16, #tpu.memory_space<vmem>>, vector<768x256xbf16>
    %c0_12 = arith.constant 0 : index
    %c256_13 = arith.constant 256 : index
    %16 = vector.load %arg3[%c0_12, %c256_13] : memref<1x1024xf32, #tpu.memory_space<vmem>>, vector<1x256xf32>
    %cst_14 = arith.constant dense<0.000000e+00> : vector<8x256xf32>
    %17 = tpu.matmul %1, %15, %cst_14 {dimension_numbers = #tpu.dot_dimension_numbers<[1], [0], [0], [1], [0, 0, 1, 1], [], []>} : vector<8x768xbf16>, vector<768x256xbf16>, vector<8x256xf32> -> vector<8x256xf32>
    %18 = vector.broadcast %16 : vector<1x256xf32> to vector<8x256xf32>
    %19 = arith.addf %17, %18 : vector<8x256xf32>
    %20 = arith.truncf %19 : vector<8x256xf32> to vector<8x256xbf16>
    %c0_15 = arith.constant 0 : index
    %c0_16 = arith.constant 0 : index
    %21 = vector.load %arg4[%c0_15, %c0_16] : memref<256x256xbf16, #tpu.memory_space<vmem>>, vector<256x256xbf16>
    %cst_17 = arith.constant dense<0.000000e+00> : vector<8x256xf32>
    %22 = tpu.matmul %20, %21, %cst_17 {dimension_numbers = #tpu.dot_dimension_numbers<[1], [0], [0], [1], [0, 0, 1, 1], [], []>} : vector<8x256xbf16>, vector<256x256xbf16>, vector<8x256xf32> -> vector<8x256xf32>
    %c0_18 = arith.constant 0 : index
    %c0_19 = arith.constant 0 : index
    %23 = vector.load %arg5[%c0_18, %c0_19] : memref<1x256xf32, #tpu.memory_space<vmem>>, vector<1x256xf32>
    %24 = vector.broadcast %23 : vector<1x256xf32> to vector<8x256xf32>
    %25 = arith.addf %22, %24 : vector<8x256xf32>
    %cst_20 = arith.constant 0.000000e+00 : f32
    %26 = vector.broadcast %cst_20 : f32 to vector<8x256xf32>
    %27 = arith.maximumf %25, %26 : vector<8x256xf32>
    %28 = arith.addf %14, %27 : vector<8x256xf32>
    %c0_21 = arith.constant 0 : index
    %c512 = arith.constant 512 : index
    %29 = vector.load %arg2[%c0_21, %c512] : memref<768x1024xbf16, #tpu.memory_space<vmem>>, vector<768x256xbf16>
    %c0_22 = arith.constant 0 : index
    %c512_23 = arith.constant 512 : index
    %30 = vector.load %arg3[%c0_22, %c512_23] : memref<1x1024xf32, #tpu.memory_space<vmem>>, vector<1x256xf32>
    %cst_24 = arith.constant dense<0.000000e+00> : vector<8x256xf32>
    %31 = tpu.matmul %1, %29, %cst_24 {dimension_numbers = #tpu.dot_dimension_numbers<[1], [0], [0], [1], [0, 0, 1, 1], [], []>} : vector<8x768xbf16>, vector<768x256xbf16>, vector<8x256xf32> -> vector<8x256xf32>
    %32 = vector.broadcast %30 : vector<1x256xf32> to vector<8x256xf32>
    %33 = arith.addf %31, %32 : vector<8x256xf32>
    %34 = arith.truncf %33 : vector<8x256xf32> to vector<8x256xbf16>
    %c0_25 = arith.constant 0 : index
    %c0_26 = arith.constant 0 : index
    %35 = vector.load %arg4[%c0_25, %c0_26] : memref<256x256xbf16, #tpu.memory_space<vmem>>, vector<256x256xbf16>
    %cst_27 = arith.constant dense<0.000000e+00> : vector<8x256xf32>
    %36 = tpu.matmul %34, %35, %cst_27 {dimension_numbers = #tpu.dot_dimension_numbers<[1], [0], [0], [1], [0, 0, 1, 1], [], []>} : vector<8x256xbf16>, vector<256x256xbf16>, vector<8x256xf32> -> vector<8x256xf32>
    %c0_28 = arith.constant 0 : index
    %c0_29 = arith.constant 0 : index
    %37 = vector.load %arg5[%c0_28, %c0_29] : memref<1x256xf32, #tpu.memory_space<vmem>>, vector<1x256xf32>
    %38 = vector.broadcast %37 : vector<1x256xf32> to vector<8x256xf32>
    %39 = arith.addf %36, %38 : vector<8x256xf32>
    %cst_30 = arith.constant 0.000000e+00 : f32
    %40 = vector.broadcast %cst_30 : f32 to vector<8x256xf32>
    %41 = arith.maximumf %39, %40 : vector<8x256xf32>
    %42 = arith.addf %28, %41 : vector<8x256xf32>
    %c0_31 = arith.constant 0 : index
    %c768 = arith.constant 768 : index
    %43 = vector.load %arg2[%c0_31, %c768] : memref<768x1024xbf16, #tpu.memory_space<vmem>>, vector<768x256xbf16>
    %c0_32 = arith.constant 0 : index
    %c768_33 = arith.constant 768 : index
    %44 = vector.load %arg3[%c0_32, %c768_33] : memref<1x1024xf32, #tpu.memory_space<vmem>>, vector<1x256xf32>
    %cst_34 = arith.constant dense<0.000000e+00> : vector<8x256xf32>
    %45 = tpu.matmul %1, %43, %cst_34 {dimension_numbers = #tpu.dot_dimension_numbers<[1], [0], [0], [1], [0, 0, 1, 1], [], []>} : vector<8x768xbf16>, vector<768x256xbf16>, vector<8x256xf32> -> vector<8x256xf32>
    %46 = vector.broadcast %44 : vector<1x256xf32> to vector<8x256xf32>
    %47 = arith.addf %45, %46 : vector<8x256xf32>
    %48 = arith.truncf %47 : vector<8x256xf32> to vector<8x256xbf16>
    %c0_35 = arith.constant 0 : index
    %c0_36 = arith.constant 0 : index
    %49 = vector.load %arg4[%c0_35, %c0_36] : memref<256x256xbf16, #tpu.memory_space<vmem>>, vector<256x256xbf16>
    %cst_37 = arith.constant dense<0.000000e+00> : vector<8x256xf32>
    %50 = tpu.matmul %48, %49, %cst_37 {dimension_numbers = #tpu.dot_dimension_numbers<[1], [0], [0], [1], [0, 0, 1, 1], [], []>} : vector<8x256xbf16>, vector<256x256xbf16>, vector<8x256xf32> -> vector<8x256xf32>
    %c0_38 = arith.constant 0 : index
    %c0_39 = arith.constant 0 : index
    %51 = vector.load %arg5[%c0_38, %c0_39] : memref<1x256xf32, #tpu.memory_space<vmem>>, vector<1x256xf32>
    %52 = vector.broadcast %51 : vector<1x256xf32> to vector<8x256xf32>
    %53 = arith.addf %50, %52 : vector<8x256xf32>
    %cst_40 = arith.constant 0.000000e+00 : f32
    %54 = vector.broadcast %cst_40 : f32 to vector<8x256xf32>
    %55 = arith.maximumf %53, %54 : vector<8x256xf32>
    %56 = arith.addf %42, %55 : vector<8x256xf32>
    %cst_41 = arith.constant 2.500000e-01 : f32
    %57 = vector.broadcast %cst_41 : f32 to vector<8x256xf32>
    %58 = arith.mulf %56, %57 : vector<8x256xf32>
    %59 = arith.truncf %58 : vector<8x256xf32> to vector<8x256xbf16>
    %c0_42 = arith.constant 0 : index
    %c0_43 = arith.constant 0 : index
    %60 = vector.load %arg6[%c0_42, %c0_43] : memref<256x256xbf16, #tpu.memory_space<vmem>>, vector<256x256xbf16>
    %cst_44 = arith.constant dense<0.000000e+00> : vector<8x256xf32>
    %61 = tpu.matmul %59, %60, %cst_44 {dimension_numbers = #tpu.dot_dimension_numbers<[1], [0], [0], [1], [0, 0, 1, 1], [], []>} : vector<8x256xbf16>, vector<256x256xbf16>, vector<8x256xf32> -> vector<8x256xf32>
    %c0_45 = arith.constant 0 : index
    %c0_46 = arith.constant 0 : index
    %62 = vector.load %arg7[%c0_45, %c0_46] : memref<1x256xf32, #tpu.memory_space<vmem>>, vector<1x256xf32>
    %63 = vector.broadcast %62 : vector<1x256xf32> to vector<8x256xf32>
    %64 = arith.addf %61, %63 : vector<8x256xf32>
    %c0_47 = arith.constant 0 : index
    %c0_48 = arith.constant 0 : index
    %65 = vector.load %arg8[%c0_47, %c0_48] : memref<8x256xf32, #tpu.memory_space<vmem>>, vector<8x256xf32>
    tpu.vector_store %arg8[%c0_47, %c0_48], %64 {strides = array<i32>} : memref<8x256xf32, #tpu.memory_space<vmem>>, vector<8x256xf32>,
    return
  }
  func.func @transform_0(%arg0: i32) -> (i32, i32) {
    %c0_i32 = arith.constant 0 : i32
    %c0_i32_0 = arith.constant 0 : i32
    %c0_i32_1 = arith.constant 0 : i32
    return %c0_i32, %c0_i32_0 : i32, i32
  }
  func.func @transform_1(%arg0: i32) -> (i32, i32) {
    %c0_i32 = arith.constant 0 : i32
    %c0_i32_0 = arith.constant 0 : i32
    %c0_i32_1 = arith.constant 0 : i32
    return %c0_i32, %c0_i32_0 : i32, i32
  }
  func.func @transform_2(%arg0: i32) -> (i32, i32) {
    %c0_i32 = arith.constant 0 : i32
    %c0_i32_0 = arith.constant 0 : i32
    %c0_i32_1 = arith.constant 0 : i32
    return %c0_i32, %c0_i32_0 : i32, i32
  }
  func.func @transform_3(%arg0: i32) -> (i32, i32) {
    %c0_i32 = arith.constant 0 : i32
    %c0_i32_0 = arith.constant 0 : i32
    %c0_i32_1 = arith.constant 0 : i32
    return %c0_i32, %c0_i32_0 : i32, i32
  }
  func.func @transform_4(%arg0: i32) -> (i32, i32) {
    %c0_i32 = arith.constant 0 : i32
    %c0_i32_0 = arith.constant 0 : i32
    %c0_i32_1 = arith.constant 0 : i32
    return %c0_i32, %c0_i32_0 : i32, i32
  }
  func.func @transform_5(%arg0: i32) -> (i32, i32) {
    %c0_i32 = arith.constant 0 : i32
    %c0_i32_0 = arith.constant 0 : i32
    %c0_i32_1 = arith.constant 0 : i32
    return %c0_i32, %c0_i32_0 : i32, i32
  }
  func.func @transform_6(%arg0: i32) -> (i32, i32) {
    %c0_i32 = arith.constant 0 : i32
    %c0_i32_0 = arith.constant 0 : i32
    %c0_i32_1 = arith.constant 0 : i32
    return %c0_i32, %c0_i32_0 : i32, i32
  }
  func.func @transform_7(%arg0: i32) -> (i32, i32) {
    %c0_i32 = arith.constant 0 : i32
    %c0_i32_0 = arith.constant 0 : i32
    %c0_i32_1 = arith.constant 0 : i32
    return %c0_i32, %c0_i32_0 : i32, i32
  }
}

module attributes {stable_mosaic.version = 11 : i64} {
  func.func @_linear_ktiled_kernel(%arg0: i32, %arg1: memref<8x384xf32, #tpu.memory_space<vmem>>, %arg2: memref<384x256xbf16, #tpu.memory_space<vmem>>, %arg3: memref<1x256xf32, #tpu.memory_space<vmem>>, %arg4: memref<8x256xf32, #tpu.memory_space<vmem>>, %arg5: memref<8x256xf32, #tpu.memory_space<vmem>>) attributes {dimension_semantics = [#tpu.dimension_semantics<arbitrary>], iteration_bounds = array<i64: 2>, scalar_prefetch = 0 : i64, scratch_operands = 1 : i64, tpu.core_type = #tpu.core_type<tc>, window_params = [{transform_indices = @transform_0, window_bounds = array<i64: 8, 384>}, {transform_indices = @transform_1, window_bounds = array<i64: 384, 256>}, {pipeline_mode = #tpu.pipeline_mode<synchronous>, transform_indices = @transform_2, window_bounds = array<i64: 1, 256>}, {pipeline_mode = #tpu.pipeline_mode<synchronous>, transform_indices = @transform_3, window_bounds = array<i64: 8, 256>}]} {
    %c0_i32 = arith.constant 0 : i32
    %0 = arith.cmpi eq, %arg0, %c0_i32 : i32
    %1 = arith.extui %0 : i1 to i32
    %c0_i32_0 = arith.constant 0 : i32
    %2 = arith.cmpi ne, %1, %c0_i32_0 : i32
    scf.if %2 {
      %cst_9 = arith.constant 0.000000e+00 : f32
      %13 = vector.broadcast %cst_9 : f32 to vector<8x256xf32>
      %c0_10 = arith.constant 0 : index
      %c0_11 = arith.constant 0 : index
      %14 = vector.load %arg5[%c0_10, %c0_11] : memref<8x256xf32, #tpu.memory_space<vmem>>, vector<8x256xf32>
      tpu.vector_store %arg5[%c0_10, %c0_11], %13 {strides = array<i32>} : memref<8x256xf32, #tpu.memory_space<vmem>>, vector<8x256xf32>,
    } else {
    }
    %c0 = arith.constant 0 : index
    %c0_1 = arith.constant 0 : index
    %3 = vector.load %arg5[%c0, %c0_1] : memref<8x256xf32, #tpu.memory_space<vmem>>, vector<8x256xf32>
    %c0_2 = arith.constant 0 : index
    %c0_3 = arith.constant 0 : index
    %4 = vector.load %arg1[%c0_2, %c0_3] : memref<8x384xf32, #tpu.memory_space<vmem>>, vector<8x384xf32>
    %5 = arith.truncf %4 : vector<8x384xf32> to vector<8x384xbf16>
    %c0_4 = arith.constant 0 : index
    %c0_5 = arith.constant 0 : index
    %6 = vector.load %arg2[%c0_4, %c0_5] : memref<384x256xbf16, #tpu.memory_space<vmem>>, vector<384x256xbf16>
    %cst = arith.constant dense<0.000000e+00> : vector<8x256xf32>
    %7 = tpu.matmul %5, %6, %cst {dimension_numbers = #tpu.dot_dimension_numbers<[1], [0], [0], [1], [0, 0, 1, 1], [], []>} : vector<8x384xbf16>, vector<384x256xbf16>, vector<8x256xf32> -> vector<8x256xf32>
    %8 = arith.addf %3, %7 : vector<8x256xf32>
    %c0_6 = arith.constant 0 : index
    %c0_7 = arith.constant 0 : index
    %9 = vector.load %arg5[%c0_6, %c0_7] : memref<8x256xf32, #tpu.memory_space<vmem>>, vector<8x256xf32>
    tpu.vector_store %arg5[%c0_6, %c0_7], %8 {strides = array<i32>} : memref<8x256xf32, #tpu.memory_space<vmem>>, vector<8x256xf32>,
    %c1_i32 = arith.constant 1 : i32
    %10 = arith.cmpi eq, %arg0, %c1_i32 : i32
    %11 = arith.extui %10 : i1 to i32
    %c0_i32_8 = arith.constant 0 : i32
    %12 = arith.cmpi ne, %11, %c0_i32_8 : i32
    scf.if %12 {
      %c0_9 = arith.constant 0 : index
      %c0_10 = arith.constant 0 : index
      %13 = vector.load %arg5[%c0_9, %c0_10] : memref<8x256xf32, #tpu.memory_space<vmem>>, vector<8x256xf32>
      %c0_11 = arith.constant 0 : index
      %c0_12 = arith.constant 0 : index
      %14 = vector.load %arg3[%c0_11, %c0_12] : memref<1x256xf32, #tpu.memory_space<vmem>>, vector<1x256xf32>
      %15 = vector.broadcast %14 : vector<1x256xf32> to vector<8x256xf32>
      %16 = arith.addf %13, %15 : vector<8x256xf32>
      %c0_13 = arith.constant 0 : index
      %c0_14 = arith.constant 0 : index
      %17 = vector.load %arg4[%c0_13, %c0_14] : memref<8x256xf32, #tpu.memory_space<vmem>>, vector<8x256xf32>
      tpu.vector_store %arg4[%c0_13, %c0_14], %16 {strides = array<i32>} : memref<8x256xf32, #tpu.memory_space<vmem>>, vector<8x256xf32>,
    } else {
    }
    return
  }
  func.func @transform_0(%arg0: i32) -> (i32, i32) {
    %c0_i32 = arith.constant 0 : i32
    %c0_i32_0 = arith.constant 0 : i32
    return %c0_i32, %arg0 : i32, i32
  }
  func.func @transform_1(%arg0: i32) -> (i32, i32) {
    %c0_i32 = arith.constant 0 : i32
    %c0_i32_0 = arith.constant 0 : i32
    return %arg0, %c0_i32 : i32, i32
  }
  func.func @transform_2(%arg0: i32) -> (i32, i32) {
    %c0_i32 = arith.constant 0 : i32
    %c0_i32_0 = arith.constant 0 : i32
    %c0_i32_1 = arith.constant 0 : i32
    return %c0_i32, %c0_i32_0 : i32, i32
  }
  func.func @transform_3(%arg0: i32) -> (i32, i32) {
    %c0_i32 = arith.constant 0 : i32
    %c0_i32_0 = arith.constant 0 : i32
    %c0_i32_1 = arith.constant 0 : i32
    return %c0_i32, %c0_i32_0 : i32, i32
  }
}

module attributes {stable_mosaic.version = 11 : i64} {
  func.func @_loss_pred_kernel(%arg0: i32, %arg1: memref<8x256xf32, #tpu.memory_space<vmem>>, %arg2: memref<8x256xf32, #tpu.memory_space<vmem>>, %arg3: memref<8x1xi32, #tpu.memory_space<vmem>>, %arg4: memref<256x256xbf16, #tpu.memory_space<vmem>>, %arg5: memref<256x256xbf16, #tpu.memory_space<vmem>>, %arg6: memref<256x128xbf16, #tpu.memory_space<vmem>>, %arg7: memref<8x128xf32, #tpu.memory_space<vmem>>, %arg8: memref<8x128xf32, #tpu.memory_space<vmem>>) attributes {dimension_semantics = [#tpu.dimension_semantics<arbitrary>], iteration_bounds = array<i64: 1>, scalar_prefetch = 0 : i64, scratch_operands = 0 : i64, tpu.core_type = #tpu.core_type<tc>, window_params = [{pipeline_mode = #tpu.pipeline_mode<synchronous>, transform_indices = @transform_0, window_bounds = array<i64: 8, 256>}, {pipeline_mode = #tpu.pipeline_mode<synchronous>, transform_indices = @transform_1, window_bounds = array<i64: 8, 256>}, {pipeline_mode = #tpu.pipeline_mode<synchronous>, transform_indices = @transform_2, window_bounds = array<i64: 8, 1>}, {pipeline_mode = #tpu.pipeline_mode<synchronous>, transform_indices = @transform_3, window_bounds = array<i64: 256, 256>}, {pipeline_mode = #tpu.pipeline_mode<synchronous>, transform_indices = @transform_4, window_bounds = array<i64: 256, 256>}, {pipeline_mode = #tpu.pipeline_mode<synchronous>, transform_indices = @transform_5, window_bounds = array<i64: 256, 128>}, {pipeline_mode = #tpu.pipeline_mode<synchronous>, transform_indices = @transform_6, window_bounds = array<i64: 8, 128>}, {pipeline_mode = #tpu.pipeline_mode<synchronous>, transform_indices = @transform_7, window_bounds = array<i64: 8, 128>}]} {
    %c0 = arith.constant 0 : index
    %c0_0 = arith.constant 0 : index
    %0 = vector.load %arg1[%c0, %c0_0] : memref<8x256xf32, #tpu.memory_space<vmem>>, vector<8x256xf32>
    %c0_1 = arith.constant 0 : index
    %c0_2 = arith.constant 0 : index
    %1 = vector.load %arg2[%c0_1, %c0_2] : memref<8x256xf32, #tpu.memory_space<vmem>>, vector<8x256xf32>
    %2 = arith.mulf %0, %0 : vector<8x256xf32>
    %cst = arith.constant dense<0.000000e+00> : vector<8xf32>
    %3 = vector.multi_reduction <add>, %2, %cst [1] : vector<8x256xf32> to vector<8xf32>
    %4 = vector.shape_cast %3 : vector<8xf32> to vector<8x1xf32>
    %5 = math.sqrt %4 : vector<8x1xf32>
    %cst_3 = arith.constant 9.99999996E-13 : f32
    %6 = vector.broadcast %cst_3 : f32 to vector<8x1xf32>
    %7 = arith.maximumf %5, %6 : vector<8x1xf32>
    %8 = vector.broadcast %7 : vector<8x1xf32> to vector<8x256xf32>
    %9 = arith.divf %0, %8 : vector<8x256xf32>
    %10 = arith.mulf %1, %1 : vector<8x256xf32>
    %cst_4 = arith.constant dense<0.000000e+00> : vector<8xf32>
    %11 = vector.multi_reduction <add>, %10, %cst_4 [1] : vector<8x256xf32> to vector<8xf32>
    %12 = vector.shape_cast %11 : vector<8xf32> to vector<8x1xf32>
    %13 = math.sqrt %12 : vector<8x1xf32>
    %cst_5 = arith.constant 9.99999996E-13 : f32
    %14 = vector.broadcast %cst_5 : f32 to vector<8x1xf32>
    %15 = arith.maximumf %13, %14 : vector<8x1xf32>
    %16 = vector.broadcast %15 : vector<8x1xf32> to vector<8x256xf32>
    %17 = arith.divf %1, %16 : vector<8x256xf32>
    %18 = arith.truncf %9 : vector<8x256xf32> to vector<8x256xbf16>
    %19 = arith.truncf %17 : vector<8x256xf32> to vector<8x256xbf16>
    %cst_6 = arith.constant dense<0.000000e+00> : vector<8x8xf32>
    %20 = tpu.matmul %18, %19, %cst_6 {dimension_numbers = #tpu.dot_dimension_numbers<[1], [1], [0], [0], [0, 0, 1, 0], [], []>} : vector<8x256xbf16>, vector<8x256xbf16>, vector<8x8xf32> -> vector<8x8xf32>
    %cst_7 = arith.constant 14.2857141 : f32
    %21 = vector.broadcast %cst_7 : f32 to vector<8x8xf32>
    %22 = arith.mulf %20, %21 : vector<8x8xf32>
    %cst_8 = arith.constant dense<0.000000e+00> : vector<8x8xf32>
    %23 = tpu.matmul %18, %18, %cst_8 {dimension_numbers = #tpu.dot_dimension_numbers<[1], [1], [0], [0], [0, 0, 1, 0], [], []>} : vector<8x256xbf16>, vector<8x256xbf16>, vector<8x8xf32> -> vector<8x8xf32>
    %cst_9 = arith.constant 14.2857141 : f32
    %24 = vector.broadcast %cst_9 : f32 to vector<8x8xf32>
    %25 = arith.mulf %23, %24 : vector<8x8xf32>
    %26 = tpu.iota {dimensions = array<i32: 0>} : vector<8x8xi32>
    %27 = tpu.iota {dimensions = array<i32: 1>} : vector<8x8xi32>
    %c4_i32 = arith.constant 4 : i32
    %28 = vector.broadcast %c4_i32 : i32 to vector<8x8xi32>
    %29 = arith.cmpi slt, %27, %28 : vector<8x8xi32>
    %cst_10 = arith.constant -1.000000e+30 : f32
    %30 = vector.broadcast %cst_10 : f32 to vector<8x8xf32>
    %31 = arith.select %29, %22, %30 : vector<8x8xi1>, vector<8x8xf32>
    %cst_11 = arith.constant -1.000000e+30 : f32
    %32 = vector.broadcast %cst_11 : f32 to vector<8x8xf32>
    %33 = arith.select %29, %25, %32 : vector<8x8xi1>, vector<8x8xf32>
    %34 = arith.cmpi eq, %26, %27 : vector<8x8xi32>
    %35 = arith.extui %34 : vector<8x8xi1> to vector<8x8xi32>
    %36 = arith.sitofp %35 : vector<8x8xi32> to vector<8x8xf32>
    %c0_12 = arith.constant 0 : index
    %c0_13 = arith.constant 0 : index
    %37 = vector.load %arg3[%c0_12, %c0_13] : memref<8x1xi32, #tpu.memory_space<vmem>>, vector<8x1xi32>
    %38 = vector.broadcast %37 : vector<8x1xi32> to vector<8x8xi32>
    %39 = arith.cmpi eq, %27, %38 : vector<8x8xi32>
    %40 = arith.extui %39 : vector<8x8xi1> to vector<8x8xi32>
    %41 = arith.sitofp %40 : vector<8x8xi32> to vector<8x8xf32>
    %42 = vector.extract_strided_slice %26 {offsets = [0, 0], sizes = [8, 1], strides = [1, 1]} : vector<8x8xi32> to vector<8x1xi32>
    %c4_i32_14 = arith.constant 4 : i32
    %43 = vector.broadcast %c4_i32_14 : i32 to vector<8x1xi32>
    %44 = arith.cmpi slt, %42, %43 : vector<8x1xi32>
    %45 = arith.extui %44 : vector<8x1xi1> to vector<8x1xi32>
    %46 = arith.sitofp %45 : vector<8x1xi32> to vector<8x1xf32>
    %cst_15 = arith.constant dense<0xFF800000> : vector<8xf32>
    %47 = vector.multi_reduction <maximumf>, %31, %cst_15 [1] : vector<8x8xf32> to vector<8xf32>
    %48 = vector.shape_cast %47 : vector<8xf32> to vector<8x1xf32>
    %49 = vector.broadcast %48 : vector<8x1xf32> to vector<8x8xf32>
    %50 = arith.subf %31, %49 : vector<8x8xf32>
    %51 = math.exp %50 : vector<8x8xf32>
    %cst_16 = arith.constant dense<0.000000e+00> : vector<8xf32>
    %52 = vector.multi_reduction <add>, %51, %cst_16 [1] : vector<8x8xf32> to vector<8xf32>
    %53 = vector.shape_cast %52 : vector<8xf32> to vector<8x1xf32>
    %54 = math.log %53 : vector<8x1xf32>
    %55 = arith.addf %54, %48 : vector<8x1xf32>
    %56 = arith.mulf %31, %36 : vector<8x8xf32>
    %cst_17 = arith.constant dense<0.000000e+00> : vector<8xf32>
    %57 = vector.multi_reduction <add>, %56, %cst_17 [1] : vector<8x8xf32> to vector<8xf32>
    %58 = vector.shape_cast %57 : vector<8xf32> to vector<8x1xf32>
    %59 = arith.subf %55, %58 : vector<8x1xf32>
    %60 = arith.mulf %59, %46 : vector<8x1xf32>
    %cst_18 = arith.constant dense<0.000000e+00> : vector<1xf32>
    %61 = vector.multi_reduction <add>, %60, %cst_18 [0] : vector<8x1xf32> to vector<1xf32>
    %62 = vector.shape_cast %61 : vector<1xf32> to vector<1x1xf32>
    %cst_19 = arith.constant 2.500000e-01 : f32
    %63 = vector.broadcast %cst_19 : f32 to vector<1x1xf32>
    %64 = arith.mulf %62, %63 : vector<1x1xf32>
    %cst_20 = arith.constant dense<0xFF800000> : vector<8xf32>
    %65 = vector.multi_reduction <maximumf>, %33, %cst_20 [1] : vector<8x8xf32> to vector<8xf32>
    %66 = vector.shape_cast %65 : vector<8xf32> to vector<8x1xf32>
    %67 = vector.broadcast %66 : vector<8x1xf32> to vector<8x8xf32>
    %68 = arith.subf %33, %67 : vector<8x8xf32>
    %69 = math.exp %68 : vector<8x8xf32>
    %cst_21 = arith.constant dense<0.000000e+00> : vector<8xf32>
    %70 = vector.multi_reduction <add>, %69, %cst_21 [1] : vector<8x8xf32> to vector<8xf32>
    %71 = vector.shape_cast %70 : vector<8xf32> to vector<8x1xf32>
    %72 = math.log %71 : vector<8x1xf32>
    %73 = arith.addf %72, %66 : vector<8x1xf32>
    %74 = arith.mulf %33, %41 : vector<8x8xf32>
    %cst_22 = arith.constant dense<0.000000e+00> : vector<8xf32>
    %75 = vector.multi_reduction <add>, %74, %cst_22 [1] : vector<8x8xf32> to vector<8xf32>
    %76 = vector.shape_cast %75 : vector<8xf32> to vector<8x1xf32>
    %77 = arith.subf %73, %76 : vector<8x1xf32>
    %78 = arith.mulf %77, %46 : vector<8x1xf32>
    %cst_23 = arith.constant dense<0.000000e+00> : vector<1xf32>
    %79 = vector.multi_reduction <add>, %78, %cst_23 [0] : vector<8x1xf32> to vector<1xf32>
    %80 = vector.shape_cast %79 : vector<1xf32> to vector<1x1xf32>
    %cst_24 = arith.constant 2.500000e-01 : f32
    %81 = vector.broadcast %cst_24 : f32 to vector<1x1xf32>
    %82 = arith.mulf %80, %81 : vector<1x1xf32>
    %83 = arith.addf %64, %82 : vector<1x1xf32>
    %84 = vector.shape_cast %83 : vector<1x1xf32> to vector<1x1xf32>
    %85 = vector.broadcast %84 : vector<1x1xf32> to vector<8x128xf32>
    %c0_25 = arith.constant 0 : index
    %c0_26 = arith.constant 0 : index
    %86 = vector.load %arg8[%c0_25, %c0_26] : memref<8x128xf32, #tpu.memory_space<vmem>>, vector<8x128xf32>
    tpu.vector_store %arg8[%c0_25, %c0_26], %85 {strides = array<i32>} : memref<8x128xf32, #tpu.memory_space<vmem>>, vector<8x128xf32>,
    %c0_27 = arith.constant 0 : index
    %c0_28 = arith.constant 0 : index
    %87 = vector.load %arg4[%c0_27, %c0_28] : memref<256x256xbf16, #tpu.memory_space<vmem>>, vector<256x256xbf16>
    %cst_29 = arith.constant dense<0.000000e+00> : vector<8x256xf32>
    %88 = tpu.matmul %18, %87, %cst_29 {dimension_numbers = #tpu.dot_dimension_numbers<[1], [0], [0], [1], [0, 0, 1, 1], [], []>} : vector<8x256xbf16>, vector<256x256xbf16>, vector<8x256xf32> -> vector<8x256xf32>
    %cst_30 = arith.constant 0.000000e+00 : f32
    %89 = vector.broadcast %cst_30 : f32 to vector<8x256xf32>
    %90 = arith.maximumf %88, %89 : vector<8x256xf32>
    %91 = arith.truncf %90 : vector<8x256xf32> to vector<8x256xbf16>
    %c0_31 = arith.constant 0 : index
    %c0_32 = arith.constant 0 : index
    %92 = vector.load %arg5[%c0_31, %c0_32] : memref<256x256xbf16, #tpu.memory_space<vmem>>, vector<256x256xbf16>
    %cst_33 = arith.constant dense<0.000000e+00> : vector<8x256xf32>
    %93 = tpu.matmul %91, %92, %cst_33 {dimension_numbers = #tpu.dot_dimension_numbers<[1], [0], [0], [1], [0, 0, 1, 1], [], []>} : vector<8x256xbf16>, vector<256x256xbf16>, vector<8x256xf32> -> vector<8x256xf32>
    %cst_34 = arith.constant 0.000000e+00 : f32
    %94 = vector.broadcast %cst_34 : f32 to vector<8x256xf32>
    %95 = arith.maximumf %93, %94 : vector<8x256xf32>
    %96 = arith.truncf %95 : vector<8x256xf32> to vector<8x256xbf16>
    %c0_35 = arith.constant 0 : index
    %c0_36 = arith.constant 0 : index
    %97 = vector.load %arg6[%c0_35, %c0_36] : memref<256x128xbf16, #tpu.memory_space<vmem>>, vector<256x128xbf16>
    %cst_37 = arith.constant dense<0.000000e+00> : vector<8x128xf32>
    %98 = tpu.matmul %96, %97, %cst_37 {dimension_numbers = #tpu.dot_dimension_numbers<[1], [0], [0], [1], [0, 0, 1, 1], [], []>} : vector<8x256xbf16>, vector<256x128xbf16>, vector<8x128xf32> -> vector<8x128xf32>
    %c0_38 = arith.constant 0 : index
    %c0_39 = arith.constant 0 : index
    %99 = vector.load %arg7[%c0_38, %c0_39] : memref<8x128xf32, #tpu.memory_space<vmem>>, vector<8x128xf32>
    tpu.vector_store %arg7[%c0_38, %c0_39], %98 {strides = array<i32>} : memref<8x128xf32, #tpu.memory_space<vmem>>, vector<8x128xf32>,
    return
  }
  func.func @transform_0(%arg0: i32) -> (i32, i32) {
    %c0_i32 = arith.constant 0 : i32
    %c0_i32_0 = arith.constant 0 : i32
    %c0_i32_1 = arith.constant 0 : i32
    return %c0_i32, %c0_i32_0 : i32, i32
  }
  func.func @transform_1(%arg0: i32) -> (i32, i32) {
    %c0_i32 = arith.constant 0 : i32
    %c0_i32_0 = arith.constant 0 : i32
    %c0_i32_1 = arith.constant 0 : i32
    return %c0_i32, %c0_i32_0 : i32, i32
  }
  func.func @transform_2(%arg0: i32) -> (i32, i32) {
    %c0_i32 = arith.constant 0 : i32
    %c0_i32_0 = arith.constant 0 : i32
    %c0_i32_1 = arith.constant 0 : i32
    return %c0_i32, %c0_i32_0 : i32, i32
  }
  func.func @transform_3(%arg0: i32) -> (i32, i32) {
    %c0_i32 = arith.constant 0 : i32
    %c0_i32_0 = arith.constant 0 : i32
    %c0_i32_1 = arith.constant 0 : i32
    return %c0_i32, %c0_i32_0 : i32, i32
  }
  func.func @transform_4(%arg0: i32) -> (i32, i32) {
    %c0_i32 = arith.constant 0 : i32
    %c0_i32_0 = arith.constant 0 : i32
    %c0_i32_1 = arith.constant 0 : i32
    return %c0_i32, %c0_i32_0 : i32, i32
  }
  func.func @transform_5(%arg0: i32) -> (i32, i32) {
    %c0_i32 = arith.constant 0 : i32
    %c0_i32_0 = arith.constant 0 : i32
    %c0_i32_1 = arith.constant 0 : i32
    return %c0_i32, %c0_i32_0 : i32, i32
  }
  func.func @transform_6(%arg0: i32) -> (i32, i32) {
    %c0_i32 = arith.constant 0 : i32
    %c0_i32_0 = arith.constant 0 : i32
    %c0_i32_1 = arith.constant 0 : i32
    return %c0_i32, %c0_i32_0 : i32, i32
  }
  func.func @transform_7(%arg0: i32) -> (i32, i32) {
    %c0_i32 = arith.constant 0 : i32
    %c0_i32_0 = arith.constant 0 : i32
    %c0_i32_1 = arith.constant 0 : i32
    return %c0_i32, %c0_i32_0 : i32, i32
  }
}

</mosaic_0001>

<llo_original>
// kernel: avcl_forward.3
$region0: #{avcl_forward.3}
  #allocation0 [shape = 'u32[]', space=smem, size = 0x4, offset = 0x4, fixed_abs, tag = 'smem constant byte address 0x4 - core index']
  #allocation1 [shape = 'u32[144,128]{1,0:T(1,128)}', space=vmem, size = 0x12000, scoped, tag = 'internal scratch']
  #allocation2 [shape = 'f32[8,256]{1,0:T(8,128)}', space=vmem, size = 0x2000, scoped, tag = 'scratch operand']
  %s0 = inlined_call_operand.vmem [shape: f32[8,768], index: 0, kind: input, shape index: {}]
  %s1 = inlined_call_operand.hbm [shape: bf16[768,256], index: 1, kind: input, shape index: {}]
  %s2 = inlined_call_operand.hbm [shape: f32[1,256], index: 2, kind: input, shape index: {}]
  %s3 = inlined_call_operand.vmem [shape: f32[8,256], index: 3, kind: output, shape index: {}]
  %s4 = sld [smem:[#allocation0]]
  $region61: #{avcl_forward.3} parent=0
    _
  %s6 = ssub.s32 1, %s4
  %s7 = scalar_select 0, %s6, %s4
  $region1: #{avcl_forward.3} parent=0
    #allocation3 [shape = 'u8[393216]{0}', space=vmem, size = 0x60000, scoped, tag = 'input window, operand 1']
    #allocation4 [shape = 's32[2]{0}', space=sflag, size = 0x8, scoped, tag = 'scoped memory for avcl_forward.3']
    #allocation5 [shape = 'u8[1024]{0}', space=vmem, size = 0x400, scoped, tag = 'input window, operand 2, single buffered']
    #allocation6 [shape = 's32[1]{0}', space=sflag, size = 0x4, scoped, tag = 'scoped memory for avcl_forward.3']
    %8 = vsyncpa [#allocation4], 0
    %s9 = scalar_lea.sflag [#allocation4], 1
    %10 = vsyncpa %s9, 0
    %11 = vsyncpa [#allocation6], 0
    loop: start=0, step=1, limit=4
    $region2: #{avcl_forward.3} parent=1 // loop_pre_header
      _
    $region3: #{avcl_forward.3} parent=1 // loop_header
      %s13 = sphi 0, %s17
      %p14 = scmp.ge.s32.totalorder %s13, 4
      %s23 = sphi 0, %s25
      %s26 = sphi 0, %s23
      %s27 = sphi 0, %s26
      %s43 = sphi 0, %s27
      %s49 = sphi 0, %s51
      %s52 = sphi 0, %s49
      %s53 = sphi 0, %s52
      %s69 = sphi 0, %s53
      %s73 = sphi 0, %s73
      %s75 = sphi 0, %s73
      %s76 = sphi 0, %s75
      %s90 = sphi 0, %s76
      %s94 = sphi 0, %s94
      %s96 = sphi 0, %s94
      %s97 = sphi 0, %s96
      %s111 = sphi 0, %s97
    $region4: #{avcl_forward.3} parent=1 // loop_header_branch
      %16 = sbr.rel (%p14) target = $region8
    $region5: #{avcl_forward.3} parent=1 // loop_body
      %s18 = ssub.s32 %s13, 1
      %s19 = ssub.s32 %s13, 2
      %s20 = sadd.s32 %s13, 1
      %s21 = ssub.s32 %s13, %s20
      %p22 = scmp.eq.s32.totalorder %s21, 0
      %s24 = sadd.s32 %s23, 1
      %s25 = scalar_select %p22, %s23, %s24
      %p28 = pneg %p22
      %p29 = scmp.eq.s32.totalorder %s13, 1
      %p30 = por %p28, %p29
      %p31 = scmp.ne.s32.totalorder %s23, %s26
      %p32 = scmp.eq.s32.totalorder %s13, 0
      %p33 = por %p31, %p32
      %p34 = scmp.ne.s32.totalorder %s23, %s26
      %p35 = scmp.eq.s32.totalorder %s18, 1
      %p36 = por %p34, %p35
      %p37 = scmp.ne.s32.totalorder %s26, %s27
      %p38 = scmp.eq.s32.totalorder %s18, 0
      %p39 = por %p37, %p38
      %p40 = scmp.ne.s32.totalorder %s26, %s27
      %p41 = scmp.eq.s32.totalorder %s19, 1
      %p42 = por %p40, %p41
      %p44 = scmp.ne.s32.totalorder %s27, %s43
      %p45 = scmp.eq.s32.totalorder %s19, 0
      %p46 = por %p44, %p45
      %s47 = ssub.s32 %s13, %s20
      %p48 = scmp.eq.s32.totalorder %s47, 0
      %s50 = sadd.s32 %s49, 1
      %s51 = scalar_select %p48, %s49, %s50
      %p54 = pneg %p48
      %p55 = scmp.eq.s32.totalorder %s13, 1
      %p56 = por %p54, %p55
      %p57 = scmp.ne.s32.totalorder %s49, %s52
      %p58 = scmp.eq.s32.totalorder %s13, 0
      %p59 = por %p57, %p58
      %p60 = scmp.ne.s32.totalorder %s49, %s52
      %p61 = scmp.eq.s32.totalorder %s18, 1
      %p62 = por %p60, %p61
      %p63 = scmp.ne.s32.totalorder %s52, %s53
      %p64 = scmp.eq.s32.totalorder %s18, 0
      %p65 = por %p63, %p64
      %p66 = scmp.ne.s32.totalorder %s52, %s53
      %p67 = scmp.eq.s32.totalorder %s19, 1
      %p68 = por %p66, %p67
      %p70 = scmp.ne.s32.totalorder %s53, %s69
      %p71 = scmp.eq.s32.totalorder %s19, 0
      %p72 = por %p70, %p71
      %s74 = sadd.s32 %s73, 1
      %p77 = scmp.eq.s32.totalorder %s13, 1
      %p78 = scmp.ne.s32.totalorder %s73, %s75
      %p79 = scmp.eq.s32.totalorder %s13, 0
      %p80 = por %p78, %p79
      %p81 = scmp.ne.s32.totalorder %s73, %s75
      %p82 = scmp.eq.s32.totalorder %s18, 1
      %p83 = por %p81, %p82
      %p84 = scmp.ne.s32.totalorder %s75, %s76
      %p85 = scmp.eq.s32.totalorder %s18, 0
      %p86 = por %p84, %p85
      %p87 = scmp.ne.s32.totalorder %s75, %s76
      %p88 = scmp.eq.s32.totalorder %s19, 1
      %p89 = por %p87, %p88
      %p91 = scmp.ne.s32.totalorder %s76, %s90
      %p92 = scmp.eq.s32.totalorder %s19, 0
      %p93 = por %p91, %p92
      %s95 = sadd.s32 %s94, 1
      %p98 = scmp.eq.s32.totalorder %s13, 1
      %p99 = scmp.ne.s32.totalorder %s94, %s96
      %p100 = scmp.eq.s32.totalorder %s13, 0
      %p101 = por %p99, %p100
      %p102 = scmp.ne.s32.totalorder %s94, %s96
      %p103 = scmp.eq.s32.totalorder %s18, 1
      %p104 = por %p102, %p103
      %p105 = scmp.ne.s32.totalorder %s96, %s97
      %p106 = scmp.eq.s32.totalorder %s18, 0
      %p107 = por %p105, %p106
      %p108 = scmp.ne.s32.totalorder %s96, %s97
      %p109 = scmp.eq.s32.totalorder %s19, 1
      %p110 = por %p108, %p109
      %p112 = scmp.ne.s32.totalorder %s97, %s111
      %p113 = scmp.eq.s32.totalorder %s19, 0
      %p114 = por %p112, %p113
      %p115 = scmp.le.s32.totalorder 1, %s13
      %p116 = scmp.lt.s32.totalorder %s13, 3
      %p117 = pnand %p115, %p116
      %p118 = pneg %p117
      // Predicated region
      $region9: #{avcl_forward.3} parent=5 // pred_check
        _
      $region10: #{avcl_forward.3} parent=5 // pred_check_branch
        %120 = sbr.rel (%p117) target = $region12
      $region11: #{avcl_forward.3} parent=5 // pred_region
        %s121 = ssub.s32 %s13, 1
        // Predicated region
        $region13: #{avcl_forward.3} parent=11 // pred_check
          %p122 = pneg %p86
        $region14: #{avcl_forward.3} parent=11 // pred_check_branch
          %124 = sbr.rel (%p122) target = $region16
        $region15: #{avcl_forward.3} parent=11 // pred_region
          %s126 = ssub.s32 32, 32
          %127 = vsyncadd [#allocation6], %s126
          %s129 = sshll.u32 [#allocation5], 4
          %s130 = int_to_ptr.vmem [resolvable:$true] %s129
          %132 = dma.hbm_to_vmem [thread:$0]  %s2, 32, %s130, [#allocation6]
        $region16: #{avcl_forward.3} parent=11 // pred_fallthru
          _
      $region12: #{avcl_forward.3} parent=5 // pred_fallthru
        _
      %p133 = scmp.lt.s32.totalorder %s13, 2
      // Predicated region
      $region17: #{avcl_forward.3} parent=5 // pred_check
        %p134 = pneg %p133
      $region18: #{avcl_forward.3} parent=5 // pred_check_branch
        %136 = sbr.rel (%p134) target = $region20
      $region19: #{avcl_forward.3} parent=5 // pred_region
        // Predicated region
        $region21: #{avcl_forward.3} parent=19 // pred_check
          %p137 = pneg %p33
        $region22: #{avcl_forward.3} parent=19 // pred_check_branch
          %139 = sbr.rel (%p137) target = $region24
        $region23: #{avcl_forward.3} parent=19 // pred_region
          %s140 = smul.u32 3, %s13
          %p141 = scmp.lt.s32.totalorder %s140, 5
          %s142 = scalar_select %p141, %s140, 5
          %s143 = smul.addr %s142, 8
          %s144 = scalar_lea.vmem %s0, %s143
          %s145 = smul.u32 3, %s13
        $region24: #{avcl_forward.3} parent=19 // pred_fallthru
          _
        // Predicated region
        $region25: #{avcl_forward.3} parent=19 // pred_check
          %p146 = pneg %p59
        $region26: #{avcl_forward.3} parent=19 // pred_check_branch
          %148 = sbr.rel (%p146) target = $region28
        $region27: #{avcl_forward.3} parent=19 // pred_region
          %s149 = sand.u32 %s49, 1
          %s150 = scalar_lea.sflag [#allocation4], %s149
          %s151 = sand.u32 %s49, 1
          %s152 = smul.addr %s151, 384
          %s153 = scalar_lea.vmem [#allocation3], %s152
          %s154 = smul.u32 48, %s13
          %s156 = ssub.s32 6144, 6144
          %157 = vsyncadd %s150, %s156
          %s158 = smul.addr %s154, 2
          %s159 = smul.addr %s158, 64
          %s160 = scalar_lea.hbm %s1, %s159
          %s161 = sshll.u32 %s153, 4
          %s162 = int_to_ptr.vmem [resolvable:$true] %s161
          %167 = dma.hbm_to_vmem [thread:$0]  %s160, 6144, %s162, %s150, 128, 128, 8
        $region28: #{avcl_forward.3} parent=19 // pred_fallthru
          _
      $region20: #{avcl_forward.3} parent=5 // pred_fallthru
        _
      %p168 = scmp.le.s32.totalorder 1, %s13
      %p169 = scmp.lt.s32.totalorder %s13, 3
      %p170 = pnand %p168, %p169
      %p171 = pneg %p170
      // Predicated region
      $region29: #{avcl_forward.3} parent=5 // pred_check
        _
      $region30: #{avcl_forward.3} parent=5 // pred_check_branch
        %173 = sbr.rel (%p170) target = $region32
      $region31: #{avcl_forward.3} parent=5 // pred_region
        %s174 = ssub.s32 %s13, 1
        %s175 = sand.u32 %s52, 1
        %s176 = scalar_lea.sflag [#allocation4], %s175
        %s177 = sand.u32 %s52, 1
        %s178 = smul.addr %s177, 384
        %s179 = scalar_lea.vmem [#allocation3], %s178
        // Predicated region
        $region33: #{avcl_forward.3} parent=31 // pred_check
          %p180 = pneg %p65
        $region34: #{avcl_forward.3} parent=31 // pred_check_branch
          %182 = sbr.rel (%p180) target = $region36
        $region35: #{avcl_forward.3} parent=31 // pred_region
          %183 = dma.done %s176, 6144
        $region36: #{avcl_forward.3} parent=31 // pred_fallthru
          _
        // Predicated region
        $region37: #{avcl_forward.3} parent=31 // pred_check
          %p184 = pneg %p86
        $region38: #{avcl_forward.3} parent=31 // pred_check_branch
          %186 = sbr.rel (%p184) target = $region40
        $region39: #{avcl_forward.3} parent=31 // pred_region
          %187 = dma.done [#allocation6], 32
        $region40: #{avcl_forward.3} parent=31 // pred_fallthru
          _
        %s188 = smul.u32 3, %s18
        %p189 = scmp.lt.s32.totalorder %s188, 5
        %s190 = scalar_select %p189, %s188, 5
        %s191 = smul.addr %s190, 8
        %s192 = scalar_lea.vmem %s0, %s191
        %p193 = pneg %p39
        %p194 = pneg %p36
        %s195 = sand.u32 %s52, 1
        %s196 = scalar_lea.sflag [#allocation4], %s195
        %s197 = sand.u32 %s52, 1
        %s198 = smul.addr %s197, 384
        %s199 = scalar_lea.vmem [#allocation3], %s198
        %p200 = pneg %p65
        %p201 = pneg %p62
        %p202 = pneg %p86
        %p203 = pneg %p83
        %p204 = pneg %p107
        %p205 = pneg %p104
        %s206 = smul.u32 3, %s18
        %p207 = scmp.lt.s32.totalorder %s206, 5
        %s208 = scalar_select %p207, %s206, 5
        %s209 = smul.addr %s208, 8
        %s210 = scalar_lea.vmem %s0, %s209
        %s211 = smul.u32 3, %s18
        %s212 = smul.u32 48, %s18
        %p214 = scmp.eq.s32.totalorder %s18, 0
        // Predicated region
        $region41: #{avcl_forward.3} parent=31 // pred_check
          %p215 = pneg %p214
        $region42: #{avcl_forward.3} parent=31 // pred_check_branch
          %217 = sbr.rel (%p215) target = $region44
        $region43: #{avcl_forward.3} parent=31 // pred_region
          %218 = vst [vmem:[#allocation2] sm:$0xff] 0.0
          %219 = vst [vmem:[#allocation2 + $0x8] sm:$0xff] 0.0
        $region44: #{avcl_forward.3} parent=31 // pred_fallthru
          _
        %v220 = vld [vmem:[#allocation2] sm:$0xff]
        %v221 = vld [vmem:[#allocation2 + $0x8] sm:$0xff]
        %v222 = vld [vmem:[%s210] sm:$0xff]
        %v223 = vld [vmem:[%s210 + $0x8] sm:$0xff]
        %v224 = vld [vmem:[%s210 + $0x10] sm:$0xff]
        %v225 = vpack.c.bf16 %v222, %v222
        %v226 = vpack.c.bf16 %v223, %v223
        %v227 = vpack.c.bf16 %v224, %v224
        %v228 = vld [vmem:[%s179] sm:$0xff]
        %v229 = vld [vmem:[%s179 + $0x8] sm:$0xff]
        %v230 = vld [vmem:[%s179 + $0x10] sm:$0xff]
        %v231 = vld [vmem:[%s179 + $0x18] sm:$0xff]
        %v232 = vld [vmem:[%s179 + $0x20] sm:$0xff]
        %v233 = vld [vmem:[%s179 + $0x28] sm:$0xff]
        %v234 = vld [vmem:[%s179 + $0x30] sm:$0xff]
        %v235 = vld [vmem:[%s179 + $0x38] sm:$0xff]
        %v236 = vld [vmem:[%s179 + $0x40] sm:$0xff]
        %v237 = vld [vmem:[%s179 + $0x48] sm:$0xff]
        %v238 = vld [vmem:[%s179 + $0x50] sm:$0xff]
        %v239 = vld [vmem:[%s179 + $0x58] sm:$0xff]
        %v240 = vld [vmem:[%s179 + $0x60] sm:$0xff]
        %v241 = vld [vmem:[%s179 + $0x68] sm:$0xff]
        %v242 = vld [vmem:[%s179 + $0x70] sm:$0xff]
        %v243 = vld [vmem:[%s179 + $0x78] sm:$0xff]
        %v244 = vld [vmem:[%s179 + $0x80] sm:$0xff]
        %v245 = vld [vmem:[%s179 + $0x88] sm:$0xff]
        %v246 = vld [vmem:[%s179 + $0x90] sm:$0xff]
        %v247 = vld [vmem:[%s179 + $0x98] sm:$0xff]
        %v248 = vld [vmem:[%s179 + $0xa0] sm:$0xff]
        %v249 = vld [vmem:[%s179 + $0xa8] sm:$0xff]
        %v250 = vld [vmem:[%s179 + $0xb0] sm:$0xff]
        %v251 = vld [vmem:[%s179 + $0xb8] sm:$0xff]
        %v252 = vld [vmem:[%s179 + $0xc0] sm:$0xff]
        %v253 = vld [vmem:[%s179 + $0xc8] sm:$0xff]
        %v254 = vld [vmem:[%s179 + $0xd0] sm:$0xff]
        %v255 = vld [vmem:[%s179 + $0xd8] sm:$0xff]
        %v256 = vld [vmem:[%s179 + $0xe0] sm:$0xff]
        %v257 = vld [vmem:[%s179 + $0xe8] sm:$0xff]
        %v258 = vld [vmem:[%s179 + $0xf0] sm:$0xff]
        %v259 = vld [vmem:[%s179 + $0xf8] sm:$0xff]
        %v260 = vld [vmem:[%s179 + $0x100] sm:$0xff]
        %v261 = vld [vmem:[%s179 + $0x108] sm:$0xff]
        %v262 = vld [vmem:[%s179 + $0x110] sm:$0xff]
        %v263 = vld [vmem:[%s179 + $0x118] sm:$0xff]
        %v264 = vld [vmem:[%s179 + $0x120] sm:$0xff]
        %v265 = vld [vmem:[%s179 + $0x128] sm:$0xff]
        %v266 = vld [vmem:[%s179 + $0x130] sm:$0xff]
        %v267 = vld [vmem:[%s179 + $0x138] sm:$0xff]
        %v268 = vld [vmem:[%s179 + $0x140] sm:$0xff]
        %v269 = vld [vmem:[%s179 + $0x148] sm:$0xff]
        %v270 = vld [vmem:[%s179 + $0x150] sm:$0xff]
        %v271 = vld [vmem:[%s179 + $0x158] sm:$0xff]
        %v272 = vld [vmem:[%s179 + $0x160] sm:$0xff]
        %v273 = vld [vmem:[%s179 + $0x168] sm:$0xff]
        %v274 = vld [vmem:[%s179 + $0x170] sm:$0xff]
        %v275 = vld [vmem:[%s179 + $0x178] sm:$0xff]
        %v324 = vunpack.c.l.b16 %v228
        %v325 = vunpack.c.h.b16 %v228
        %v326 = vunpack.c.l.b16 %v229
        %v327 = vunpack.c.h.b16 %v229
        %v328 = vunpack.c.l.b16 %v230
        %v329 = vunpack.c.h.b16 %v230
        %v330 = vunpack.c.l.b16 %v231
        %v331 = vunpack.c.h.b16 %v231
        %v332 = vunpack.c.l.b16 %v232
        %v333 = vunpack.c.h.b16 %v232
        %v334 = vunpack.c.l.b16 %v233
        %v335 = vunpack.c.h.b16 %v233
        %v336 = vunpack.c.l.b16 %v234
        %v337 = vunpack.c.h.b16 %v234
        %v338 = vunpack.c.l.b16 %v235
        %v339 = vunpack.c.h.b16 %v235
        %v340 = vunpack.c.l.b16 %v236
        %v341 = vunpack.c.h.b16 %v236
        %v342 = vunpack.c.l.b16 %v237
        %v343 = vunpack.c.h.b16 %v237
        %v344 = vunpack.c.l.b16 %v238
        %v345 = vunpack.c.h.b16 %v238
        %v346 = vunpack.c.l.b16 %v239
        %v347 = vunpack.c.h.b16 %v239
        %v348 = vunpack.c.l.b16 %v240
        %v349 = vunpack.c.h.b16 %v240
        %v350 = vunpack.c.l.b16 %v241
        %v351 = vunpack.c.h.b16 %v241
        %v352 = vunpack.c.l.b16 %v242
        %v353 = vunpack.c.h.b16 %v242
        %v354 = vunpack.c.l.b16 %v243
        %v355 = vunpack.c.h.b16 %v243
        %v356 = vunpack.c.l.b16 %v244
        %v357 = vunpack.c.h.b16 %v244
        %v358 = vunpack.c.l.b16 %v245
        %v359 = vunpack.c.h.b16 %v245
        %v360 = vunpack.c.l.b16 %v246
        %v361 = vunpack.c.h.b16 %v246
        %v362 = vunpack.c.l.b16 %v247
        %v363 = vunpack.c.h.b16 %v247
        %v364 = vunpack.c.l.b16 %v248
        %v365 = vunpack.c.h.b16 %v248
        %v366 = vunpack.c.l.b16 %v249
        %v367 = vunpack.c.h.b16 %v249
        %v368 = vunpack.c.l.b16 %v250
        %v369 = vunpack.c.h.b16 %v250
        %v370 = vunpack.c.l.b16 %v251
        %v371 = vunpack.c.h.b16 %v251
        %v372 = vunpack.c.l.b16 %v252
        %v373 = vunpack.c.h.b16 %v252
        %v374 = vunpack.c.l.b16 %v253
        %v375 = vunpack.c.h.b16 %v253
        %v376 = vunpack.c.l.b16 %v254
        %v377 = vunpack.c.h.b16 %v254
        %v378 = vunpack.c.l.b16 %v255
        %v379 = vunpack.c.h.b16 %v255
        %v380 = vunpack.c.l.b16 %v256
        %v381 = vunpack.c.h.b16 %v256
        %v382 = vunpack.c.l.b16 %v257
        %v383 = vunpack.c.h.b16 %v257
        %v384 = vunpack.c.l.b16 %v258
        %v385 = vunpack.c.h.b16 %v258
        %v386 = vunpack.c.l.b16 %v259
        %v387 = vunpack.c.h.b16 %v259
        %v388 = vunpack.c.l.b16 %v260
        %v389 = vunpack.c.h.b16 %v260
        %v390 = vunpack.c.l.b16 %v261
        %v391 = vunpack.c.h.b16 %v261
        %v392 = vunpack.c.l.b16 %v262
        %v393 = vunpack.c.h.b16 %v262
        %v394 = vunpack.c.l.b16 %v263
        %v395 = vunpack.c.h.b16 %v263
        %v396 = vunpack.c.l.b16 %v264
        %v397 = vunpack.c.h.b16 %v264
        %v398 = vunpack.c.l.b16 %v265
        %v399 = vunpack.c.h.b16 %v265
        %v400 = vunpack.c.l.b16 %v266
        %v401 = vunpack.c.h.b16 %v266
        %v402 = vunpack.c.l.b16 %v267
        %v403 = vunpack.c.h.b16 %v267
        %v404 = vunpack.c.l.b16 %v268
        %v405 = vunpack.c.h.b16 %v268
        %v406 = vunpack.c.l.b16 %v269
        %v407 = vunpack.c.h.b16 %v269
        %v408 = vunpack.c.l.b16 %v270
        %v409 = vunpack.c.h.b16 %v270
        %v410 = vunpack.c.l.b16 %v271
        %v411 = vunpack.c.h.b16 %v271
        %v412 = vunpack.c.l.b16 %v272
        %v413 = vunpack.c.h.b16 %v272
        %v414 = vunpack.c.l.b16 %v273
        %v415 = vunpack.c.h.b16 %v273
        %v416 = vunpack.c.l.b16 %v274
        %v417 = vunpack.c.h.b16 %v274
        %v418 = vunpack.c.l.b16 %v275
        %v419 = vunpack.c.h.b16 %v275
        %v420 = vpack.c.b16 %v326, %v324
        %v421 = vpack.c.b16 %v327, %v325
        %v422 = vpack.c.b16 %v330, %v328
        %v423 = vpack.c.b16 %v331, %v329
        %v424 = vpack.c.b16 %v334, %v332
        %v425 = vpack.c.b16 %v335, %v333
        %v426 = vpack.c.b16 %v338, %v336
        %v427 = vpack.c.b16 %v339, %v337
        %v428 = vpack.c.b16 %v342, %v340
        %v429 = vpack.c.b16 %v343, %v341
        %v430 = vpack.c.b16 %v346, %v344
        %v431 = vpack.c.b16 %v347, %v345
        %v432 = vpack.c.b16 %v350, %v348
        %v433 = vpack.c.b16 %v351, %v349
        %v434 = vpack.c.b16 %v354, %v352
        %v435 = vpack.c.b16 %v355, %v353
        %v436 = vpack.c.b16 %v358, %v356
        %v437 = vpack.c.b16 %v359, %v357
        %v438 = vpack.c.b16 %v362, %v360
        %v439 = vpack.c.b16 %v363, %v361
        %v440 = vpack.c.b16 %v366, %v364
        %v441 = vpack.c.b16 %v367, %v365
        %v442 = vpack.c.b16 %v370, %v368
        %v443 = vpack.c.b16 %v371, %v369
        %v444 = vpack.c.b16 %v374, %v372
        %v445 = vpack.c.b16 %v375, %v373
        %v446 = vpack.c.b16 %v378, %v376
        %v447 = vpack.c.b16 %v379, %v377
        %v448 = vpack.c.b16 %v382, %v380
        %v449 = vpack.c.b16 %v383, %v381
        %v450 = vpack.c.b16 %v386, %v384
        %v451 = vpack.c.b16 %v387, %v385
        %v452 = vpack.c.b16 %v390, %v388
        %v453 = vpack.c.b16 %v391, %v389
        %v454 = vpack.c.b16 %v394, %v392
        %v455 = vpack.c.b16 %v395, %v393
        %v456 = vpack.c.b16 %v398, %v396
        %v457 = vpack.c.b16 %v399, %v397
        %v458 = vpack.c.b16 %v402, %v400
        %v459 = vpack.c.b16 %v403, %v401
        %v460 = vpack.c.b16 %v406, %v404
        %v461 = vpack.c.b16 %v407, %v405
        %v462 = vpack.c.b16 %v410, %v408
        %v463 = vpack.c.b16 %v411, %v409
        %v464 = vpack.c.b16 %v414, %v412
        %v465 = vpack.c.b16 %v415, %v413
        %v466 = vpack.c.b16 %v418, %v416
        %v467 = vpack.c.b16 %v419, %v417
        %516 = vmatprep.subr.bf16.mxu0 %v435
        %517 = vmatpush1.bf16.msra.mxu0 %v434
        %518 = vmatprep.subr.bf16.mxu0 %v433
        %519 = vmatpush1.bf16.msra.mxu0 %v432
        %520 = vmatprep.subr.bf16.mxu0 %v431
        %521 = vmatpush1.bf16.msra.mxu0 %v430
        %522 = vmatprep.subr.bf16.mxu0 %v429
        %523 = vmatpush1.bf16.msra.mxu0 %v428
        %524 = vmatprep.subr.bf16.mxu0 %v427
        %525 = vmatpush1.bf16.msra.mxu0 %v426
        %526 = vmatprep.subr.bf16.mxu0 %v425
        %527 = vmatpush1.bf16.msra.mxu0 %v424
        %528 = vmatprep.subr.bf16.mxu0 %v423
        %529 = vmatpush1.bf16.msra.mxu0 %v422
        %530 = vmatprep.subr.bf16.mxu0 %v421
        %531 = vmatpush1.bf16.msra.mxu0 %v420
        %532 = vmatprep.subr.bf16.mxu0 %v451
        %533 = vmatpush2.bf16.msra.mxu0 %v450
        %534 = vmatprep.subr.bf16.mxu0 %v449
        %535 = vmatpush2.bf16.msra.mxu0 %v448
        %536 = vmatprep.subr.bf16.mxu0 %v447
        %537 = vmatpush2.bf16.msra.mxu0 %v446
        %538 = vmatprep.subr.bf16.mxu0 %v445
        %539 = vmatpush2.bf16.msra.mxu0 %v444
        %540 = vmatprep.subr.bf16.mxu0 %v443
        %541 = vmatpush2.bf16.msra.mxu0 %v442
        %542 = vmatprep.subr.bf16.mxu0 %v441
        %543 = vmatpush2.bf16.msra.mxu0 %v440
        %544 = vmatprep.subr.bf16.mxu0 %v439
        %545 = vmatpush2.bf16.msra.mxu0 %v438
        %546 = vmatprep.subr.bf16.mxu0 %v437
        %547 = vmatpush2.bf16.msra.mxu0 %v436
        %548 = vmatprep.mubr.bf16.mxu0 %v226
        %549 = vmatmul.mubr.bf16.gmra.mxu0 %v225
        %v550 = vpop.f32.mrf.mxu0
        %v551 = vadd.f32 0.0, %v550
        %v552 = vpop.f32.mrf.mxu0
        %v553 = vadd.f32 0.0, %v552
        %v554 = vpop.f32.mrf.mxu0
        %v555 = vpop.f32.mrf.mxu0
        %556 = vdwg.mxu0
        %557 = vmatprep.subr.bf16.mxu0 %v467
        %558 = vmatpush1.bf16.msra.mxu0 %v466
        %559 = vmatprep.subr.bf16.mxu0 %v465
        %560 = vmatpush1.bf16.msra.mxu0 %v464
        %561 = vmatprep.subr.bf16.mxu0 %v463
        %562 = vmatpush1.bf16.msra.mxu0 %v462
        %563 = vmatprep.subr.bf16.mxu0 %v461
        %564 = vmatpush1.bf16.msra.mxu0 %v460
        %565 = vmatprep.subr.bf16.mxu0 %v459
        %566 = vmatpush1.bf16.msra.mxu0 %v458
        %567 = vmatprep.subr.bf16.mxu0 %v457
        %568 = vmatpush1.bf16.msra.mxu0 %v456
        %569 = vmatprep.subr.bf16.mxu0 %v455
        %570 = vmatpush1.bf16.msra.mxu0 %v454
        %571 = vmatprep.subr.bf16.mxu0 %v453
        %572 = vmatpush1.bf16.msra.mxu0 %v452
        %573 = vmatprep.subr.bf16.mxu0 0
        %574 = vmatpush2.bf16.msra.mxu0 0
        %575 = vmatprep.subr.bf16.mxu0 0
        %576 = vmatpush2.bf16.msra.mxu0 0
        %577 = vmatprep.subr.bf16.mxu0 0
        %578 = vmatpush2.bf16.msra.mxu0 0
        %579 = vmatprep.subr.bf16.mxu0 0
        %580 = vmatpush2.bf16.msra.mxu0 0
        %581 = vmatprep.subr.bf16.mxu0 0
        %582 = vmatpush2.bf16.msra.mxu0 0
        %583 = vmatprep.subr.bf16.mxu0 0
        %584 = vmatpush2.bf16.msra.mxu0 0
        %585 = vmatprep.subr.bf16.mxu0 0
        %586 = vmatpush2.bf16.msra.mxu0 0
        %587 = vmatprep.subr.bf16.mxu0 0
        %588 = vmatpush2.bf16.msra.mxu0 0
        %589 = vmatprep.mubr.bf16.mxu0 0
        %590 = vmatmul.mubr.bf16.gmra.mxu0 %v227
        %v591 = vpop.f32.mrf.mxu0
        %v592 = vadd.f32 %v551, %v591
        %v593 = vpop.f32.mrf.mxu0
        %v594 = vadd.f32 %v553, %v593
        %v595 = vpop.f32.mrf.mxu0
        %v596 = vpop.f32.mrf.mxu0
        %597 = vdwg.mxu0
        %v598 = vadd.f32 %v220, %v592
        %v599 = vadd.f32 %v221, %v594
        %600 = vst [vmem:[#allocation2] sm:$0xff] %v598
        %601 = vst [vmem:[#allocation2 + $0x8] sm:$0xff] %v599
        %p602 = scmp.eq.s32.totalorder %s18, 1
        // Predicated region
        $region45: #{avcl_forward.3} parent=31 // pred_check
          %p603 = pneg %p602
        $region46: #{avcl_forward.3} parent=31 // pred_check_branch
          %605 = sbr.rel (%p603) target = $region48
        $region47: #{avcl_forward.3} parent=31 // pred_region
          %v606 = vld [vmem:[#allocation2] sm:$0xff]
          %v607 = vld [vmem:[#allocation2 + $0x8] sm:$0xff]
          %v608 = vld [vmem:[#allocation5] sm:$0x3]
          %v610 = vlaneseq
          %v611 = vshrl.u32 %v610, 7
          %v612 = vsub.s32 0, %v611
          %v613 = vrot.slane %v608, %v612
          %v614 = vlaneseq
          %v615 = vshrl.u32 %v614, 7
          %v616 = vsub.s32 1, %v615
          %v617 = vrot.slane %v608, %v616
          %v620 = vadd.f32 %v606, %v613
          %v621 = vadd.f32 %v607, %v617
          %622 = vst [vmem:[%s3] sm:$0xff] %v620
          %623 = vst [vmem:[%s3 + $0x8] sm:$0xff] %v621
        $region48: #{avcl_forward.3} parent=31 // pred_fallthru
          _
        // Predicated region
        $region49: #{avcl_forward.3} parent=31 // pred_check
          %p624 = pneg %p104
        $region50: #{avcl_forward.3} parent=31 // pred_check_branch
          %626 = sbr.rel (%p624) target = $region52
        $region51: #{avcl_forward.3} parent=31 // pred_region
          _
        $region52: #{avcl_forward.3} parent=31 // pred_fallthru
          _
        // Predicated region
        $region53: #{avcl_forward.3} parent=31 // pred_check
          %p627 = pneg %p104
        $region54: #{avcl_forward.3} parent=31 // pred_check_branch
          %629 = sbr.rel (%p627) target = $region56
        $region55: #{avcl_forward.3} parent=31 // pred_region
          _
        $region56: #{avcl_forward.3} parent=31 // pred_fallthru
          _
      $region32: #{avcl_forward.3} parent=5 // pred_fallthru
        _
      %p630 = scmp.le.s32.totalorder 2, %s13
      // Predicated region
      $region57: #{avcl_forward.3} parent=5 // pred_check
        %p631 = pneg %p630
      $region58: #{avcl_forward.3} parent=5 // pred_check_branch
        %633 = sbr.rel (%p631) target = $region60
      $region59: #{avcl_forward.3} parent=5 // pred_region
        %s634 = ssub.s32 %s13, 2
      $region60: #{avcl_forward.3} parent=5 // pred_fallthru
        _
    $region6: #{avcl_forward.3} parent=1 // loop_footer
      %s17 = sadd.s32 1, %s13
    $region7: #{avcl_forward.3} parent=1 // loop_footer_branch
      %12 = sbr.rel target = $region3
    $region8: #{avcl_forward.3} parent=1 // loop_exit
      _
    %635 = vsyncpa [#allocation4], 1
    %s636 = scalar_lea.sflag [#allocation4], 1
    %637 = vsyncpa %s636, 1
    %638 = vsyncpa [#allocation6], 1

// kernel: avcl_forward.5
$region0: #{avcl_forward.5}
  #allocation0 [shape = 'u32[]', space=smem, size = 0x4, offset = 0x4, fixed_abs, tag = 'smem constant byte address 0x4 - core index']
  #allocation1 [shape = 'u32[144,128]{1,0:T(1,128)}', space=vmem, size = 0x12000, scoped, tag = 'internal scratch']
  %s0 = inlined_call_operand.vmem [shape: f32[8,256], index: 0, kind: input, shape index: {}]
  %s1 = inlined_call_operand.vmem [shape: f32[8,256], index: 1, kind: input, shape index: {}]
  %s2 = inlined_call_operand.vmem [shape: s32[8,1], index: 2, kind: input, shape index: {}]
  %s3 = inlined_call_operand.vmem [shape: bf16[256,256], index: 3, kind: input, shape index: {}]
  %s4 = inlined_call_operand.vmem [shape: bf16[256,256], index: 4, kind: input, shape index: {}]
  %s5 = inlined_call_operand.vmem [shape: bf16[256,128], index: 5, kind: input, shape index: {}]
  %s6 = inlined_call_operand.vmem [shape: f32[8,128], index: 6, kind: output, shape index: {0}]
  %s7 = inlined_call_operand.vmem [shape: f32[8,128], index: 7, kind: output, shape index: {1}]
  %8 = xla_tuple %s6, %s7
  %s9 = sld [smem:[#allocation0]]
  $region42: #{avcl_forward.5} parent=0
    _
  %s11 = ssub.s32 1, %s9
  %s12 = scalar_select 0, %s11, %s9
  // Predicated region
  $region2: #{avcl_forward.5} parent=0 // pred_check
    _
  $region3: #{avcl_forward.5} parent=0 // pred_check_branch
    %14 = sbr.rel (0) target = $region5
  $region4: #{avcl_forward.5} parent=0 // pred_region
    _
  $region5: #{avcl_forward.5} parent=0 // pred_fallthru
    _
  // Predicated region
  $region6: #{avcl_forward.5} parent=0 // pred_check
    _
  $region7: #{avcl_forward.5} parent=0 // pred_check_branch
    %16 = sbr.rel (0) target = $region9
  $region8: #{avcl_forward.5} parent=0 // pred_region
    _
  $region9: #{avcl_forward.5} parent=0 // pred_fallthru
    _
  // Predicated region
  $region10: #{avcl_forward.5} parent=0 // pred_check
    _
  $region11: #{avcl_forward.5} parent=0 // pred_check_branch
    %18 = sbr.rel (0) target = $region13
  $region12: #{avcl_forward.5} parent=0 // pred_region
    _
  $region13: #{avcl_forward.5} parent=0 // pred_fallthru
    _
  // Predicated region
  $region14: #{avcl_forward.5} parent=0 // pred_check
    _
  $region15: #{avcl_forward.5} parent=0 // pred_check_branch
    %20 = sbr.rel (0) target = $region17
  $region16: #{avcl_forward.5} parent=0 // pred_region
    _
  $region17: #{avcl_forward.5} parent=0 // pred_fallthru
    _
  // Predicated region
  $region18: #{avcl_forward.5} parent=0 // pred_check
    _
  $region19: #{avcl_forward.5} parent=0 // pred_check_branch
    %22 = sbr.rel (0) target = $region21
  $region20: #{avcl_forward.5} parent=0 // pred_region
    _
  $region21: #{avcl_forward.5} parent=0 // pred_fallthru
    _
  // Predicated region
  $region22: #{avcl_forward.5} parent=0 // pred_check
    _
  $region23: #{avcl_forward.5} parent=0 // pred_check_branch
    %24 = sbr.rel (0) target = $region25
  $region24: #{avcl_forward.5} parent=0 // pred_region
    _
  $region25: #{avcl_forward.5} parent=0 // pred_fallthru
    _
  %v26 = vld [vmem:[%s0] sm:$0xff]
  %v27 = vld [vmem:[%s0 + $0x8] sm:$0xff]
  %v28 = vld [vmem:[%s1] sm:$0xff]
  %v29 = vld [vmem:[%s1 + $0x8] sm:$0xff]
  %v30 = vmul.f32 %v26, %v26
  %v31 = vmul.f32 %v27, %v27
  %v32 = vadd.f32 %v30, %v31
  %33 = vadd.xlane.f32.xlu0 %v32
  %v34 = vpop.xlane.xlu0 %33
  %v35 = vrsqrt.pop %v34
  %v36 = vmul.f32 %v34, %v35
  %vm37 = vcmp.eq.f32.partialorder %v34, inf
  %v38 = vsel %vm37, %v34, %v36
  %vm39 = vcmp.eq.f32.partialorder %v34, 0.0
  %v40 = vand.u32 %v34, 2147483648
  %v41 = vsel %vm39, %v40, %v38
  %v42 = vmax.f32 %v41, 1e-12
  %v43 = vrcp.pop %v42
  %v44 = vmul.f32 %v26, %v43
  %v45 = vmul.f32 %v27, %v43
  %v46 = vmul.f32 %v28, %v28
  %v47 = vmul.f32 %v29, %v29
  %v48 = vadd.f32 %v46, %v47
  %49 = vadd.xlane.f32.xlu0 %v48
  %v50 = vpop.xlane.xlu0 %49
  %v51 = vrsqrt.pop %v50
  %v52 = vmul.f32 %v50, %v51
  %vm53 = vcmp.eq.f32.partialorder %v50, inf
  %v54 = vsel %vm53, %v50, %v52
  %vm55 = vcmp.eq.f32.partialorder %v50, 0.0
  %v56 = vand.u32 %v50, 2147483648
  %v57 = vsel %vm55, %v56, %v54
  %v58 = vmax.f32 %v57, 1e-12
  %v59 = vrcp.pop %v58
  %v60 = vmul.f32 %v28, %v59
  %v61 = vmul.f32 %v29, %v59
  %v62 = vpack.c.bf16 %v44, %v44
  %v63 = vpack.c.bf16 %v45, %v45
  %v64 = vpack.c.bf16 %v60, %v60
  %v65 = vpack.c.bf16 %v61, %v61
  %66 = vmatprep.subr.bf16.mxu0 0
  %67 = vmatpush1.bf16.xpose.msra.mxu0 0
  %68 = vmatprep.subr.bf16.mxu0 0
  %69 = vmatpush1.bf16.xpose.msra.mxu0 0
  %70 = vmatprep.subr.bf16.mxu0 0
  %71 = vmatpush1.bf16.xpose.msra.mxu0 0
  %72 = vmatprep.subr.bf16.mxu0 0
  %73 = vmatpush1.bf16.xpose.msra.mxu0 0
  %74 = vmatprep.subr.bf16.mxu0 0
  %75 = vmatpush1.bf16.xpose.msra.mxu0 0
  %76 = vmatprep.subr.bf16.mxu0 0
  %77 = vmatpush1.bf16.xpose.msra.mxu0 0
  %78 = vmatprep.subr.bf16.mxu0 0
  %79 = vmatpush1.bf16.xpose.msra.mxu0 0
  %80 = vmatprep.subr.bf16.mxu0 %v65
  %81 = vmatpush1.bf16.xpose.msra.mxu0 %v64
  %82 = vmatprep.subr.bf16.mxu0 0
  %83 = vmatpush2.bf16.xpose.msra.mxu0 0
  %84 = vmatprep.subr.bf16.mxu0 0
  %85 = vmatpush2.bf16.xpose.msra.mxu0 0
  %86 = vmatprep.subr.bf16.mxu0 0
  %87 = vmatpush2.bf16.xpose.msra.mxu0 0
  %88 = vmatprep.subr.bf16.mxu0 0
  %89 = vmatpush2.bf16.xpose.msra.mxu0 0
  %90 = vmatprep.subr.bf16.mxu0 0
  %91 = vmatpush2.bf16.xpose.msra.mxu0 0
  %92 = vmatprep.subr.bf16.mxu0 0
  %93 = vmatpush2.bf16.xpose.msra.mxu0 0
  %94 = vmatprep.subr.bf16.mxu0 0
  %95 = vmatpush2.bf16.xpose.msra.mxu0 0
  %96 = vmatprep.subr.bf16.mxu0 0
  %97 = vmatpush2.bf16.xpose.msra.mxu0 0
  %98 = vmatprep.mubr.bf16.mxu0 %v63
  %99 = vmatmul.mubr.bf16.gmra.mxu0 %v62
  %v100 = vpop.f32.mrf.mxu0
  %v101 = vadd.f32 0.0, %v100
  %v102 = vpop.f32.mrf.mxu0
  %v103 = vpop.f32.mrf.mxu0
  %v104 = vpop.f32.mrf.mxu0
  %105 = vdwg.mxu0
  %v106 = vmul.f32 %v101, 14.285714
  %107 = vmatprep.subr.bf16.mxu0 0
  %108 = vmatpush1.bf16.xpose.msra.mxu0 0
  %109 = vmatprep.subr.bf16.mxu0 0
  %110 = vmatpush1.bf16.xpose.msra.mxu0 0
  %111 = vmatprep.subr.bf16.mxu0 0
  %112 = vmatpush1.bf16.xpose.msra.mxu0 0
  %113 = vmatprep.subr.bf16.mxu0 0
  %114 = vmatpush1.bf16.xpose.msra.mxu0 0
  %115 = vmatprep.subr.bf16.mxu0 0
  %116 = vmatpush1.bf16.xpose.msra.mxu0 0
  %117 = vmatprep.subr.bf16.mxu0 0
  %118 = vmatpush1.bf16.xpose.msra.mxu0 0
  %119 = vmatprep.subr.bf16.mxu0 0
  %120 = vmatpush1.bf16.xpose.msra.mxu0 0
  %121 = vmatprep.subr.bf16.mxu0 %v63
  %122 = vmatpush1.bf16.xpose.msra.mxu0 %v62
  %123 = vmatprep.subr.bf16.mxu0 0
  %124 = vmatpush2.bf16.xpose.msra.mxu0 0
  %125 = vmatprep.subr.bf16.mxu0 0
  %126 = vmatpush2.bf16.xpose.msra.mxu0 0
  %127 = vmatprep.subr.bf16.mxu0 0
  %128 = vmatpush2.bf16.xpose.msra.mxu0 0
  %129 = vmatprep.subr.bf16.mxu0 0
  %130 = vmatpush2.bf16.xpose.msra.mxu0 0
  %131 = vmatprep.subr.bf16.mxu0 0
  %132 = vmatpush2.bf16.xpose.msra.mxu0 0
  %133 = vmatprep.subr.bf16.mxu0 0
  %134 = vmatpush2.bf16.xpose.msra.mxu0 0
  %135 = vmatprep.subr.bf16.mxu0 0
  %136 = vmatpush2.bf16.xpose.msra.mxu0 0
  %137 = vmatprep.subr.bf16.mxu0 0
  %138 = vmatpush2.bf16.xpose.msra.mxu0 0
  %139 = vmatprep.mubr.bf16.mxu0 %v63
  %140 = vmatmul.mubr.bf16.gmra.mxu0 %v62
  %v141 = vpop.f32.mrf.mxu0
  %v142 = vadd.f32 0.0, %v141
  %v143 = vpop.f32.mrf.mxu0
  %v144 = vpop.f32.mrf.mxu0
  %v145 = vpop.f32.mrf.mxu0
  %146 = vdwg.mxu0
  %v147 = vmul.f32 %v142, 14.285714
  %v148 = vlaneseq
  %v149 = vshrl.u32 %v148, 7
  %v150 = vlaneseq
  %v151 = vand.u32 %v150, 127
  %vm152 = vcmp.lt.s32.totalorder %v151, 4
  %v153 = vsel %vm152, %v106, -1e+30
  %v154 = vsel %vm152, %v147, -1e+30
  %vm155 = vcmp.eq.s32.totalorder %v149, %v151
  %v156 = vsel %vm155, 1, 0
  %v157 = vcvt.s32.f32 %v156
  %v158 = vld [vmem:[%s2] sm:$0xff]
  %159 = vset.pattern.permute.xlu0 0
  %160 = vperm.xlu0 %159, %v158
  %v161 = vpop.permute.xlu0 %160
  %vm162 = vcmp.eq.s32.totalorder %v151, %v161
  %v163 = vsel %vm162, 1, 0
  %v164 = vcvt.s32.f32 %v163
  %vm165 = vcmp.lt.s32.totalorder %v149, 4
  %v166 = vsel %vm165, 1, 0
  %v167 = vcvt.s32.f32 %v166
  %vm168 = vcmask 64512
  %v169 = vsel %vm168, %v153, -inf
  %170 = vmax.xlane.f32.xlu0 %v169
  %v171 = vpop.xlane.xlu0 %170
  %v172 = vsub.f32 %v153, %v171
  %v173 = vmul.f32 %v172, 1.442695
  %v174 = vpow.pop %v173
  %v175 = vsel %vm168, %v174, 0.0
  %176 = vadd.xlane.f32.xlu0 %v175
  %v177 = vpop.xlane.xlu0 %176
  %v178 = vlog2.pop %v177
  %v179 = vmul.f32 %v178, 0.6931472
  %v180 = vadd.f32 %v179, %v171
  %v181 = vmul.f32 %v153, %v157
  %v182 = vsel %vm168, %v181, 0.0
  %183 = vadd.xlane.f32.xlu0 %v182
  %v184 = vpop.xlane.xlu0 %183
  %v185 = vsub.f32 %v180, %v184
  %v186 = vmul.f32 %v185, %v167
  %v187 = vrot.slane %v186, 4
  %v188 = vadd.f32 %v186, %v187
  %v189 = vrot.slane %v188, 2
  %v190 = vadd.f32 %v188, %v189
  %v191 = vrot.slane %v190, 1
  %v192 = vadd.f32 %v190, %v191
  %v193 = vmul.f32 %v192, 0.25
  %v194 = vsel %vm168, %v154, -inf
  %195 = vmax.xlane.f32.xlu0 %v194
  %v196 = vpop.xlane.xlu0 %195
  %v197 = vsub.f32 %v154, %v196
  %v198 = vmul.f32 %v197, 1.442695
  %v199 = vpow.pop %v198
  %v200 = vsel %vm168, %v199, 0.0
  %201 = vadd.xlane.f32.xlu0 %v200
  %v202 = vpop.xlane.xlu0 %201
  %v203 = vlog2.pop %v202
  %v204 = vmul.f32 %v203, 0.6931472
  %v205 = vadd.f32 %v204, %v196
  %v206 = vmul.f32 %v154, %v164
  %v207 = vsel %vm168, %v206, 0.0
  %208 = vadd.xlane.f32.xlu0 %v207
  %v209 = vpop.xlane.xlu0 %208
  %v210 = vsub.f32 %v205, %v209
  %v211 = vmul.f32 %v210, %v167
  %v212 = vrot.slane %v211, 4
  %v213 = vadd.f32 %v211, %v212
  %v214 = vrot.slane %v213, 2
  %v215 = vadd.f32 %v213, %v214
  %v216 = vrot.slane %v215, 1
  %v217 = vadd.f32 %v215, %v216
  %v218 = vmul.f32 %v217, 0.25
  %v219 = vadd.f32 %v193, %v218
  %220 = vst [vmem:[%s7] sm:$0xff] %v219
  %v221 = vld [vmem:[%s3] sm:$0xff]
  %v222 = vld [vmem:[%s3 + $0x8] sm:$0xff]
  %v223 = vld [vmem:[%s3 + $0x10] sm:$0xff]
  %v224 = vld [vmem:[%s3 + $0x18] sm:$0xff]
  %v225 = vld [vmem:[%s3 + $0x20] sm:$0xff]
  %v226 = vld [vmem:[%s3 + $0x28] sm:$0xff]
  %v227 = vld [vmem:[%s3 + $0x30] sm:$0xff]
  %v228 = vld [vmem:[%s3 + $0x38] sm:$0xff]
  %v229 = vld [vmem:[%s3 + $0x40] sm:$0xff]
  %v230 = vld [vmem:[%s3 + $0x48] sm:$0xff]
  %v231 = vld [vmem:[%s3 + $0x50] sm:$0xff]
  %v232 = vld [vmem:[%s3 + $0x58] sm:$0xff]
  %v233 = vld [vmem:[%s3 + $0x60] sm:$0xff]
  %v234 = vld [vmem:[%s3 + $0x68] sm:$0xff]
  %v235 = vld [vmem:[%s3 + $0x70] sm:$0xff]
  %v236 = vld [vmem:[%s3 + $0x78] sm:$0xff]
  %v237 = vld [vmem:[%s3 + $0x80] sm:$0xff]
  %v238 = vld [vmem:[%s3 + $0x88] sm:$0xff]
  %v239 = vld [vmem:[%s3 + $0x90] sm:$0xff]
  %v240 = vld [vmem:[%s3 + $0x98] sm:$0xff]
  %v241 = vld [vmem:[%s3 + $0xa0] sm:$0xff]
  %v242 = vld [vmem:[%s3 + $0xa8] sm:$0xff]
  %v243 = vld [vmem:[%s3 + $0xb0] sm:$0xff]
  %v244 = vld [vmem:[%s3 + $0xb8] sm:$0xff]
  %v245 = vld [vmem:[%s3 + $0xc0] sm:$0xff]
  %v246 = vld [vmem:[%s3 + $0xc8] sm:$0xff]
  %v247 = vld [vmem:[%s3 + $0xd0] sm:$0xff]
  %v248 = vld [vmem:[%s3 + $0xd8] sm:$0xff]
  %v249 = vld [vmem:[%s3 + $0xe0] sm:$0xff]
  %v250 = vld [vmem:[%s3 + $0xe8] sm:$0xff]
  %v251 = vld [vmem:[%s3 + $0xf0] sm:$0xff]
  %v252 = vld [vmem:[%s3 + $0xf8] sm:$0xff]
  %v285 = vunpack.c.l.b16 %v221
  %v286 = vunpack.c.h.b16 %v221
  %v287 = vunpack.c.l.b16 %v222
  %v288 = vunpack.c.h.b16 %v222
  %v289 = vunpack.c.l.b16 %v223
  %v290 = vunpack.c.h.b16 %v223
  %v291 = vunpack.c.l.b16 %v224
  %v292 = vunpack.c.h.b16 %v224
  %v293 = vunpack.c.l.b16 %v225
  %v294 = vunpack.c.h.b16 %v225
  %v295 = vunpack.c.l.b16 %v226
  %v296 = vunpack.c.h.b16 %v226
  %v297 = vunpack.c.l.b16 %v227
  %v298 = vunpack.c.h.b16 %v227
  %v299 = vunpack.c.l.b16 %v228
  %v300 = vunpack.c.h.b16 %v228
  %v301 = vunpack.c.l.b16 %v229
  %v302 = vunpack.c.h.b16 %v229
  %v303 = vunpack.c.l.b16 %v230
  %v304 = vunpack.c.h.b16 %v230
  %v305 = vunpack.c.l.b16 %v231
  %v306 = vunpack.c.h.b16 %v231
  %v307 = vunpack.c.l.b16 %v232
  %v308 = vunpack.c.h.b16 %v232
  %v309 = vunpack.c.l.b16 %v233
  %v310 = vunpack.c.h.b16 %v233
  %v311 = vunpack.c.l.b16 %v234
  %v312 = vunpack.c.h.b16 %v234
  %v313 = vunpack.c.l.b16 %v235
  %v314 = vunpack.c.h.b16 %v235
  %v315 = vunpack.c.l.b16 %v236
  %v316 = vunpack.c.h.b16 %v236
  %v317 = vunpack.c.l.b16 %v237
  %v318 = vunpack.c.h.b16 %v237
  %v319 = vunpack.c.l.b16 %v238
  %v320 = vunpack.c.h.b16 %v238
  %v321 = vunpack.c.l.b16 %v239
  %v322 = vunpack.c.h.b16 %v239
  %v323 = vunpack.c.l.b16 %v240
  %v324 = vunpack.c.h.b16 %v240
  %v325 = vunpack.c.l.b16 %v241
  %v326 = vunpack.c.h.b16 %v241
  %v327 = vunpack.c.l.b16 %v242
  %v328 = vunpack.c.h.b16 %v242
  %v329 = vunpack.c.l.b16 %v243
  %v330 = vunpack.c.h.b16 %v243
  %v331 = vunpack.c.l.b16 %v244
  %v332 = vunpack.c.h.b16 %v244
  %v333 = vunpack.c.l.b16 %v245
  %v334 = vunpack.c.h.b16 %v245
  %v335 = vunpack.c.l.b16 %v246
  %v336 = vunpack.c.h.b16 %v246
  %v337 = vunpack.c.l.b16 %v247
  %v338 = vunpack.c.h.b16 %v247
  %v339 = vunpack.c.l.b16 %v248
  %v340 = vunpack.c.h.b16 %v248
  %v341 = vunpack.c.l.b16 %v249
  %v342 = vunpack.c.h.b16 %v249
  %v343 = vunpack.c.l.b16 %v250
  %v344 = vunpack.c.h.b16 %v250
  %v345 = vunpack.c.l.b16 %v251
  %v346 = vunpack.c.h.b16 %v251
  %v347 = vunpack.c.l.b16 %v252
  %v348 = vunpack.c.h.b16 %v252
  %v349 = vpack.c.b16 %v287, %v285
  %v350 = vpack.c.b16 %v288, %v286
  %v351 = vpack.c.b16 %v291, %v289
  %v352 = vpack.c.b16 %v292, %v290
  %v353 = vpack.c.b16 %v295, %v293
  %v354 = vpack.c.b16 %v296, %v294
  %v355 = vpack.c.b16 %v299, %v297
  %v356 = vpack.c.b16 %v300, %v298
  %v357 = vpack.c.b16 %v303, %v301
  %v358 = vpack.c.b16 %v304, %v302
  %v359 = vpack.c.b16 %v307, %v305
  %v360 = vpack.c.b16 %v308, %v306
  %v361 = vpack.c.b16 %v311, %v309
  %v362 = vpack.c.b16 %v312, %v310
  %v363 = vpack.c.b16 %v315, %v313
  %v364 = vpack.c.b16 %v316, %v314
  %v365 = vpack.c.b16 %v319, %v317
  %v366 = vpack.c.b16 %v320, %v318
  %v367 = vpack.c.b16 %v323, %v321
  %v368 = vpack.c.b16 %v324, %v322
  %v369 = vpack.c.b16 %v327, %v325
  %v370 = vpack.c.b16 %v328, %v326
  %v371 = vpack.c.b16 %v331, %v329
  %v372 = vpack.c.b16 %v332, %v330
  %v373 = vpack.c.b16 %v335, %v333
  %v374 = vpack.c.b16 %v336, %v334
  %v375 = vpack.c.b16 %v339, %v337
  %v376 = vpack.c.b16 %v340, %v338
  %v377 = vpack.c.b16 %v343, %v341
  %v378 = vpack.c.b16 %v344, %v342
  %v379 = vpack.c.b16 %v347, %v345
  %v380 = vpack.c.b16 %v348, %v346
  %413 = vmatprep.subr.bf16.mxu0 %v364
  %414 = vmatpush1.bf16.msra.mxu0 %v363
  %415 = vmatprep.subr.bf16.mxu0 %v362
  %416 = vmatpush1.bf16.msra.mxu0 %v361
  %417 = vmatprep.subr.bf16.mxu0 %v360
  %418 = vmatpush1.bf16.msra.mxu0 %v359
  %419 = vmatprep.subr.bf16.mxu0 %v358
  %420 = vmatpush1.bf16.msra.mxu0 %v357
  %421 = vmatprep.subr.bf16.mxu0 %v356
  %422 = vmatpush1.bf16.msra.mxu0 %v355
  %423 = vmatprep.subr.bf16.mxu0 %v354
  %424 = vmatpush1.bf16.msra.mxu0 %v353
  %425 = vmatprep.subr.bf16.mxu0 %v352
  %426 = vmatpush1.bf16.msra.mxu0 %v351
  %427 = vmatprep.subr.bf16.mxu0 %v350
  %428 = vmatpush1.bf16.msra.mxu0 %v349
  %429 = vmatprep.subr.bf16.mxu0 %v380
  %430 = vmatpush2.bf16.msra.mxu0 %v379
  %431 = vmatprep.subr.bf16.mxu0 %v378
  %432 = vmatpush2.bf16.msra.mxu0 %v377
  %433 = vmatprep.subr.bf16.mxu0 %v376
  %434 = vmatpush2.bf16.msra.mxu0 %v375
  %435 = vmatprep.subr.bf16.mxu0 %v374
  %436 = vmatpush2.bf16.msra.mxu0 %v373
  %437 = vmatprep.subr.bf16.mxu0 %v372
  %438 = vmatpush2.bf16.msra.mxu0 %v371
  %439 = vmatprep.subr.bf16.mxu0 %v370
  %440 = vmatpush2.bf16.msra.mxu0 %v369
  %441 = vmatprep.subr.bf16.mxu0 %v368
  %442 = vmatpush2.bf16.msra.mxu0 %v367
  %443 = vmatprep.subr.bf16.mxu0 %v366
  %444 = vmatpush2.bf16.msra.mxu0 %v365
  %445 = vmatprep.mubr.bf16.mxu0 %v63
  %446 = vmatmul.mubr.bf16.gmra.mxu0 %v62
  %v447 = vpop.f32.mrf.mxu0
  %v448 = vadd.f32 0.0, %v447
  %v449 = vpop.f32.mrf.mxu0
  %v450 = vadd.f32 0.0, %v449
  %v451 = vpop.f32.mrf.mxu0
  %v452 = vpop.f32.mrf.mxu0
  %453 = vdwg.mxu0
  %v454 = vmax.f32 %v448, 0.0
  %v455 = vmax.f32 %v450, 0.0
  %v456 = vpack.c.bf16 %v454, %v454
  %v457 = vpack.c.bf16 %v455, %v455
  %v458 = vld [vmem:[%s4] sm:$0xff]
  %v459 = vld [vmem:[%s4 + $0x8] sm:$0xff]
  %v460 = vld [vmem:[%s4 + $0x10] sm:$0xff]
  %v461 = vld [vmem:[%s4 + $0x18] sm:$0xff]
  %v462 = vld [vmem:[%s4 + $0x20] sm:$0xff]
  %v463 = vld [vmem:[%s4 + $0x28] sm:$0xff]
  %v464 = vld [vmem:[%s4 + $0x30] sm:$0xff]
  %v465 = vld [vmem:[%s4 + $0x38] sm:$0xff]
  %v466 = vld [vmem:[%s4 + $0x40] sm:$0xff]
  %v467 = vld [vmem:[%s4 + $0x48] sm:$0xff]
  %v468 = vld [vmem:[%s4 + $0x50] sm:$0xff]
  %v469 = vld [vmem:[%s4 + $0x58] sm:$0xff]
  %v470 = vld [vmem:[%s4 + $0x60] sm:$0xff]
  %v471 = vld [vmem:[%s4 + $0x68] sm:$0xff]
  %v472 = vld [vmem:[%s4 + $0x70] sm:$0xff]
  %v473 = vld [vmem:[%s4 + $0x78] sm:$0xff]
  %v474 = vld [vmem:[%s4 + $0x80] sm:$0xff]
  %v475 = vld [vmem:[%s4 + $0x88] sm:$0xff]
  %v476 = vld [vmem:[%s4 + $0x90] sm:$0xff]
  %v477 = vld [vmem:[%s4 + $0x98] sm:$0xff]
  %v478 = vld [vmem:[%s4 + $0xa0] sm:$0xff]
  %v479 = vld [vmem:[%s4 + $0xa8] sm:$0xff]
  %v480 = vld [vmem:[%s4 + $0xb0] sm:$0xff]
  %v481 = vld [vmem:[%s4 + $0xb8] sm:$0xff]
  %v482 = vld [vmem:[%s4 + $0xc0] sm:$0xff]
  %v483 = vld [vmem:[%s4 + $0xc8] sm:$0xff]
  %v484 = vld [vmem:[%s4 + $0xd0] sm:$0xff]
  %v485 = vld [vmem:[%s4 + $0xd8] sm:$0xff]
  %v486 = vld [vmem:[%s4 + $0xe0] sm:$0xff]
  %v487 = vld [vmem:[%s4 + $0xe8] sm:$0xff]
  %v488 = vld [vmem:[%s4 + $0xf0] sm:$0xff]
  %v489 = vld [vmem:[%s4 + $0xf8] sm:$0xff]
  %v522 = vunpack.c.l.b16 %v458
  %v523 = vunpack.c.h.b16 %v458
  %v524 = vunpack.c.l.b16 %v459
  %v525 = vunpack.c.h.b16 %v459
  %v526 = vunpack.c.l.b16 %v460
  %v527 = vunpack.c.h.b16 %v460
  %v528 = vunpack.c.l.b16 %v461
  %v529 = vunpack.c.h.b16 %v461
  %v530 = vunpack.c.l.b16 %v462
  %v531 = vunpack.c.h.b16 %v462
  %v532 = vunpack.c.l.b16 %v463
  %v533 = vunpack.c.h.b16 %v463
  %v534 = vunpack.c.l.b16 %v464
  %v535 = vunpack.c.h.b16 %v464
  %v536 = vunpack.c.l.b16 %v465
  %v537 = vunpack.c.h.b16 %v465
  %v538 = vunpack.c.l.b16 %v466
  %v539 = vunpack.c.h.b16 %v466
  %v540 = vunpack.c.l.b16 %v467
  %v541 = vunpack.c.h.b16 %v467
  %v542 = vunpack.c.l.b16 %v468
  %v543 = vunpack.c.h.b16 %v468
  %v544 = vunpack.c.l.b16 %v469
  %v545 = vunpack.c.h.b16 %v469
  %v546 = vunpack.c.l.b16 %v470
  %v547 = vunpack.c.h.b16 %v470
  %v548 = vunpack.c.l.b16 %v471
  %v549 = vunpack.c.h.b16 %v471
  %v550 = vunpack.c.l.b16 %v472
  %v551 = vunpack.c.h.b16 %v472
  %v552 = vunpack.c.l.b16 %v473
  %v553 = vunpack.c.h.b16 %v473
  %v554 = vunpack.c.l.b16 %v474
  %v555 = vunpack.c.h.b16 %v474
  %v556 = vunpack.c.l.b16 %v475
  %v557 = vunpack.c.h.b16 %v475
  %v558 = vunpack.c.l.b16 %v476
  %v559 = vunpack.c.h.b16 %v476
  %v560 = vunpack.c.l.b16 %v477
  %v561 = vunpack.c.h.b16 %v477
  %v562 = vunpack.c.l.b16 %v478
  %v563 = vunpack.c.h.b16 %v478
  %v564 = vunpack.c.l.b16 %v479
  %v565 = vunpack.c.h.b16 %v479
  %v566 = vunpack.c.l.b16 %v480
  %v567 = vunpack.c.h.b16 %v480
  %v568 = vunpack.c.l.b16 %v481
  %v569 = vunpack.c.h.b16 %v481
  %v570 = vunpack.c.l.b16 %v482
  %v571 = vunpack.c.h.b16 %v482
  %v572 = vunpack.c.l.b16 %v483
  %v573 = vunpack.c.h.b16 %v483
  %v574 = vunpack.c.l.b16 %v484
  %v575 = vunpack.c.h.b16 %v484
  %v576 = vunpack.c.l.b16 %v485
  %v577 = vunpack.c.h.b16 %v485
  %v578 = vunpack.c.l.b16 %v486
  %v579 = vunpack.c.h.b16 %v486
  %v580 = vunpack.c.l.b16 %v487
  %v581 = vunpack.c.h.b16 %v487
  %v582 = vunpack.c.l.b16 %v488
  %v583 = vunpack.c.h.b16 %v488
  %v584 = vunpack.c.l.b16 %v489
  %v585 = vunpack.c.h.b16 %v489
  %v586 = vpack.c.b16 %v524, %v522
  %v587 = vpack.c.b16 %v525, %v523
  %v588 = vpack.c.b16 %v528, %v526
  %v589 = vpack.c.b16 %v529, %v527
  %v590 = vpack.c.b16 %v532, %v530
  %v591 = vpack.c.b16 %v533, %v531
  %v592 = vpack.c.b16 %v536, %v534
  %v593 = vpack.c.b16 %v537, %v535
  %v594 = vpack.c.b16 %v540, %v538
  %v595 = vpack.c.b16 %v541, %v539
  %v596 = vpack.c.b16 %v544, %v542
  %v597 = vpack.c.b16 %v545, %v543
  %v598 = vpack.c.b16 %v548, %v546
  %v599 = vpack.c.b16 %v549, %v547
  %v600 = vpack.c.b16 %v552, %v550
  %v601 = vpack.c.b16 %v553, %v551
  %v602 = vpack.c.b16 %v556, %v554
  %v603 = vpack.c.b16 %v557, %v555
  %v604 = vpack.c.b16 %v560, %v558
  %v605 = vpack.c.b16 %v561, %v559
  %v606 = vpack.c.b16 %v564, %v562
  %v607 = vpack.c.b16 %v565, %v563
  %v608 = vpack.c.b16 %v568, %v566
  %v609 = vpack.c.b16 %v569, %v567
  %v610 = vpack.c.b16 %v572, %v570
  %v611 = vpack.c.b16 %v573, %v571
  %v612 = vpack.c.b16 %v576, %v574
  %v613 = vpack.c.b16 %v577, %v575
  %v614 = vpack.c.b16 %v580, %v578
  %v615 = vpack.c.b16 %v581, %v579
  %v616 = vpack.c.b16 %v584, %v582
  %v617 = vpack.c.b16 %v585, %v583
  %650 = vmatprep.subr.bf16.mxu0 %v601
  %651 = vmatpush1.bf16.msra.mxu0 %v600
  %652 = vmatprep.subr.bf16.mxu0 %v599
  %653 = vmatpush1.bf16.msra.mxu0 %v598
  %654 = vmatprep.subr.bf16.mxu0 %v597
  %655 = vmatpush1.bf16.msra.mxu0 %v596
  %656 = vmatprep.subr.bf16.mxu0 %v595
  %657 = vmatpush1.bf16.msra.mxu0 %v594
  %658 = vmatprep.subr.bf16.mxu0 %v593
  %659 = vmatpush1.bf16.msra.mxu0 %v592
  %660 = vmatprep.subr.bf16.mxu0 %v591
  %661 = vmatpush1.bf16.msra.mxu0 %v590
  %662 = vmatprep.subr.bf16.mxu0 %v589
  %663 = vmatpush1.bf16.msra.mxu0 %v588
  %664 = vmatprep.subr.bf16.mxu0 %v587
  %665 = vmatpush1.bf16.msra.mxu0 %v586
  %666 = vmatprep.subr.bf16.mxu0 %v617
  %667 = vmatpush2.bf16.msra.mxu0 %v616
  %668 = vmatprep.subr.bf16.mxu0 %v615
  %669 = vmatpush2.bf16.msra.mxu0 %v614
  %670 = vmatprep.subr.bf16.mxu0 %v613
  %671 = vmatpush2.bf16.msra.mxu0 %v612
  %672 = vmatprep.subr.bf16.mxu0 %v611
  %673 = vmatpush2.bf16.msra.mxu0 %v610
  %674 = vmatprep.subr.bf16.mxu0 %v609
  %675 = vmatpush2.bf16.msra.mxu0 %v608
  %676 = vmatprep.subr.bf16.mxu0 %v607
  %677 = vmatpush2.bf16.msra.mxu0 %v606
  %678 = vmatprep.subr.bf16.mxu0 %v605
  %679 = vmatpush2.bf16.msra.mxu0 %v604
  %680 = vmatprep.subr.bf16.mxu0 %v603
  %681 = vmatpush2.bf16.msra.mxu0 %v602
  %682 = vmatprep.mubr.bf16.mxu0 %v457
  %683 = vmatmul.mubr.bf16.gmra.mxu0 %v456
  %v684 = vpop.f32.mrf.mxu0
  %v685 = vadd.f32 0.0, %v684
  %v686 = vpop.f32.mrf.mxu0
  %v687 = vadd.f32 0.0, %v686
  %v688 = vpop.f32.mrf.mxu0
  %v689 = vpop.f32.mrf.mxu0
  %690 = vdwg.mxu0
  %v691 = vmax.f32 %v685, 0.0
  %v692 = vmax.f32 %v687, 0.0
  %v693 = vpack.c.bf16 %v691, %v691
  %v694 = vpack.c.bf16 %v692, %v692
  %v695 = vld [vmem:[%s5] sm:$0xf]
  %v696 = vld [vmem:[%s5 + $0x4] sm:$0xf]
  %v697 = vld [vmem:[%s5 + $0x8] sm:$0xf]
  %v698 = vld [vmem:[%s5 + $0xc] sm:$0xf]
  %v699 = vld [vmem:[%s5 + $0x10] sm:$0xf]
  %v700 = vld [vmem:[%s5 + $0x14] sm:$0xf]
  %v701 = vld [vmem:[%s5 + $0x18] sm:$0xf]
  %v702 = vld [vmem:[%s5 + $0x1c] sm:$0xf]
  %v703 = vld [vmem:[%s5 + $0x20] sm:$0xf]
  %v704 = vld [vmem:[%s5 + $0x24] sm:$0xf]
  %v705 = vld [vmem:[%s5 + $0x28] sm:$0xf]
  %v706 = vld [vmem:[%s5 + $0x2c] sm:$0xf]
  %v707 = vld [vmem:[%s5 + $0x30] sm:$0xf]
  %v708 = vld [vmem:[%s5 + $0x34] sm:$0xf]
  %v709 = vld [vmem:[%s5 + $0x38] sm:$0xf]
  %v710 = vld [vmem:[%s5 + $0x3c] sm:$0xf]
  %v711 = vld [vmem:[%s5 + $0x40] sm:$0xf]
  %v712 = vld [vmem:[%s5 + $0x44] sm:$0xf]
  %v713 = vld [vmem:[%s5 + $0x48] sm:$0xf]
  %v714 = vld [vmem:[%s5 + $0x4c] sm:$0xf]
  %v715 = vld [vmem:[%s5 + $0x50] sm:$0xf]
  %v716 = vld [vmem:[%s5 + $0x54] sm:$0xf]
  %v717 = vld [vmem:[%s5 + $0x58] sm:$0xf]
  %v718 = vld [vmem:[%s5 + $0x5c] sm:$0xf]
  %v719 = vld [vmem:[%s5 + $0x60] sm:$0xf]
  %v720 = vld [vmem:[%s5 + $0x64] sm:$0xf]
  %v721 = vld [vmem:[%s5 + $0x68] sm:$0xf]
  %v722 = vld [vmem:[%s5 + $0x6c] sm:$0xf]
  %v723 = vld [vmem:[%s5 + $0x70] sm:$0xf]
  %v724 = vld [vmem:[%s5 + $0x74] sm:$0xf]
  %v725 = vld [vmem:[%s5 + $0x78] sm:$0xf]
  %v726 = vld [vmem:[%s5 + $0x7c] sm:$0xf]
  %v759 = vunpack.c.l.b16 %v695
  %v760 = vunpack.c.l.b16 %v696
  %v761 = vunpack.c.l.b16 %v697
  %v762 = vunpack.c.l.b16 %v698
  %v763 = vunpack.c.l.b16 %v699
  %v764 = vunpack.c.l.b16 %v700
  %v765 = vunpack.c.l.b16 %v701
  %v766 = vunpack.c.l.b16 %v702
  %v767 = vunpack.c.l.b16 %v703
  %v768 = vunpack.c.l.b16 %v704
  %v769 = vunpack.c.l.b16 %v705
  %v770 = vunpack.c.l.b16 %v706
  %v771 = vunpack.c.l.b16 %v707
  %v772 = vunpack.c.l.b16 %v708
  %v773 = vunpack.c.l.b16 %v709
  %v774 = vunpack.c.l.b16 %v710
  %v775 = vunpack.c.l.b16 %v711
  %v776 = vunpack.c.l.b16 %v712
  %v777 = vunpack.c.l.b16 %v713
  %v778 = vunpack.c.l.b16 %v714
  %v779 = vunpack.c.l.b16 %v715
  %v780 = vunpack.c.l.b16 %v716
  %v781 = vunpack.c.l.b16 %v717
  %v782 = vunpack.c.l.b16 %v718
  %v783 = vunpack.c.l.b16 %v719
  %v784 = vunpack.c.l.b16 %v720
  %v785 = vunpack.c.l.b16 %v721
  %v786 = vunpack.c.l.b16 %v722
  %v787 = vunpack.c.l.b16 %v723
  %v788 = vunpack.c.l.b16 %v724
  %v789 = vunpack.c.l.b16 %v725
  %v790 = vunpack.c.l.b16 %v726
  %v791 = vpack.c.b16 %v760, %v759
  %v792 = vpack.c.b16 %v762, %v761
  %v793 = vpack.c.b16 %v764, %v763
  %v794 = vpack.c.b16 %v766, %v765
  %v795 = vpack.c.b16 %v768, %v767
  %v796 = vpack.c.b16 %v770, %v769
  %v797 = vpack.c.b16 %v772, %v771
  %v798 = vpack.c.b16 %v774, %v773
  %v799 = vpack.c.b16 %v776, %v775
  %v800 = vpack.c.b16 %v778, %v777
  %v801 = vpack.c.b16 %v780, %v779
  %v802 = vpack.c.b16 %v782, %v781
  %v803 = vpack.c.b16 %v784, %v783
  %v804 = vpack.c.b16 %v786, %v785
  %v805 = vpack.c.b16 %v788, %v787
  %v806 = vpack.c.b16 %v790, %v789
  %823 = vmatprep.subr.bf16.mxu0 0
  %824 = vmatpush1.bf16.msra.mxu0 %v798
  %825 = vmatprep.subr.bf16.mxu0 0
  %826 = vmatpush1.bf16.msra.mxu0 %v797
  %827 = vmatprep.subr.bf16.mxu0 0
  %828 = vmatpush1.bf16.msra.mxu0 %v796
  %829 = vmatprep.subr.bf16.mxu0 0
  %830 = vmatpush1.bf16.msra.mxu0 %v795
  %831 = vmatprep.subr.bf16.mxu0 0
  %832 = vmatpush1.bf16.msra.mxu0 %v794
  %833 = vmatprep.subr.bf16.mxu0 0
  %834 = vmatpush1.bf16.msra.mxu0 %v793
  %835 = vmatprep.subr.bf16.mxu0 0
  %836 = vmatpush1.bf16.msra.mxu0 %v792
  %837 = vmatprep.subr.bf16.mxu0 0
  %838 = vmatpush1.bf16.msra.mxu0 %v791
  %839 = vmatprep.subr.bf16.mxu0 0
  %840 = vmatpush2.bf16.msra.mxu0 %v806
  %841 = vmatprep.subr.bf16.mxu0 0
  %842 = vmatpush2.bf16.msra.mxu0 %v805
  %843 = vmatprep.subr.bf16.mxu0 0
  %844 = vmatpush2.bf16.msra.mxu0 %v804
  %845 = vmatprep.subr.bf16.mxu0 0
  %846 = vmatpush2.bf16.msra.mxu0 %v803
  %847 = vmatprep.subr.bf16.mxu0 0
  %848 = vmatpush2.bf16.msra.mxu0 %v802
  %849 = vmatprep.subr.bf16.mxu0 0
  %850 = vmatpush2.bf16.msra.mxu0 %v801
  %851 = vmatprep.subr.bf16.mxu0 0
  %852 = vmatpush2.bf16.msra.mxu0 %v800
  %853 = vmatprep.subr.bf16.mxu0 0
  %854 = vmatpush2.bf16.msra.mxu0 %v799
  %855 = vmatprep.mubr.bf16.mxu0 %v694
  %856 = vmatmul.mubr.bf16.gmra.mxu0 %v693
  %v857 = vpop.f32.mrf.mxu0
  %v858 = vadd.f32 0.0, %v857
  %v859 = vpop.f32.mrf.mxu0
  %v860 = vpop.f32.mrf.mxu0
  %v861 = vpop.f32.mrf.mxu0
  %862 = vdwg.mxu0
  %863 = vst [vmem:[%s6] sm:$0xff] %v858
  // Predicated region
  $region26: #{avcl_forward.5} parent=0 // pred_check
    _
  $region27: #{avcl_forward.5} parent=0 // pred_check_branch
    %865 = sbr.rel (0) target = $region29
  $region28: #{avcl_forward.5} parent=0 // pred_region
    _
  $region29: #{avcl_forward.5} parent=0 // pred_fallthru
    _
  // Predicated region
  $region30: #{avcl_forward.5} parent=0 // pred_check
    _
  $region31: #{avcl_forward.5} parent=0 // pred_check_branch
    %867 = sbr.rel (0) target = $region33
  $region32: #{avcl_forward.5} parent=0 // pred_region
    _
  $region33: #{avcl_forward.5} parent=0 // pred_fallthru
    _
  // Predicated region
  $region34: #{avcl_forward.5} parent=0 // pred_check
    _
  $region35: #{avcl_forward.5} parent=0 // pred_check_branch
    %869 = sbr.rel (0) target = $region37
  $region36: #{avcl_forward.5} parent=0 // pred_region
    _
  $region37: #{avcl_forward.5} parent=0 // pred_fallthru
    _
  // Predicated region
  $region38: #{avcl_forward.5} parent=0 // pred_check
    _
  $region39: #{avcl_forward.5} parent=0 // pred_check_branch
    %871 = sbr.rel (0) target = $region41
  $region40: #{avcl_forward.5} parent=0 // pred_region
    _
  $region41: #{avcl_forward.5} parent=0 // pred_fallthru
    _

// kernel: avcl_forward.4
$region0: #{avcl_forward.4}
  #allocation0 [shape = 'u32[]', space=smem, size = 0x4, offset = 0x4, fixed_abs, tag = 'smem constant byte address 0x4 - core index']
  #allocation1 [shape = 'u32[144,128]{1,0:T(1,128)}', space=vmem, size = 0x12000, scoped, tag = 'internal scratch']
  %s0 = inlined_call_operand.vmem [shape: f32[8,768], index: 0, kind: input, shape index: {}]
  %s1 = inlined_call_operand.hbm [shape: bf16[768,1024], index: 1, kind: input, shape index: {}]
  %s2 = inlined_call_operand.hbm [shape: f32[1,1024], index: 2, kind: input, shape index: {}]
  %s3 = inlined_call_operand.hbm [shape: bf16[256,256], index: 3, kind: input, shape index: {}]
  %s4 = inlined_call_operand.hbm [shape: f32[1,256], index: 4, kind: input, shape index: {}]
  %s5 = inlined_call_operand.hbm [shape: bf16[256,256], index: 5, kind: input, shape index: {}]
  %s6 = inlined_call_operand.hbm [shape: f32[1,256], index: 6, kind: input, shape index: {}]
  %s7 = inlined_call_operand.vmem [shape: f32[8,256], index: 7, kind: output, shape index: {}]
  %s8 = sld [smem:[#allocation0]]
  $region62: #{avcl_forward.4} parent=0
    _
  %s10 = ssub.s32 1, %s8
  %s11 = scalar_select 0, %s10, %s8
  $region1: #{avcl_forward.4} parent=0
    #allocation2 [shape = 'u8[1572864]{0}', space=vmem, size = 0x180000, scoped, tag = 'input window, operand 1, single buffered']
    #allocation3 [shape = 's32[1]{0}', space=sflag, size = 0x4, scoped, tag = 'scoped memory for avcl_forward.4']
    #allocation4 [shape = 'u8[4096]{0}', space=vmem, size = 0x1000, scoped, tag = 'input window, operand 2, single buffered']
    #allocation5 [shape = 's32[1]{0}', space=sflag, size = 0x4, scoped, tag = 'scoped memory for avcl_forward.4']
    #allocation6 [shape = 'u8[131072]{0}', space=vmem, size = 0x20000, scoped, tag = 'input window, operand 3, single buffered']
    #allocation7 [shape = 'u8[1024]{0}', space=vmem, size = 0x400, scoped, tag = 'input window, operand 4, single buffered']
    #allocation8 [shape = 's32[1]{0}', space=sflag, size = 0x4, scoped, tag = 'scoped memory for avcl_forward.4']
    #allocation9 [shape = 'u8[131072]{0}', space=vmem, size = 0x20000, scoped, tag = 'input window, operand 5, single buffered']
    #allocation10 [shape = 'u8[1024]{0}', space=vmem, size = 0x400, scoped, tag = 'input window, operand 6, single buffered']
    #allocation11 [shape = 's32[1]{0}', space=sflag, size = 0x4, scoped, tag = 'scoped memory for avcl_forward.4']
    %12 = vsyncpa [#allocation3], 0
    %13 = vsyncpa [#allocation5], 0
    %14 = vsyncpa [#allocation8], 0
    %15 = vsyncpa [#allocation11], 0
    // Predicated region
    $region2: #{avcl_forward.4} parent=1 // pred_check
      _
    $region3: #{avcl_forward.4} parent=1 // pred_check_branch
      %17 = sbr.rel (0) target = $region5
    $region4: #{avcl_forward.4} parent=1 // pred_region
      _
    $region5: #{avcl_forward.4} parent=1 // pred_fallthru
      _
    // Predicated region
    $region6: #{avcl_forward.4} parent=1 // pred_check
      _
    $region7: #{avcl_forward.4} parent=1 // pred_check_branch
      %19 = sbr.rel (0) target = $region9
    $region8: #{avcl_forward.4} parent=1 // pred_region
      %s21 = ssub.s32 49152, 49152
      %22 = vsyncadd [#allocation3], %s21
      %s23 = sshll.u32 [#allocation2], 4
      %s24 = int_to_ptr.vmem [resolvable:$true] %s23
      %29 = dma.hbm_to_vmem [thread:$0]  %s1, 49152, %s24, [#allocation3], 512, 512, 32
    $region9: #{avcl_forward.4} parent=1 // pred_fallthru
      _
    // Predicated region
    $region10: #{avcl_forward.4} parent=1 // pred_check
      _
    $region11: #{avcl_forward.4} parent=1 // pred_check_branch
      %31 = sbr.rel (0) target = $region13
    $region12: #{avcl_forward.4} parent=1 // pred_region
      %s33 = ssub.s32 128, 128
      %34 = vsyncadd [#allocation5], %s33
      %s36 = sshll.u32 [#allocation4], 4
      %s37 = int_to_ptr.vmem [resolvable:$true] %s36
      %39 = dma.hbm_to_vmem [thread:$0]  %s2, 128, %s37, [#allocation5]
    $region13: #{avcl_forward.4} parent=1 // pred_fallthru
      _
    // Predicated region
    $region14: #{avcl_forward.4} parent=1 // pred_check
      _
    $region15: #{avcl_forward.4} parent=1 // pred_check_branch
      %41 = sbr.rel (0) target = $region17
    $region16: #{avcl_forward.4} parent=1 // pred_region
      %s43 = ssub.s32 4096, 4096
      %44 = vsyncadd [#allocation5], %s43
      %s45 = sshll.u32 [#allocation6], 4
      %s46 = int_to_ptr.vmem [resolvable:$true] %s45
      %51 = dma.hbm_to_vmem [thread:$0]  %s3, 4096, %s46, [#allocation5], 128, 128, 8
    $region17: #{avcl_forward.4} parent=1 // pred_fallthru
      _
    // Predicated region
    $region18: #{avcl_forward.4} parent=1 // pred_check
      _
    $region19: #{avcl_forward.4} parent=1 // pred_check_branch
      %53 = sbr.rel (0) target = $region21
    $region20: #{avcl_forward.4} parent=1 // pred_region
      %s55 = ssub.s32 32, 32
      %56 = vsyncadd [#allocation8], %s55
      %s58 = sshll.u32 [#allocation7], 4
      %s59 = int_to_ptr.vmem [resolvable:$true] %s58
      %61 = dma.hbm_to_vmem [thread:$0]  %s4, 32, %s59, [#allocation8]
    $region21: #{avcl_forward.4} parent=1 // pred_fallthru
      _
    // Predicated region
    $region22: #{avcl_forward.4} parent=1 // pred_check
      _
    $region23: #{avcl_forward.4} parent=1 // pred_check_branch
      %63 = sbr.rel (0) target = $region25
    $region24: #{avcl_forward.4} parent=1 // pred_region
      %s65 = ssub.s32 4096, 4096
      %66 = vsyncadd [#allocation8], %s65
      %s67 = sshll.u32 [#allocation9], 4
      %s68 = int_to_ptr.vmem [resolvable:$true] %s67
      %73 = dma.hbm_to_vmem [thread:$0]  %s5, 4096, %s68, [#allocation8], 128, 128, 8
    $region25: #{avcl_forward.4} parent=1 // pred_fallthru
      _
    // Predicated region
    $region26: #{avcl_forward.4} parent=1 // pred_check
      _
    $region27: #{avcl_forward.4} parent=1 // pred_check_branch
      %75 = sbr.rel (0) target = $region29
    $region28: #{avcl_forward.4} parent=1 // pred_region
      %s77 = ssub.s32 32, 32
      %78 = vsyncadd [#allocation11], %s77
      %s80 = sshll.u32 [#allocation10], 4
      %s81 = int_to_ptr.vmem [resolvable:$true] %s80
      %83 = dma.hbm_to_vmem [thread:$0]  %s6, 32, %s81, [#allocation11]
    $region29: #{avcl_forward.4} parent=1 // pred_fallthru
      _
    // Predicated region
    $region30: #{avcl_forward.4} parent=1 // pred_check
      _
    $region31: #{avcl_forward.4} parent=1 // pred_check_branch
      %85 = sbr.rel (0) target = $region33
    $region32: #{avcl_forward.4} parent=1 // pred_region
      %86 = dma.done [#allocation3], 49152
    $region33: #{avcl_forward.4} parent=1 // pred_fallthru
      _
    // Predicated region
    $region34: #{avcl_forward.4} parent=1 // pred_check
      _
    $region35: #{avcl_forward.4} parent=1 // pred_check_branch
      %88 = sbr.rel (0) target = $region37
    $region36: #{avcl_forward.4} parent=1 // pred_region
      %89 = dma.done [#allocation5], 128
    $region37: #{avcl_forward.4} parent=1 // pred_fallthru
      _
    // Predicated region
    $region38: #{avcl_forward.4} parent=1 // pred_check
      _
    $region39: #{avcl_forward.4} parent=1 // pred_check_branch
      %91 = sbr.rel (0) target = $region41
    $region40: #{avcl_forward.4} parent=1 // pred_region
      %92 = dma.done [#allocation5], 4096
    $region41: #{avcl_forward.4} parent=1 // pred_fallthru
      _
    // Predicated region
    $region42: #{avcl_forward.4} parent=1 // pred_check
      _
    $region43: #{avcl_forward.4} parent=1 // pred_check_branch
      %94 = sbr.rel (0) target = $region45
    $region44: #{avcl_forward.4} parent=1 // pred_region
      %95 = dma.done [#allocation8], 32
    $region45: #{avcl_forward.4} parent=1 // pred_fallthru
      _
    // Predicated region
    $region46: #{avcl_forward.4} parent=1 // pred_check
      _
    $region47: #{avcl_forward.4} parent=1 // pred_check_branch
      %97 = sbr.rel (0) target = $region49
    $region48: #{avcl_forward.4} parent=1 // pred_region
      %98 = dma.done [#allocation8], 4096
    $region49: #{avcl_forward.4} parent=1 // pred_fallthru
      _
    // Predicated region
    $region50: #{avcl_forward.4} parent=1 // pred_check
      _
    $region51: #{avcl_forward.4} parent=1 // pred_check_branch
      %100 = sbr.rel (0) target = $region53
    $region52: #{avcl_forward.4} parent=1 // pred_region
      %101 = dma.done [#allocation11], 32
    $region53: #{avcl_forward.4} parent=1 // pred_fallthru
      _
    %v102 = vld [vmem:[%s0] sm:$0xff]
    %v103 = vld [vmem:[%s0 + $0x8] sm:$0xff]
    %v104 = vld [vmem:[%s0 + $0x10] sm:$0xff]
    %v105 = vld [vmem:[%s0 + $0x18] sm:$0xff]
    %v106 = vld [vmem:[%s0 + $0x20] sm:$0xff]
    %v107 = vld [vmem:[%s0 + $0x28] sm:$0xff]
    %v108 = vpack.c.bf16 %v102, %v102
    %v109 = vpack.c.bf16 %v103, %v103
    %v110 = vpack.c.bf16 %v104, %v104
    %v111 = vpack.c.bf16 %v105, %v105
    %v112 = vpack.c.bf16 %v106, %v106
    %v113 = vpack.c.bf16 %v107, %v107
    %v114 = vld [vmem:[#allocation2] sm:$0xff]
    %v115 = vld [vmem:[#allocation2 + $0x20] sm:$0xff]
    %v116 = vld [vmem:[#allocation2 + $0x40] sm:$0xff]
    %v117 = vld [vmem:[#allocation2 + $0x60] sm:$0xff]
    %v118 = vld [vmem:[#allocation2 + $0x80] sm:$0xff]
    %v119 = vld [vmem:[#allocation2 + $0xa0] sm:$0xff]
    %v120 = vld [vmem:[#allocation2 + $0xc0] sm:$0xff]
    %v121 = vld [vmem:[#allocation2 + $0xe0] sm:$0xff]
    %v122 = vld [vmem:[#allocation2 + $0x100] sm:$0xff]
    %v123 = vld [vmem:[#allocation2 + $0x120] sm:$0xff]
    %v124 = vld [vmem:[#allocation2 + $0x140] sm:$0xff]
    %v125 = vld [vmem:[#allocation2 + $0x160] sm:$0xff]
    %v126 = vld [vmem:[#allocation2 + $0x180] sm:$0xff]
    %v127 = vld [vmem:[#allocation2 + $0x1a0] sm:$0xff]
    %v128 = vld [vmem:[#allocation2 + $0x1c0] sm:$0xff]
    %v129 = vld [vmem:[#allocation2 + $0x1e0] sm:$0xff]
    %v130 = vld [vmem:[#allocation2 + $0x200] sm:$0xff]
    %v131 = vld [vmem:[#allocation2 + $0x220] sm:$0xff]
    %v132 = vld [vmem:[#allocation2 + $0x240] sm:$0xff]
    %v133 = vld [vmem:[#allocation2 + $0x260] sm:$0xff]
    %v134 = vld [vmem:[#allocation2 + $0x280] sm:$0xff]
    %v135 = vld [vmem:[#allocation2 + $0x2a0] sm:$0xff]
    %v136 = vld [vmem:[#allocation2 + $0x2c0] sm:$0xff]
    %v137 = vld [vmem:[#allocation2 + $0x2e0] sm:$0xff]
    %v138 = vld [vmem:[#allocation2 + $0x300] sm:$0xff]
    %v139 = vld [vmem:[#allocation2 + $0x320] sm:$0xff]
    %v140 = vld [vmem:[#allocation2 + $0x340] sm:$0xff]
    %v141 = vld [vmem:[#allocation2 + $0x360] sm:$0xff]
    %v142 = vld [vmem:[#allocation2 + $0x380] sm:$0xff]
    %v143 = vld [vmem:[#allocation2 + $0x3a0] sm:$0xff]
    %v144 = vld [vmem:[#allocation2 + $0x3c0] sm:$0xff]
    %v145 = vld [vmem:[#allocation2 + $0x3e0] sm:$0xff]
    %v146 = vld [vmem:[#allocation2 + $0x400] sm:$0xff]
    %v147 = vld [vmem:[#allocation2 + $0x420] sm:$0xff]
    %v148 = vld [vmem:[#allocation2 + $0x440] sm:$0xff]
    %v149 = vld [vmem:[#allocation2 + $0x460] sm:$0xff]
    %v150 = vld [vmem:[#allocation2 + $0x480] sm:$0xff]
    %v151 = vld [vmem:[#allocation2 + $0x4a0] sm:$0xff]
    %v152 = vld [vmem:[#allocation2 + $0x4c0] sm:$0xff]
    %v153 = vld [vmem:[#allocation2 + $0x4e0] sm:$0xff]
    %v154 = vld [vmem:[#allocation2 + $0x500] sm:$0xff]
    %v155 = vld [vmem:[#allocation2 + $0x520] sm:$0xff]
    %v156 = vld [vmem:[#allocation2 + $0x540] sm:$0xff]
    %v157 = vld [vmem:[#allocation2 + $0x560] sm:$0xff]
    %v158 = vld [vmem:[#allocation2 + $0x580] sm:$0xff]
    %v159 = vld [vmem:[#allocation2 + $0x5a0] sm:$0xff]
    %v160 = vld [vmem:[#allocation2 + $0x5c0] sm:$0xff]
    %v161 = vld [vmem:[#allocation2 + $0x5e0] sm:$0xff]
    %v162 = vld [vmem:[#allocation2 + $0x600] sm:$0xff]
    %v163 = vld [vmem:[#allocation2 + $0x620] sm:$0xff]
    %v164 = vld [vmem:[#allocation2 + $0x640] sm:$0xff]
    %v165 = vld [vmem:[#allocation2 + $0x660] sm:$0xff]
    %v166 = vld [vmem:[#allocation2 + $0x680] sm:$0xff]
    %v167 = vld [vmem:[#allocation2 + $0x6a0] sm:$0xff]
    %v168 = vld [vmem:[#allocation2 + $0x6c0] sm:$0xff]
    %v169 = vld [vmem:[#allocation2 + $0x6e0] sm:$0xff]
    %v170 = vld [vmem:[#allocation2 + $0x700] sm:$0xff]
    %v171 = vld [vmem:[#allocation2 + $0x720] sm:$0xff]
    %v172 = vld [vmem:[#allocation2 + $0x740] sm:$0xff]
    %v173 = vld [vmem:[#allocation2 + $0x760] sm:$0xff]
    %v174 = vld [vmem:[#allocation2 + $0x780] sm:$0xff]
    %v175 = vld [vmem:[#allocation2 + $0x7a0] sm:$0xff]
    %v176 = vld [vmem:[#allocation2 + $0x7c0] sm:$0xff]
    %v177 = vld [vmem:[#allocation2 + $0x7e0] sm:$0xff]
    %v178 = vld [vmem:[#allocation2 + $0x800] sm:$0xff]
    %v179 = vld [vmem:[#allocation2 + $0x820] sm:$0xff]
    %v180 = vld [vmem:[#allocation2 + $0x840] sm:$0xff]
    %v181 = vld [vmem:[#allocation2 + $0x860] sm:$0xff]
    %v182 = vld [vmem:[#allocation2 + $0x880] sm:$0xff]
    %v183 = vld [vmem:[#allocation2 + $0x8a0] sm:$0xff]
    %v184 = vld [vmem:[#allocation2 + $0x8c0] sm:$0xff]
    %v185 = vld [vmem:[#allocation2 + $0x8e0] sm:$0xff]
    %v186 = vld [vmem:[#allocation2 + $0x900] sm:$0xff]
    %v187 = vld [vmem:[#allocation2 + $0x920] sm:$0xff]
    %v188 = vld [vmem:[#allocation2 + $0x940] sm:$0xff]
    %v189 = vld [vmem:[#allocation2 + $0x960] sm:$0xff]
    %v190 = vld [vmem:[#allocation2 + $0x980] sm:$0xff]
    %v191 = vld [vmem:[#allocation2 + $0x9a0] sm:$0xff]
    %v192 = vld [vmem:[#allocation2 + $0x9c0] sm:$0xff]
    %v193 = vld [vmem:[#allocation2 + $0x9e0] sm:$0xff]
    %v194 = vld [vmem:[#allocation2 + $0xa00] sm:$0xff]
    %v195 = vld [vmem:[#allocation2 + $0xa20] sm:$0xff]
    %v196 = vld [vmem:[#allocation2 + $0xa40] sm:$0xff]
    %v197 = vld [vmem:[#allocation2 + $0xa60] sm:$0xff]
    %v198 = vld [vmem:[#allocation2 + $0xa80] sm:$0xff]
    %v199 = vld [vmem:[#allocation2 + $0xaa0] sm:$0xff]
    %v200 = vld [vmem:[#allocation2 + $0xac0] sm:$0xff]
    %v201 = vld [vmem:[#allocation2 + $0xae0] sm:$0xff]
    %v202 = vld [vmem:[#allocation2 + $0xb00] sm:$0xff]
    %v203 = vld [vmem:[#allocation2 + $0xb20] sm:$0xff]
    %v204 = vld [vmem:[#allocation2 + $0xb40] sm:$0xff]
    %v205 = vld [vmem:[#allocation2 + $0xb60] sm:$0xff]
    %v206 = vld [vmem:[#allocation2 + $0xb80] sm:$0xff]
    %v207 = vld [vmem:[#allocation2 + $0xba0] sm:$0xff]
    %v208 = vld [vmem:[#allocation2 + $0xbc0] sm:$0xff]
    %v209 = vld [vmem:[#allocation2 + $0xbe0] sm:$0xff]
    %v210 = vld [vmem:[#allocation4] sm:$0x3]
    %v212 = vlaneseq
    %v213 = vshrl.u32 %v212, 7
    %v214 = vsub.s32 0, %v213
    %v215 = vrot.slane %v210, %v214
    %v216 = vlaneseq
    %v217 = vshrl.u32 %v216, 7
    %v218 = vsub.s32 1, %v217
    %v219 = vrot.slane %v210, %v218
    %v318 = vunpack.c.l.b16 %v114
    %v319 = vunpack.c.h.b16 %v114
    %v320 = vunpack.c.l.b16 %v115
    %v321 = vunpack.c.h.b16 %v115
    %v322 = vunpack.c.l.b16 %v116
    %v323 = vunpack.c.h.b16 %v116
    %v324 = vunpack.c.l.b16 %v117
    %v325 = vunpack.c.h.b16 %v117
    %v326 = vunpack.c.l.b16 %v118
    %v327 = vunpack.c.h.b16 %v118
    %v328 = vunpack.c.l.b16 %v119
    %v329 = vunpack.c.h.b16 %v119
    %v330 = vunpack.c.l.b16 %v120
    %v331 = vunpack.c.h.b16 %v120
    %v332 = vunpack.c.l.b16 %v121
    %v333 = vunpack.c.h.b16 %v121
    %v334 = vunpack.c.l.b16 %v122
    %v335 = vunpack.c.h.b16 %v122
    %v336 = vunpack.c.l.b16 %v123
    %v337 = vunpack.c.h.b16 %v123
    %v338 = vunpack.c.l.b16 %v124
    %v339 = vunpack.c.h.b16 %v124
    %v340 = vunpack.c.l.b16 %v125
    %v341 = vunpack.c.h.b16 %v125
    %v342 = vunpack.c.l.b16 %v126
    %v343 = vunpack.c.h.b16 %v126
    %v344 = vunpack.c.l.b16 %v127
    %v345 = vunpack.c.h.b16 %v127
    %v346 = vunpack.c.l.b16 %v128
    %v347 = vunpack.c.h.b16 %v128
    %v348 = vunpack.c.l.b16 %v129
    %v349 = vunpack.c.h.b16 %v129
    %v350 = vunpack.c.l.b16 %v130
    %v351 = vunpack.c.h.b16 %v130
    %v352 = vunpack.c.l.b16 %v131
    %v353 = vunpack.c.h.b16 %v131
    %v354 = vunpack.c.l.b16 %v132
    %v355 = vunpack.c.h.b16 %v132
    %v356 = vunpack.c.l.b16 %v133
    %v357 = vunpack.c.h.b16 %v133
    %v358 = vunpack.c.l.b16 %v134
    %v359 = vunpack.c.h.b16 %v134
    %v360 = vunpack.c.l.b16 %v135
    %v361 = vunpack.c.h.b16 %v135
    %v362 = vunpack.c.l.b16 %v136
    %v363 = vunpack.c.h.b16 %v136
    %v364 = vunpack.c.l.b16 %v137
    %v365 = vunpack.c.h.b16 %v137
    %v366 = vunpack.c.l.b16 %v138
    %v367 = vunpack.c.h.b16 %v138
    %v368 = vunpack.c.l.b16 %v139
    %v369 = vunpack.c.h.b16 %v139
    %v370 = vunpack.c.l.b16 %v140
    %v371 = vunpack.c.h.b16 %v140
    %v372 = vunpack.c.l.b16 %v141
    %v373 = vunpack.c.h.b16 %v141
    %v374 = vunpack.c.l.b16 %v142
    %v375 = vunpack.c.h.b16 %v142
    %v376 = vunpack.c.l.b16 %v143
    %v377 = vunpack.c.h.b16 %v143
    %v378 = vunpack.c.l.b16 %v144
    %v379 = vunpack.c.h.b16 %v144
    %v380 = vunpack.c.l.b16 %v145
    %v381 = vunpack.c.h.b16 %v145
    %v382 = vunpack.c.l.b16 %v146
    %v383 = vunpack.c.h.b16 %v146
    %v384 = vunpack.c.l.b16 %v147
    %v385 = vunpack.c.h.b16 %v147
    %v386 = vunpack.c.l.b16 %v148
    %v387 = vunpack.c.h.b16 %v148
    %v388 = vunpack.c.l.b16 %v149
    %v389 = vunpack.c.h.b16 %v149
    %v390 = vunpack.c.l.b16 %v150
    %v391 = vunpack.c.h.b16 %v150
    %v392 = vunpack.c.l.b16 %v151
    %v393 = vunpack.c.h.b16 %v151
    %v394 = vunpack.c.l.b16 %v152
    %v395 = vunpack.c.h.b16 %v152
    %v396 = vunpack.c.l.b16 %v153
    %v397 = vunpack.c.h.b16 %v153
    %v398 = vunpack.c.l.b16 %v154
    %v399 = vunpack.c.h.b16 %v154
    %v400 = vunpack.c.l.b16 %v155
    %v401 = vunpack.c.h.b16 %v155
    %v402 = vunpack.c.l.b16 %v156
    %v403 = vunpack.c.h.b16 %v156
    %v404 = vunpack.c.l.b16 %v157
    %v405 = vunpack.c.h.b16 %v157
    %v406 = vunpack.c.l.b16 %v158
    %v407 = vunpack.c.h.b16 %v158
    %v408 = vunpack.c.l.b16 %v159
    %v409 = vunpack.c.h.b16 %v159
    %v410 = vunpack.c.l.b16 %v160
    %v411 = vunpack.c.h.b16 %v160
    %v412 = vunpack.c.l.b16 %v161
    %v413 = vunpack.c.h.b16 %v161
    %v414 = vunpack.c.l.b16 %v162
    %v415 = vunpack.c.h.b16 %v162
    %v416 = vunpack.c.l.b16 %v163
    %v417 = vunpack.c.h.b16 %v163
    %v418 = vunpack.c.l.b16 %v164
    %v419 = vunpack.c.h.b16 %v164
    %v420 = vunpack.c.l.b16 %v165
    %v421 = vunpack.c.h.b16 %v165
    %v422 = vunpack.c.l.b16 %v166
    %v423 = vunpack.c.h.b16 %v166
    %v424 = vunpack.c.l.b16 %v167
    %v425 = vunpack.c.h.b16 %v167
    %v426 = vunpack.c.l.b16 %v168
    %v427 = vunpack.c.h.b16 %v168
    %v428 = vunpack.c.l.b16 %v169
    %v429 = vunpack.c.h.b16 %v169
    %v430 = vunpack.c.l.b16 %v170
    %v431 = vunpack.c.h.b16 %v170
    %v432 = vunpack.c.l.b16 %v171
    %v433 = vunpack.c.h.b16 %v171
    %v434 = vunpack.c.l.b16 %v172
    %v435 = vunpack.c.h.b16 %v172
    %v436 = vunpack.c.l.b16 %v173
    %v437 = vunpack.c.h.b16 %v173
    %v438 = vunpack.c.l.b16 %v174
    %v439 = vunpack.c.h.b16 %v174
    %v440 = vunpack.c.l.b16 %v175
    %v441 = vunpack.c.h.b16 %v175
    %v442 = vunpack.c.l.b16 %v176
    %v443 = vunpack.c.h.b16 %v176
    %v444 = vunpack.c.l.b16 %v177
    %v445 = vunpack.c.h.b16 %v177
    %v446 = vunpack.c.l.b16 %v178
    %v447 = vunpack.c.h.b16 %v178
    %v448 = vunpack.c.l.b16 %v179
    %v449 = vunpack.c.h.b16 %v179
    %v450 = vunpack.c.l.b16 %v180
    %v451 = vunpack.c.h.b16 %v180
    %v452 = vunpack.c.l.b16 %v181
    %v453 = vunpack.c.h.b16 %v181
    %v454 = vunpack.c.l.b16 %v182
    %v455 = vunpack.c.h.b16 %v182
    %v456 = vunpack.c.l.b16 %v183
    %v457 = vunpack.c.h.b16 %v183
    %v458 = vunpack.c.l.b16 %v184
    %v459 = vunpack.c.h.b16 %v184
    %v460 = vunpack.c.l.b16 %v185
    %v461 = vunpack.c.h.b16 %v185
    %v462 = vunpack.c.l.b16 %v186
    %v463 = vunpack.c.h.b16 %v186
    %v464 = vunpack.c.l.b16 %v187
    %v465 = vunpack.c.h.b16 %v187
    %v466 = vunpack.c.l.b16 %v188
    %v467 = vunpack.c.h.b16 %v188
    %v468 = vunpack.c.l.b16 %v189
    %v469 = vunpack.c.h.b16 %v189
    %v470 = vunpack.c.l.b16 %v190
    %v471 = vunpack.c.h.b16 %v190
    %v472 = vunpack.c.l.b16 %v191
    %v473 = vunpack.c.h.b16 %v191
    %v474 = vunpack.c.l.b16 %v192
    %v475 = vunpack.c.h.b16 %v192
    %v476 = vunpack.c.l.b16 %v193
    %v477 = vunpack.c.h.b16 %v193
    %v478 = vunpack.c.l.b16 %v194
    %v479 = vunpack.c.h.b16 %v194
    %v480 = vunpack.c.l.b16 %v195
    %v481 = vunpack.c.h.b16 %v195
    %v482 = vunpack.c.l.b16 %v196
    %v483 = vunpack.c.h.b16 %v196
    %v484 = vunpack.c.l.b16 %v197
    %v485 = vunpack.c.h.b16 %v197
    %v486 = vunpack.c.l.b16 %v198
    %v487 = vunpack.c.h.b16 %v198
    %v488 = vunpack.c.l.b16 %v199
    %v489 = vunpack.c.h.b16 %v199
    %v490 = vunpack.c.l.b16 %v200
    %v491 = vunpack.c.h.b16 %v200
    %v492 = vunpack.c.l.b16 %v201
    %v493 = vunpack.c.h.b16 %v201
    %v494 = vunpack.c.l.b16 %v202
    %v495 = vunpack.c.h.b16 %v202
    %v496 = vunpack.c.l.b16 %v203
    %v497 = vunpack.c.h.b16 %v203
    %v498 = vunpack.c.l.b16 %v204
    %v499 = vunpack.c.h.b16 %v204
    %v500 = vunpack.c.l.b16 %v205
    %v501 = vunpack.c.h.b16 %v205
    %v502 = vunpack.c.l.b16 %v206
    %v503 = vunpack.c.h.b16 %v206
    %v504 = vunpack.c.l.b16 %v207
    %v505 = vunpack.c.h.b16 %v207
    %v506 = vunpack.c.l.b16 %v208
    %v507 = vunpack.c.h.b16 %v208
    %v508 = vunpack.c.l.b16 %v209
    %v509 = vunpack.c.h.b16 %v209
    %v510 = vpack.c.b16 %v320, %v318
    %v511 = vpack.c.b16 %v321, %v319
    %v512 = vpack.c.b16 %v324, %v322
    %v513 = vpack.c.b16 %v325, %v323
    %v514 = vpack.c.b16 %v328, %v326
    %v515 = vpack.c.b16 %v329, %v327
    %v516 = vpack.c.b16 %v332, %v330
    %v517 = vpack.c.b16 %v333, %v331
    %v518 = vpack.c.b16 %v336, %v334
    %v519 = vpack.c.b16 %v337, %v335
    %v520 = vpack.c.b16 %v340, %v338
    %v521 = vpack.c.b16 %v341, %v339
    %v522 = vpack.c.b16 %v344, %v342
    %v523 = vpack.c.b16 %v345, %v343
    %v524 = vpack.c.b16 %v348, %v346
    %v525 = vpack.c.b16 %v349, %v347
    %v526 = vpack.c.b16 %v352, %v350
    %v527 = vpack.c.b16 %v353, %v351
    %v528 = vpack.c.b16 %v356, %v354
    %v529 = vpack.c.b16 %v357, %v355
    %v530 = vpack.c.b16 %v360, %v358
    %v531 = vpack.c.b16 %v361, %v359
    %v532 = vpack.c.b16 %v364, %v362
    %v533 = vpack.c.b16 %v365, %v363
    %v534 = vpack.c.b16 %v368, %v366
    %v535 = vpack.c.b16 %v369, %v367
    %v536 = vpack.c.b16 %v372, %v370
    %v537 = vpack.c.b16 %v373, %v371
    %v538 = vpack.c.b16 %v376, %v374
    %v539 = vpack.c.b16 %v377, %v375
    %v540 = vpack.c.b16 %v380, %v378
    %v541 = vpack.c.b16 %v381, %v379
    %v542 = vpack.c.b16 %v384, %v382
    %v543 = vpack.c.b16 %v385, %v383
    %v544 = vpack.c.b16 %v388, %v386
    %v545 = vpack.c.b16 %v389, %v387
    %v546 = vpack.c.b16 %v392, %v390
    %v547 = vpack.c.b16 %v393, %v391
    %v548 = vpack.c.b16 %v396, %v394
    %v549 = vpack.c.b16 %v397, %v395
    %v550 = vpack.c.b16 %v400, %v398
    %v551 = vpack.c.b16 %v401, %v399
    %v552 = vpack.c.b16 %v404, %v402
    %v553 = vpack.c.b16 %v405, %v403
    %v554 = vpack.c.b16 %v408, %v406
    %v555 = vpack.c.b16 %v409, %v407
    %v556 = vpack.c.b16 %v412, %v410
    %v557 = vpack.c.b16 %v413, %v411
    %v558 = vpack.c.b16 %v416, %v414
    %v559 = vpack.c.b16 %v417, %v415
    %v560 = vpack.c.b16 %v420, %v418
    %v561 = vpack.c.b16 %v421, %v419
    %v562 = vpack.c.b16 %v424, %v422
    %v563 = vpack.c.b16 %v425, %v423
    %v564 = vpack.c.b16 %v428, %v426
    %v565 = vpack.c.b16 %v429, %v427
    %v566 = vpack.c.b16 %v432, %v430
    %v567 = vpack.c.b16 %v433, %v431
    %v568 = vpack.c.b16 %v436, %v434
    %v569 = vpack.c.b16 %v437, %v435
    %v570 = vpack.c.b16 %v440, %v438
    %v571 = vpack.c.b16 %v441, %v439
    %v572 = vpack.c.b16 %v444, %v442
    %v573 = vpack.c.b16 %v445, %v443
    %v574 = vpack.c.b16 %v448, %v446
    %v575 = vpack.c.b16 %v449, %v447
    %v576 = vpack.c.b16 %v452, %v450
    %v577 = vpack.c.b16 %v453, %v451
    %v578 = vpack.c.b16 %v456, %v454
    %v579 = vpack.c.b16 %v457, %v455
    %v580 = vpack.c.b16 %v460, %v458
    %v581 = vpack.c.b16 %v461, %v459
    %v582 = vpack.c.b16 %v464, %v462
    %v583 = vpack.c.b16 %v465, %v463
    %v584 = vpack.c.b16 %v468, %v466
    %v585 = vpack.c.b16 %v469, %v467
    %v586 = vpack.c.b16 %v472, %v470
    %v587 = vpack.c.b16 %v473, %v471
    %v588 = vpack.c.b16 %v476, %v474
    %v589 = vpack.c.b16 %v477, %v475
    %v590 = vpack.c.b16 %v480, %v478
    %v591 = vpack.c.b16 %v481, %v479
    %v592 = vpack.c.b16 %v484, %v482
    %v593 = vpack.c.b16 %v485, %v483
    %v594 = vpack.c.b16 %v488, %v486
    %v595 = vpack.c.b16 %v489, %v487
    %v596 = vpack.c.b16 %v492, %v490
    %v597 = vpack.c.b16 %v493, %v491
    %v598 = vpack.c.b16 %v496, %v494
    %v599 = vpack.c.b16 %v497, %v495
    %v600 = vpack.c.b16 %v500, %v498
    %v601 = vpack.c.b16 %v501, %v499
    %v602 = vpack.c.b16 %v504, %v502
    %v603 = vpack.c.b16 %v505, %v503
    %v604 = vpack.c.b16 %v508, %v506
    %v605 = vpack.c.b16 %v509, %v507
    %702 = vmatprep.subr.bf16.mxu0 %v525
    %703 = vmatpush1.bf16.msra.mxu0 %v524
    %704 = vmatprep.subr.bf16.mxu0 %v523
    %705 = vmatpush1.bf16.msra.mxu0 %v522
    %706 = vmatprep.subr.bf16.mxu0 %v521
    %707 = vmatpush1.bf16.msra.mxu0 %v520
    %708 = vmatprep.subr.bf16.mxu0 %v519
    %709 = vmatpush1.bf16.msra.mxu0 %v518
    %710 = vmatprep.subr.bf16.mxu0 %v517
    %711 = vmatpush1.bf16.msra.mxu0 %v516
    %712 = vmatprep.subr.bf16.mxu0 %v515
    %713 = vmatpush1.bf16.msra.mxu0 %v514
    %714 = vmatprep.subr.bf16.mxu0 %v513
    %715 = vmatpush1.bf16.msra.mxu0 %v512
    %716 = vmatprep.subr.bf16.mxu0 %v511
    %717 = vmatpush1.bf16.msra.mxu0 %v510
    %718 = vmatprep.subr.bf16.mxu0 %v541
    %719 = vmatpush2.bf16.msra.mxu0 %v540
    %720 = vmatprep.subr.bf16.mxu0 %v539
    %721 = vmatpush2.bf16.msra.mxu0 %v538
    %722 = vmatprep.subr.bf16.mxu0 %v537
    %723 = vmatpush2.bf16.msra.mxu0 %v536
    %724 = vmatprep.subr.bf16.mxu0 %v535
    %725 = vmatpush2.bf16.msra.mxu0 %v534
    %726 = vmatprep.subr.bf16.mxu0 %v533
    %727 = vmatpush2.bf16.msra.mxu0 %v532
    %728 = vmatprep.subr.bf16.mxu0 %v531
    %729 = vmatpush2.bf16.msra.mxu0 %v530
    %730 = vmatprep.subr.bf16.mxu0 %v529
    %731 = vmatpush2.bf16.msra.mxu0 %v528
    %732 = vmatprep.subr.bf16.mxu0 %v527
    %733 = vmatpush2.bf16.msra.mxu0 %v526
    %734 = vmatprep.mubr.bf16.mxu0 %v109
    %735 = vmatmul.mubr.bf16.gmra.mxu0 %v108
    %v736 = vpop.f32.mrf.mxu0
    %v737 = vadd.f32 %v215, %v736
    %v738 = vpop.f32.mrf.mxu0
    %v739 = vadd.f32 %v219, %v738
    %v740 = vpop.f32.mrf.mxu0
    %v741 = vpop.f32.mrf.mxu0
    %742 = vdwg.mxu0
    %743 = vmatprep.subr.bf16.mxu0 %v557
    %744 = vmatpush1.bf16.msra.mxu0 %v556
    %745 = vmatprep.subr.bf16.mxu0 %v555
    %746 = vmatpush1.bf16.msra.mxu0 %v554
    %747 = vmatprep.subr.bf16.mxu0 %v553
    %748 = vmatpush1.bf16.msra.mxu0 %v552
    %749 = vmatprep.subr.bf16.mxu0 %v551
    %750 = vmatpush1.bf16.msra.mxu0 %v550
    %751 = vmatprep.subr.bf16.mxu0 %v549
    %752 = vmatpush1.bf16.msra.mxu0 %v548
    %753 = vmatprep.subr.bf16.mxu0 %v547
    %754 = vmatpush1.bf16.msra.mxu0 %v546
    %755 = vmatprep.subr.bf16.mxu0 %v545
    %756 = vmatpush1.bf16.msra.mxu0 %v544
    %757 = vmatprep.subr.bf16.mxu0 %v543
    %758 = vmatpush1.bf16.msra.mxu0 %v542
    %759 = vmatprep.subr.bf16.mxu0 %v573
    %760 = vmatpush2.bf16.msra.mxu0 %v572
    %761 = vmatprep.subr.bf16.mxu0 %v571
    %762 = vmatpush2.bf16.msra.mxu0 %v570
    %763 = vmatprep.subr.bf16.mxu0 %v569
    %764 = vmatpush2.bf16.msra.mxu0 %v568
    %765 = vmatprep.subr.bf16.mxu0 %v567
    %766 = vmatpush2.bf16.msra.mxu0 %v566
    %767 = vmatprep.subr.bf16.mxu0 %v565
    %768 = vmatpush2.bf16.msra.mxu0 %v564
    %769 = vmatprep.subr.bf16.mxu0 %v563
    %770 = vmatpush2.bf16.msra.mxu0 %v562
    %771 = vmatprep.subr.bf16.mxu0 %v561
    %772 = vmatpush2.bf16.msra.mxu0 %v560
    %773 = vmatprep.subr.bf16.mxu0 %v559
    %774 = vmatpush2.bf16.msra.mxu0 %v558
    %775 = vmatprep.mubr.bf16.mxu0 %v111
    %776 = vmatmul.mubr.bf16.gmra.mxu0 %v110
    %v777 = vpop.f32.mrf.mxu0
    %v778 = vadd.f32 %v737, %v777
    %v779 = vpop.f32.mrf.mxu0
    %v780 = vadd.f32 %v739, %v779
    %v781 = vpop.f32.mrf.mxu0
    %v782 = vpop.f32.mrf.mxu0
    %783 = vdwg.mxu0
    %784 = vmatprep.subr.bf16.mxu0 %v589
    %785 = vmatpush1.bf16.msra.mxu0 %v588
    %786 = vmatprep.subr.bf16.mxu0 %v587
    %787 = vmatpush1.bf16.msra.mxu0 %v586
    %788 = vmatprep.subr.bf16.mxu0 %v585
    %789 = vmatpush1.bf16.msra.mxu0 %v584
    %790 = vmatprep.subr.bf16.mxu0 %v583
    %791 = vmatpush1.bf16.msra.mxu0 %v582
    %792 = vmatprep.subr.bf16.mxu0 %v581
    %793 = vmatpush1.bf16.msra.mxu0 %v580
    %794 = vmatprep.subr.bf16.mxu0 %v579
    %795 = vmatpush1.bf16.msra.mxu0 %v578
    %796 = vmatprep.subr.bf16.mxu0 %v577
    %797 = vmatpush1.bf16.msra.mxu0 %v576
    %798 = vmatprep.subr.bf16.mxu0 %v575
    %799 = vmatpush1.bf16.msra.mxu0 %v574
    %800 = vmatprep.subr.bf16.mxu0 %v605
    %801 = vmatpush2.bf16.msra.mxu0 %v604
    %802 = vmatprep.subr.bf16.mxu0 %v603
    %803 = vmatpush2.bf16.msra.mxu0 %v602
    %804 = vmatprep.subr.bf16.mxu0 %v601
    %805 = vmatpush2.bf16.msra.mxu0 %v600
    %806 = vmatprep.subr.bf16.mxu0 %v599
    %807 = vmatpush2.bf16.msra.mxu0 %v598
    %808 = vmatprep.subr.bf16.mxu0 %v597
    %809 = vmatpush2.bf16.msra.mxu0 %v596
    %810 = vmatprep.subr.bf16.mxu0 %v595
    %811 = vmatpush2.bf16.msra.mxu0 %v594
    %812 = vmatprep.subr.bf16.mxu0 %v593
    %813 = vmatpush2.bf16.msra.mxu0 %v592
    %814 = vmatprep.subr.bf16.mxu0 %v591
    %815 = vmatpush2.bf16.msra.mxu0 %v590
    %816 = vmatprep.mubr.bf16.mxu0 %v113
    %817 = vmatmul.mubr.bf16.gmra.mxu0 %v112
    %v818 = vpop.f32.mrf.mxu0
    %v819 = vadd.f32 %v778, %v818
    %v820 = vpop.f32.mrf.mxu0
    %v821 = vadd.f32 %v780, %v820
    %v822 = vpop.f32.mrf.mxu0
    %v823 = vpop.f32.mrf.mxu0
    %824 = vdwg.mxu0
    %v825 = vpack.c.bf16 %v819, %v819
    %v826 = vpack.c.bf16 %v821, %v821
    %v827 = vld [vmem:[#allocation6] sm:$0xff]
    %v828 = vld [vmem:[#allocation6 + $0x8] sm:$0xff]
    %v829 = vld [vmem:[#allocation6 + $0x10] sm:$0xff]
    %v830 = vld [vmem:[#allocation6 + $0x18] sm:$0xff]
    %v831 = vld [vmem:[#allocation6 + $0x20] sm:$0xff]
    %v832 = vld [vmem:[#allocation6 + $0x28] sm:$0xff]
    %v833 = vld [vmem:[#allocation6 + $0x30] sm:$0xff]
    %v834 = vld [vmem:[#allocation6 + $0x38] sm:$0xff]
    %v835 = vld [vmem:[#allocation6 + $0x40] sm:$0xff]
    %v836 = vld [vmem:[#allocation6 + $0x48] sm:$0xff]
    %v837 = vld [vmem:[#allocation6 + $0x50] sm:$0xff]
    %v838 = vld [vmem:[#allocation6 + $0x58] sm:$0xff]
    %v839 = vld [vmem:[#allocation6 + $0x60] sm:$0xff]
    %v840 = vld [vmem:[#allocation6 + $0x68] sm:$0xff]
    %v841 = vld [vmem:[#allocation6 + $0x70] sm:$0xff]
    %v842 = vld [vmem:[#allocation6 + $0x78] sm:$0xff]
    %v843 = vld [vmem:[#allocation6 + $0x80] sm:$0xff]
    %v844 = vld [vmem:[#allocation6 + $0x88] sm:$0xff]
    %v845 = vld [vmem:[#allocation6 + $0x90] sm:$0xff]
    %v846 = vld [vmem:[#allocation6 + $0x98] sm:$0xff]
    %v847 = vld [vmem:[#allocation6 + $0xa0] sm:$0xff]
    %v848 = vld [vmem:[#allocation6 + $0xa8] sm:$0xff]
    %v849 = vld [vmem:[#allocation6 + $0xb0] sm:$0xff]
    %v850 = vld [vmem:[#allocation6 + $0xb8] sm:$0xff]
    %v851 = vld [vmem:[#allocation6 + $0xc0] sm:$0xff]
    %v852 = vld [vmem:[#allocation6 + $0xc8] sm:$0xff]
    %v853 = vld [vmem:[#allocation6 + $0xd0] sm:$0xff]
    %v854 = vld [vmem:[#allocation6 + $0xd8] sm:$0xff]
    %v855 = vld [vmem:[#allocation6 + $0xe0] sm:$0xff]
    %v856 = vld [vmem:[#allocation6 + $0xe8] sm:$0xff]
    %v857 = vld [vmem:[#allocation6 + $0xf0] sm:$0xff]
    %v858 = vld [vmem:[#allocation6 + $0xf8] sm:$0xff]
    %v859 = vld [vmem:[#allocation7] sm:$0x3]
    %v861 = vlaneseq
    %v862 = vshrl.u32 %v861, 7
    %v863 = vsub.s32 0, %v862
    %v864 = vrot.slane %v859, %v863
    %v865 = vlaneseq
    %v866 = vshrl.u32 %v865, 7
    %v867 = vsub.s32 1, %v866
    %v868 = vrot.slane %v859, %v867
    %v903 = vunpack.c.l.b16 %v827
    %v904 = vunpack.c.h.b16 %v827
    %v905 = vunpack.c.l.b16 %v828
    %v906 = vunpack.c.h.b16 %v828
    %v907 = vunpack.c.l.b16 %v829
    %v908 = vunpack.c.h.b16 %v829
    %v909 = vunpack.c.l.b16 %v830
    %v910 = vunpack.c.h.b16 %v830
    %v911 = vunpack.c.l.b16 %v831
    %v912 = vunpack.c.h.b16 %v831
    %v913 = vunpack.c.l.b16 %v832
    %v914 = vunpack.c.h.b16 %v832
    %v915 = vunpack.c.l.b16 %v833
    %v916 = vunpack.c.h.b16 %v833
    %v917 = vunpack.c.l.b16 %v834
    %v918 = vunpack.c.h.b16 %v834
    %v919 = vunpack.c.l.b16 %v835
    %v920 = vunpack.c.h.b16 %v835
    %v921 = vunpack.c.l.b16 %v836
    %v922 = vunpack.c.h.b16 %v836
    %v923 = vunpack.c.l.b16 %v837
    %v924 = vunpack.c.h.b16 %v837
    %v925 = vunpack.c.l.b16 %v838
    %v926 = vunpack.c.h.b16 %v838
    %v927 = vunpack.c.l.b16 %v839
    %v928 = vunpack.c.h.b16 %v839
    %v929 = vunpack.c.l.b16 %v840
    %v930 = vunpack.c.h.b16 %v840
    %v931 = vunpack.c.l.b16 %v841
    %v932 = vunpack.c.h.b16 %v841
    %v933 = vunpack.c.l.b16 %v842
    %v934 = vunpack.c.h.b16 %v842
    %v935 = vunpack.c.l.b16 %v843
    %v936 = vunpack.c.h.b16 %v843
    %v937 = vunpack.c.l.b16 %v844
    %v938 = vunpack.c.h.b16 %v844
    %v939 = vunpack.c.l.b16 %v845
    %v940 = vunpack.c.h.b16 %v845
    %v941 = vunpack.c.l.b16 %v846
    %v942 = vunpack.c.h.b16 %v846
    %v943 = vunpack.c.l.b16 %v847
    %v944 = vunpack.c.h.b16 %v847
    %v945 = vunpack.c.l.b16 %v848
    %v946 = vunpack.c.h.b16 %v848
    %v947 = vunpack.c.l.b16 %v849
    %v948 = vunpack.c.h.b16 %v849
    %v949 = vunpack.c.l.b16 %v850
    %v950 = vunpack.c.h.b16 %v850
    %v951 = vunpack.c.l.b16 %v851
    %v952 = vunpack.c.h.b16 %v851
    %v953 = vunpack.c.l.b16 %v852
    %v954 = vunpack.c.h.b16 %v852
    %v955 = vunpack.c.l.b16 %v853
    %v956 = vunpack.c.h.b16 %v853
    %v957 = vunpack.c.l.b16 %v854
    %v958 = vunpack.c.h.b16 %v854
    %v959 = vunpack.c.l.b16 %v855
    %v960 = vunpack.c.h.b16 %v855
    %v961 = vunpack.c.l.b16 %v856
    %v962 = vunpack.c.h.b16 %v856
    %v963 = vunpack.c.l.b16 %v857
    %v964 = vunpack.c.h.b16 %v857
    %v965 = vunpack.c.l.b16 %v858
    %v966 = vunpack.c.h.b16 %v858
    %v967 = vpack.c.b16 %v905, %v903
    %v968 = vpack.c.b16 %v906, %v904
    %v969 = vpack.c.b16 %v909, %v907
    %v970 = vpack.c.b16 %v910, %v908
    %v971 = vpack.c.b16 %v913, %v911
    %v972 = vpack.c.b16 %v914, %v912
    %v973 = vpack.c.b16 %v917, %v915
    %v974 = vpack.c.b16 %v918, %v916
    %v975 = vpack.c.b16 %v921, %v919
    %v976 = vpack.c.b16 %v922, %v920
    %v977 = vpack.c.b16 %v925, %v923
    %v978 = vpack.c.b16 %v926, %v924
    %v979 = vpack.c.b16 %v929, %v927
    %v980 = vpack.c.b16 %v930, %v928
    %v981 = vpack.c.b16 %v933, %v931
    %v982 = vpack.c.b16 %v934, %v932
    %v983 = vpack.c.b16 %v937, %v935
    %v984 = vpack.c.b16 %v938, %v936
    %v985 = vpack.c.b16 %v941, %v939
    %v986 = vpack.c.b16 %v942, %v940
    %v987 = vpack.c.b16 %v945, %v943
    %v988 = vpack.c.b16 %v946, %v944
    %v989 = vpack.c.b16 %v949, %v947
    %v990 = vpack.c.b16 %v950, %v948
    %v991 = vpack.c.b16 %v953, %v951
    %v992 = vpack.c.b16 %v954, %v952
    %v993 = vpack.c.b16 %v957, %v955
    %v994 = vpack.c.b16 %v958, %v956
    %v995 = vpack.c.b16 %v961, %v959
    %v996 = vpack.c.b16 %v962, %v960
    %v997 = vpack.c.b16 %v965, %v963
    %v998 = vpack.c.b16 %v966, %v964
    %1031 = vmatprep.subr.bf16.mxu0 %v982
    %1032 = vmatpush1.bf16.msra.mxu0 %v981
    %1033 = vmatprep.subr.bf16.mxu0 %v980
    %1034 = vmatpush1.bf16.msra.mxu0 %v979
    %1035 = vmatprep.subr.bf16.mxu0 %v978
    %1036 = vmatpush1.bf16.msra.mxu0 %v977
    %1037 = vmatprep.subr.bf16.mxu0 %v976
    %1038 = vmatpush1.bf16.msra.mxu0 %v975
    %1039 = vmatprep.subr.bf16.mxu0 %v974
    %1040 = vmatpush1.bf16.msra.mxu0 %v973
    %1041 = vmatprep.subr.bf16.mxu0 %v972
    %1042 = vmatpush1.bf16.msra.mxu0 %v971
    %1043 = vmatprep.subr.bf16.mxu0 %v970
    %1044 = vmatpush1.bf16.msra.mxu0 %v969
    %1045 = vmatprep.subr.bf16.mxu0 %v968
    %1046 = vmatpush1.bf16.msra.mxu0 %v967
    %1047 = vmatprep.subr.bf16.mxu0 %v998
    %1048 = vmatpush2.bf16.msra.mxu0 %v997
    %1049 = vmatprep.subr.bf16.mxu0 %v996
    %1050 = vmatpush2.bf16.msra.mxu0 %v995
    %1051 = vmatprep.subr.bf16.mxu0 %v994
    %1052 = vmatpush2.bf16.msra.mxu0 %v993
    %1053 = vmatprep.subr.bf16.mxu0 %v992
    %1054 = vmatpush2.bf16.msra.mxu0 %v991
    %1055 = vmatprep.subr.bf16.mxu0 %v990
    %1056 = vmatpush2.bf16.msra.mxu0 %v989
    %1057 = vmatprep.subr.bf16.mxu0 %v988
    %1058 = vmatpush2.bf16.msra.mxu0 %v987
    %1059 = vmatprep.subr.bf16.mxu0 %v986
    %1060 = vmatpush2.bf16.msra.mxu0 %v985
    %1061 = vmatprep.subr.bf16.mxu0 %v984
    %1062 = vmatpush2.bf16.msra.mxu0 %v983
    %1063 = vmatprep.mubr.bf16.mxu0 %v826
    %1064 = vmatmul.mubr.bf16.gmra.mxu0 %v825
    %v1065 = vpop.f32.mrf.mxu0
    %v1066 = vadd.f32 %v864, %v1065
    %v1067 = vpop.f32.mrf.mxu0
    %v1068 = vadd.f32 %v868, %v1067
    %v1069 = vpop.f32.mrf.mxu0
    %v1070 = vpop.f32.mrf.mxu0
    %1071 = vdwg.mxu0
    %v1072 = vmax.f32 %v1066, 0.0
    %v1073 = vmax.f32 %v1068, 0.0
    %v1074 = vld [vmem:[#allocation2 + $0x8] sm:$0xff]
    %v1075 = vld [vmem:[#allocation2 + $0x28] sm:$0xff]
    %v1076 = vld [vmem:[#allocation2 + $0x48] sm:$0xff]
    %v1077 = vld [vmem:[#allocation2 + $0x68] sm:$0xff]
    %v1078 = vld [vmem:[#allocation2 + $0x88] sm:$0xff]
    %v1079 = vld [vmem:[#allocation2 + $0xa8] sm:$0xff]
    %v1080 = vld [vmem:[#allocation2 + $0xc8] sm:$0xff]
    %v1081 = vld [vmem:[#allocation2 + $0xe8] sm:$0xff]
    %v1082 = vld [vmem:[#allocation2 + $0x108] sm:$0xff]
    %v1083 = vld [vmem:[#allocation2 + $0x128] sm:$0xff]
    %v1084 = vld [vmem:[#allocation2 + $0x148] sm:$0xff]
    %v1085 = vld [vmem:[#allocation2 + $0x168] sm:$0xff]
    %v1086 = vld [vmem:[#allocation2 + $0x188] sm:$0xff]
    %v1087 = vld [vmem:[#allocation2 + $0x1a8] sm:$0xff]
    %v1088 = vld [vmem:[#allocation2 + $0x1c8] sm:$0xff]
    %v1089 = vld [vmem:[#allocation2 + $0x1e8] sm:$0xff]
    %v1090 = vld [vmem:[#allocation2 + $0x208] sm:$0xff]
    %v1091 = vld [vmem:[#allocation2 + $0x228] sm:$0xff]
    %v1092 = vld [vmem:[#allocation2 + $0x248] sm:$0xff]
    %v1093 = vld [vmem:[#allocation2 + $0x268] sm:$0xff]
    %v1094 = vld [vmem:[#allocation2 + $0x288] sm:$0xff]
    %v1095 = vld [vmem:[#allocation2 + $0x2a8] sm:$0xff]
    %v1096 = vld [vmem:[#allocation2 + $0x2c8] sm:$0xff]
    %v1097 = vld [vmem:[#allocation2 + $0x2e8] sm:$0xff]
    %v1098 = vld [vmem:[#allocation2 + $0x308] sm:$0xff]
    %v1099 = vld [vmem:[#allocation2 + $0x328] sm:$0xff]
    %v1100 = vld [vmem:[#allocation2 + $0x348] sm:$0xff]
    %v1101 = vld [vmem:[#allocation2 + $0x368] sm:$0xff]
    %v1102 = vld [vmem:[#allocation2 + $0x388] sm:$0xff]
    %v1103 = vld [vmem:[#allocation2 + $0x3a8] sm:$0xff]
    %v1104 = vld [vmem:[#allocation2 + $0x3c8] sm:$0xff]
    %v1105 = vld [vmem:[#allocation2 + $0x3e8] sm:$0xff]
    %v1106 = vld [vmem:[#allocation2 + $0x408] sm:$0xff]
    %v1107 = vld [vmem:[#allocation2 + $0x428] sm:$0xff]
    %v1108 = vld [vmem:[#allocation2 + $0x448] sm:$0xff]
    %v1109 = vld [vmem:[#allocation2 + $0x468] sm:$0xff]
    %v1110 = vld [vmem:[#allocation2 + $0x488] sm:$0xff]
    %v1111 = vld [vmem:[#allocation2 + $0x4a8] sm:$0xff]
    %v1112 = vld [vmem:[#allocation2 + $0x4c8] sm:$0xff]
    %v1113 = vld [vmem:[#allocation2 + $0x4e8] sm:$0xff]
    %v1114 = vld [vmem:[#allocation2 + $0x508] sm:$0xff]
    %v1115 = vld [vmem:[#allocation2 + $0x528] sm:$0xff]
    %v1116 = vld [vmem:[#allocation2 + $0x548] sm:$0xff]
    %v1117 = vld [vmem:[#allocation2 + $0x568] sm:$0xff]
    %v1118 = vld [vmem:[#allocation2 + $0x588] sm:$0xff]
    %v1119 = vld [vmem:[#allocation2 + $0x5a8] sm:$0xff]
    %v1120 = vld [vmem:[#allocation2 + $0x5c8] sm:$0xff]
    %v1121 = vld [vmem:[#allocation2 + $0x5e8] sm:$0xff]
    %v1122 = vld [vmem:[#allocation2 + $0x608] sm:$0xff]
    %v1123 = vld [vmem:[#allocation2 + $0x628] sm:$0xff]
    %v1124 = vld [vmem:[#allocation2 + $0x648] sm:$0xff]
    %v1125 = vld [vmem:[#allocation2 + $0x668] sm:$0xff]
    %v1126 = vld [vmem:[#allocation2 + $0x688] sm:$0xff]
    %v1127 = vld [vmem:[#allocation2 + $0x6a8] sm:$0xff]
    %v1128 = vld [vmem:[#allocation2 + $0x6c8] sm:$0xff]
    %v1129 = vld [vmem:[#allocation2 + $0x6e8] sm:$0xff]
    %v1130 = vld [vmem:[#allocation2 + $0x708] sm:$0xff]
    %v1131 = vld [vmem:[#allocation2 + $0x728] sm:$0xff]
    %v1132 = vld [vmem:[#allocation2 + $0x748] sm:$0xff]
    %v1133 = vld [vmem:[#allocation2 + $0x768] sm:$0xff]
    %v1134 = vld [vmem:[#allocation2 + $0x788] sm:$0xff]
    %v1135 = vld [vmem:[#allocation2 + $0x7a8] sm:$0xff]
    %v1136 = vld [vmem:[#allocation2 + $0x7c8] sm:$0xff]
    %v1137 = vld [vmem:[#allocation2 + $0x7e8] sm:$0xff]
    %v1138 = vld [vmem:[#allocation2 + $0x808] sm:$0xff]
    %v1139 = vld [vmem:[#allocation2 + $0x828] sm:$0xff]
    %v1140 = vld [vmem:[#allocation2 + $0x848] sm:$0xff]
    %v1141 = vld [vmem:[#allocation2 + $0x868] sm:$0xff]
    %v1142 = vld [vmem:[#allocation2 + $0x888] sm:$0xff]
    %v1143 = vld [vmem:[#allocation2 + $0x8a8] sm:$0xff]
    %v1144 = vld [vmem:[#allocation2 + $0x8c8] sm:$0xff]
    %v1145 = vld [vmem:[#allocation2 + $0x8e8] sm:$0xff]
    %v1146 = vld [vmem:[#allocation2 + $0x908] sm:$0xff]
    %v1147 = vld [vmem:[#allocation2 + $0x928] sm:$0xff]
    %v1148 = vld [vmem:[#allocation2 + $0x948] sm:$0xff]
    %v1149 = vld [vmem:[#allocation2 + $0x968] sm:$0xff]
    %v1150 = vld [vmem:[#allocation2 + $0x988] sm:$0xff]
    %v1151 = vld [vmem:[#allocation2 + $0x9a8] sm:$0xff]
    %v1152 = vld [vmem:[#allocation2 + $0x9c8] sm:$0xff]
    %v1153 = vld [vmem:[#allocation2 + $0x9e8] sm:$0xff]
    %v1154 = vld [vmem:[#allocation2 + $0xa08] sm:$0xff]
    %v1155 = vld [vmem:[#allocation2 + $0xa28] sm:$0xff]
    %v1156 = vld [vmem:[#allocation2 + $0xa48] sm:$0xff]
    %v1157 = vld [vmem:[#allocation2 + $0xa68] sm:$0xff]
    %v1158 = vld [vmem:[#allocation2 + $0xa88] sm:$0xff]
    %v1159 = vld [vmem:[#allocation2 + $0xaa8] sm:$0xff]
    %v1160 = vld [vmem:[#allocation2 + $0xac8] sm:$0xff]
    %v1161 = vld [vmem:[#allocation2 + $0xae8] sm:$0xff]
    %v1162 = vld [vmem:[#allocation2 + $0xb08] sm:$0xff]
    %v1163 = vld [vmem:[#allocation2 + $0xb28] sm:$0xff]
    %v1164 = vld [vmem:[#allocation2 + $0xb48] sm:$0xff]
    %v1165 = vld [vmem:[#allocation2 + $0xb68] sm:$0xff]
    %v1166 = vld [vmem:[#allocation2 + $0xb88] sm:$0xff]
    %v1167 = vld [vmem:[#allocation2 + $0xba8] sm:$0xff]
    %v1168 = vld [vmem:[#allocation2 + $0xbc8] sm:$0xff]
    %v1169 = vld [vmem:[#allocation2 + $0xbe8] sm:$0xff]
    %v1170 = vld [vmem:[#allocation4 + $0x2] sm:$0x3]
    %v1172 = vlaneseq
    %v1173 = vshrl.u32 %v1172, 7
    %v1174 = vsub.s32 0, %v1173
    %v1175 = vrot.slane %v1170, %v1174
    %v1176 = vlaneseq
    %v1177 = vshrl.u32 %v1176, 7
    %v1178 = vsub.s32 1, %v1177
    %v1179 = vrot.slane %v1170, %v1178
    %v1278 = vunpack.c.l.b16 %v1074
    %v1279 = vunpack.c.h.b16 %v1074
    %v1280 = vunpack.c.l.b16 %v1075
    %v1281 = vunpack.c.h.b16 %v1075
    %v1282 = vunpack.c.l.b16 %v1076
    %v1283 = vunpack.c.h.b16 %v1076
    %v1284 = vunpack.c.l.b16 %v1077
    %v1285 = vunpack.c.h.b16 %v1077
    %v1286 = vunpack.c.l.b16 %v1078
    %v1287 = vunpack.c.h.b16 %v1078
    %v1288 = vunpack.c.l.b16 %v1079
    %v1289 = vunpack.c.h.b16 %v1079
    %v1290 = vunpack.c.l.b16 %v1080
    %v1291 = vunpack.c.h.b16 %v1080
    %v1292 = vunpack.c.l.b16 %v1081
    %v1293 = vunpack.c.h.b16 %v1081
    %v1294 = vunpack.c.l.b16 %v1082
    %v1295 = vunpack.c.h.b16 %v1082
    %v1296 = vunpack.c.l.b16 %v1083
    %v1297 = vunpack.c.h.b16 %v1083
    %v1298 = vunpack.c.l.b16 %v1084
    %v1299 = vunpack.c.h.b16 %v1084
    %v1300 = vunpack.c.l.b16 %v1085
    %v1301 = vunpack.c.h.b16 %v1085
    %v1302 = vunpack.c.l.b16 %v1086
    %v1303 = vunpack.c.h.b16 %v1086
    %v1304 = vunpack.c.l.b16 %v1087
    %v1305 = vunpack.c.h.b16 %v1087
    %v1306 = vunpack.c.l.b16 %v1088
    %v1307 = vunpack.c.h.b16 %v1088
    %v1308 = vunpack.c.l.b16 %v1089
    %v1309 = vunpack.c.h.b16 %v1089
    %v1310 = vunpack.c.l.b16 %v1090
    %v1311 = vunpack.c.h.b16 %v1090
    %v1312 = vunpack.c.l.b16 %v1091
    %v1313 = vunpack.c.h.b16 %v1091
    %v1314 = vunpack.c.l.b16 %v1092
    %v1315 = vunpack.c.h.b16 %v1092
    %v1316 = vunpack.c.l.b16 %v1093
    %v1317 = vunpack.c.h.b16 %v1093
    %v1318 = vunpack.c.l.b16 %v1094
    %v1319 = vunpack.c.h.b16 %v1094
    %v1320 = vunpack.c.l.b16 %v1095
    %v1321 = vunpack.c.h.b16 %v1095
    %v1322 = vunpack.c.l.b16 %v1096
    %v1323 = vunpack.c.h.b16 %v1096
    %v1324 = vunpack.c.l.b16 %v1097
    %v1325 = vunpack.c.h.b16 %v1097
    %v1326 = vunpack.c.l.b16 %v1098
    %v1327 = vunpack.c.h.b16 %v1098
    %v1328 = vunpack.c.l.b16 %v1099
    %v1329 = vunpack.c.h.b16 %v1099
    %v1330 = vunpack.c.l.b16 %v1100
    %v1331 = vunpack.c.h.b16 %v1100
    %v1332 = vunpack.c.l.b16 %v1101
    %v1333 = vunpack.c.h.b16 %v1101
    %v1334 = vunpack.c.l.b16 %v1102
    %v1335 = vunpack.c.h.b16 %v1102
    %v1336 = vunpack.c.l.b16 %v1103
    %v1337 = vunpack.c.h.b16 %v1103
    %v1338 = vunpack.c.l.b16 %v1104
    %v1339 = vunpack.c.h.b16 %v1104
    %v1340 = vunpack.c.l.b16 %v1105
    %v1341 = vunpack.c.h.b16 %v1105
    %v1342 = vunpack.c.l.b16 %v1106
    %v1343 = vunpack.c.h.b16 %v1106
    %v1344 = vunpack.c.l.b16 %v1107
    %v1345 = vunpack.c.h.b16 %v1107
    %v1346 = vunpack.c.l.b16 %v1108
    %v1347 = vunpack.c.h.b16 %v1108
    %v1348 = vunpack.c.l.b16 %v1109
    %v1349 = vunpack.c.h.b16 %v1109
    %v1350 = vunpack.c.l.b16 %v1110
    %v1351 = vunpack.c.h.b16 %v1110
    %v1352 = vunpack.c.l.b16 %v1111
    %v1353 = vunpack.c.h.b16 %v1111
    %v1354 = vunpack.c.l.b16 %v1112
    %v1355 = vunpack.c.h.b16 %v1112
    %v1356 = vunpack.c.l.b16 %v1113
    %v1357 = vunpack.c.h.b16 %v1113
    %v1358 = vunpack.c.l.b16 %v1114
    %v1359 = vunpack.c.h.b16 %v1114
    %v1360 = vunpack.c.l.b16 %v1115
    %v1361 = vunpack.c.h.b16 %v1115
    %v1362 = vunpack.c.l.b16 %v1116
    %v1363 = vunpack.c.h.b16 %v1116
    %v1364 = vunpack.c.l.b16 %v1117
    %v1365 = vunpack.c.h.b16 %v1117
    %v1366 = vunpack.c.l.b16 %v1118
    %v1367 = vunpack.c.h.b16 %v1118
    %v1368 = vunpack.c.l.b16 %v1119
    %v1369 = vunpack.c.h.b16 %v1119
    %v1370 = vunpack.c.l.b16 %v1120
    %v1371 = vunpack.c.h.b16 %v1120
    %v1372 = vunpack.c.l.b16 %v1121
    %v1373 = vunpack.c.h.b16 %v1121
    %v1374 = vunpack.c.l.b16 %v1122
    %v1375 = vunpack.c.h.b16 %v1122
    %v1376 = vunpack.c.l.b16 %v1123
    %v1377 = vunpack.c.h.b16 %v1123
    %v1378 = vunpack.c.l.b16 %v1124
    %v1379 = vunpack.c.h.b16 %v1124
    %v1380 = vunpack.c.l.b16 %v1125
    %v1381 = vunpack.c.h.b16 %v1125
    %v1382 = vunpack.c.l.b16 %v1126
    %v1383 = vunpack.c.h.b16 %v1126
    %v1384 = vunpack.c.l.b16 %v1127
    %v1385 = vunpack.c.h.b16 %v1127
    %v1386 = vunpack.c.l.b16 %v1128
    %v1387 = vunpack.c.h.b16 %v1128
    %v1388 = vunpack.c.l.b16 %v1129
    %v1389 = vunpack.c.h.b16 %v1129
    %v1390 = vunpack.c.l.b16 %v1130
    %v1391 = vunpack.c.h.b16 %v1130
    %v1392 = vunpack.c.l.b16 %v1131
    %v1393 = vunpack.c.h.b16 %v1131
    %v1394 = vunpack.c.l.b16 %v1132
    %v1395 = vunpack.c.h.b16 %v1132
    %v1396 = vunpack.c.l.b16 %v1133
    %v1397 = vunpack.c.h.b16 %v1133
    %v1398 = vunpack.c.l.b16 %v1134
    %v1399 = vunpack.c.h.b16 %v1134
    %v1400 = vunpack.c.l.b16 %v1135
    %v1401 = vunpack.c.h.b16 %v1135
    %v1402 = vunpack.c.l.b16 %v1136
    %v1403 = vunpack.c.h.b16 %v1136
    %v1404 = vunpack.c.l.b16 %v1137
    %v1405 = vunpack.c.h.b16 %v1137
    %v1406 = vunpack.c.l.b16 %v1138
    %v1407 = vunpack.c.h.b16 %v1138
    %v1408 = vunpack.c.l.b16 %v1139
    %v1409 = vunpack.c.h.b16 %v1139
    %v1410 = vunpack.c.l.b16 %v1140
    %v1411 = vunpack.c.h.b16 %v1140
    %v1412 = vunpack.c.l.b16 %v1141
    %v1413 = vunpack.c.h.b16 %v1141
    %v1414 = vunpack.c.l.b16 %v1142
    %v1415 = vunpack.c.h.b16 %v1142
    %v1416 = vunpack.c.l.b16 %v1143
    %v1417 = vunpack.c.h.b16 %v1143
    %v1418 = vunpack.c.l.b16 %v1144
    %v1419 = vunpack.c.h.b16 %v1144
    %v1420 = vunpack.c.l.b16 %v1145
    %v1421 = vunpack.c.h.b16 %v1145
    %v1422 = vunpack.c.l.b16 %v1146
    %v1423 = vunpack.c.h.b16 %v1146
    %v1424 = vunpack.c.l.b16 %v1147
    %v1425 = vunpack.c.h.b16 %v1147
    %v1426 = vunpack.c.l.b16 %v1148
    %v1427 = vunpack.c.h.b16 %v1148
    %v1428 = vunpack.c.l.b16 %v1149
    %v1429 = vunpack.c.h.b16 %v1149
    %v1430 = vunpack.c.l.b16 %v1150
    %v1431 = vunpack.c.h.b16 %v1150
    %v1432 = vunpack.c.l.b16 %v1151
    %v1433 = vunpack.c.h.b16 %v1151
    %v1434 = vunpack.c.l.b16 %v1152
    %v1435 = vunpack.c.h.b16 %v1152
    %v1436 = vunpack.c.l.b16 %v1153
    %v1437 = vunpack.c.h.b16 %v1153
    %v1438 = vunpack.c.l.b16 %v1154
    %v1439 = vunpack.c.h.b16 %v1154
    %v1440 = vunpack.c.l.b16 %v1155
    %v1441 = vunpack.c.h.b16 %v1155
    %v1442 = vunpack.c.l.b16 %v1156
    %v1443 = vunpack.c.h.b16 %v1156
    %v1444 = vunpack.c.l.b16 %v1157
    %v1445 = vunpack.c.h.b16 %v1157
    %v1446 = vunpack.c.l.b16 %v1158
    %v1447 = vunpack.c.h.b16 %v1158
    %v1448 = vunpack.c.l.b16 %v1159
    %v1449 = vunpack.c.h.b16 %v1159
    %v1450 = vunpack.c.l.b16 %v1160
    %v1451 = vunpack.c.h.b16 %v1160
    %v1452 = vunpack.c.l.b16 %v1161
    %v1453 = vunpack.c.h.b16 %v1161
    %v1454 = vunpack.c.l.b16 %v1162
    %v1455 = vunpack.c.h.b16 %v1162
    %v1456 = vunpack.c.l.b16 %v1163
    %v1457 = vunpack.c.h.b16 %v1163
    %v1458 = vunpack.c.l.b16 %v1164
    %v1459 = vunpack.c.h.b16 %v1164
    %v1460 = vunpack.c.l.b16 %v1165
    %v1461 = vunpack.c.h.b16 %v1165
    %v1462 = vunpack.c.l.b16 %v1166
    %v1463 = vunpack.c.h.b16 %v1166
    %v1464 = vunpack.c.l.b16 %v1167
    %v1465 = vunpack.c.h.b16 %v1167
    %v1466 = vunpack.c.l.b16 %v1168
    %v1467 = vunpack.c.h.b16 %v1168
    %v1468 = vunpack.c.l.b16 %v1169
    %v1469 = vunpack.c.h.b16 %v1169
    %v1470 = vpack.c.b16 %v1280, %v1278
    %v1471 = vpack.c.b16 %v1281, %v1279
    %v1472 = vpack.c.b16 %v1284, %v1282
    %v1473 = vpack.c.b16 %v1285, %v1283
    %v1474 = vpack.c.b16 %v1288, %v1286
    %v1475 = vpack.c.b16 %v1289, %v1287
    %v1476 = vpack.c.b16 %v1292, %v1290
    %v1477 = vpack.c.b16 %v1293, %v1291
    %v1478 = vpack.c.b16 %v1296, %v1294
    %v1479 = vpack.c.b16 %v1297, %v1295
    %v1480 = vpack.c.b16 %v1300, %v1298
    %v1481 = vpack.c.b16 %v1301, %v1299
    %v1482 = vpack.c.b16 %v1304, %v1302
    %v1483 = vpack.c.b16 %v1305, %v1303
    %v1484 = vpack.c.b16 %v1308, %v1306
    %v1485 = vpack.c.b16 %v1309, %v1307
    %v1486 = vpack.c.b16 %v1312, %v1310
    %v1487 = vpack.c.b16 %v1313, %v1311
    %v1488 = vpack.c.b16 %v1316, %v1314
    %v1489 = vpack.c.b16 %v1317, %v1315
    %v1490 = vpack.c.b16 %v1320, %v1318
    %v1491 = vpack.c.b16 %v1321, %v1319
    %v1492 = vpack.c.b16 %v1324, %v1322
    %v1493 = vpack.c.b16 %v1325, %v1323
    %v1494 = vpack.c.b16 %v1328, %v1326
    %v1495 = vpack.c.b16 %v1329, %v1327
    %v1496 = vpack.c.b16 %v1332, %v1330
    %v1497 = vpack.c.b16 %v1333, %v1331
    %v1498 = vpack.c.b16 %v1336, %v1334
    %v1499 = vpack.c.b16 %v1337, %v1335
    %v1500 = vpack.c.b16 %v1340, %v1338
    %v1501 = vpack.c.b16 %v1341, %v1339
    %v1502 = vpack.c.b16 %v1344, %v1342
    %v1503 = vpack.c.b16 %v1345, %v1343
    %v1504 = vpack.c.b16 %v1348, %v1346
    %v1505 = vpack.c.b16 %v1349, %v1347
    %v1506 = vpack.c.b16 %v1352, %v1350
    %v1507 = vpack.c.b16 %v1353, %v1351
    %v1508 = vpack.c.b16 %v1356, %v1354
    %v1509 = vpack.c.b16 %v1357, %v1355
    %v1510 = vpack.c.b16 %v1360, %v1358
    %v1511 = vpack.c.b16 %v1361, %v1359
    %v1512 = vpack.c.b16 %v1364, %v1362
    %v1513 = vpack.c.b16 %v1365, %v1363
    %v1514 = vpack.c.b16 %v1368, %v1366
    %v1515 = vpack.c.b16 %v1369, %v1367
    %v1516 = vpack.c.b16 %v1372, %v1370
    %v1517 = vpack.c.b16 %v1373, %v1371
    %v1518 = vpack.c.b16 %v1376, %v1374
    %v1519 = vpack.c.b16 %v1377, %v1375
    %v1520 = vpack.c.b16 %v1380, %v1378
    %v1521 = vpack.c.b16 %v1381, %v1379
    %v1522 = vpack.c.b16 %v1384, %v1382
    %v1523 = vpack.c.b16 %v1385, %v1383
    %v1524 = vpack.c.b16 %v1388, %v1386
    %v1525 = vpack.c.b16 %v1389, %v1387
    %v1526 = vpack.c.b16 %v1392, %v1390
    %v1527 = vpack.c.b16 %v1393, %v1391
    %v1528 = vpack.c.b16 %v1396, %v1394
    %v1529 = vpack.c.b16 %v1397, %v1395
    %v1530 = vpack.c.b16 %v1400, %v1398
    %v1531 = vpack.c.b16 %v1401, %v1399
    %v1532 = vpack.c.b16 %v1404, %v1402
    %v1533 = vpack.c.b16 %v1405, %v1403
    %v1534 = vpack.c.b16 %v1408, %v1406
    %v1535 = vpack.c.b16 %v1409, %v1407
    %v1536 = vpack.c.b16 %v1412, %v1410
    %v1537 = vpack.c.b16 %v1413, %v1411
    %v1538 = vpack.c.b16 %v1416, %v1414
    %v1539 = vpack.c.b16 %v1417, %v1415
    %v1540 = vpack.c.b16 %v1420, %v1418
    %v1541 = vpack.c.b16 %v1421, %v1419
    %v1542 = vpack.c.b16 %v1424, %v1422
    %v1543 = vpack.c.b16 %v1425, %v1423
    %v1544 = vpack.c.b16 %v1428, %v1426
    %v1545 = vpack.c.b16 %v1429, %v1427
    %v1546 = vpack.c.b16 %v1432, %v1430
    %v1547 = vpack.c.b16 %v1433, %v1431
    %v1548 = vpack.c.b16 %v1436, %v1434
    %v1549 = vpack.c.b16 %v1437, %v1435
    %v1550 = vpack.c.b16 %v1440, %v1438
    %v1551 = vpack.c.b16 %v1441, %v1439
    %v1552 = vpack.c.b16 %v1444, %v1442
    %v1553 = vpack.c.b16 %v1445, %v1443
    %v1554 = vpack.c.b16 %v1448, %v1446
    %v1555 = vpack.c.b16 %v1449, %v1447
    %v1556 = vpack.c.b16 %v1452, %v1450
    %v1557 = vpack.c.b16 %v1453, %v1451
    %v1558 = vpack.c.b16 %v1456, %v1454
    %v1559 = vpack.c.b16 %v1457, %v1455
    %v1560 = vpack.c.b16 %v1460, %v1458
    %v1561 = vpack.c.b16 %v1461, %v1459
    %v1562 = vpack.c.b16 %v1464, %v1462
    %v1563 = vpack.c.b16 %v1465, %v1463
    %v1564 = vpack.c.b16 %v1468, %v1466
    %v1565 = vpack.c.b16 %v1469, %v1467
    %1662 = vmatprep.subr.bf16.mxu0 %v1485
    %1663 = vmatpush1.bf16.msra.mxu0 %v1484
    %1664 = vmatprep.subr.bf16.mxu0 %v1483
    %1665 = vmatpush1.bf16.msra.mxu0 %v1482
    %1666 = vmatprep.subr.bf16.mxu0 %v1481
    %1667 = vmatpush1.bf16.msra.mxu0 %v1480
    %1668 = vmatprep.subr.bf16.mxu0 %v1479
    %1669 = vmatpush1.bf16.msra.mxu0 %v1478
    %1670 = vmatprep.subr.bf16.mxu0 %v1477
    %1671 = vmatpush1.bf16.msra.mxu0 %v1476
    %1672 = vmatprep.subr.bf16.mxu0 %v1475
    %1673 = vmatpush1.bf16.msra.mxu0 %v1474
    %1674 = vmatprep.subr.bf16.mxu0 %v1473
    %1675 = vmatpush1.bf16.msra.mxu0 %v1472
    %1676 = vmatprep.subr.bf16.mxu0 %v1471
    %1677 = vmatpush1.bf16.msra.mxu0 %v1470
    %1678 = vmatprep.subr.bf16.mxu0 %v1501
    %1679 = vmatpush2.bf16.msra.mxu0 %v1500
    %1680 = vmatprep.subr.bf16.mxu0 %v1499
    %1681 = vmatpush2.bf16.msra.mxu0 %v1498
    %1682 = vmatprep.subr.bf16.mxu0 %v1497
    %1683 = vmatpush2.bf16.msra.mxu0 %v1496
    %1684 = vmatprep.subr.bf16.mxu0 %v1495
    %1685 = vmatpush2.bf16.msra.mxu0 %v1494
    %1686 = vmatprep.subr.bf16.mxu0 %v1493
    %1687 = vmatpush2.bf16.msra.mxu0 %v1492
    %1688 = vmatprep.subr.bf16.mxu0 %v1491
    %1689 = vmatpush2.bf16.msra.mxu0 %v1490
    %1690 = vmatprep.subr.bf16.mxu0 %v1489
    %1691 = vmatpush2.bf16.msra.mxu0 %v1488
    %1692 = vmatprep.subr.bf16.mxu0 %v1487
    %1693 = vmatpush2.bf16.msra.mxu0 %v1486
    %1694 = vmatprep.mubr.bf16.mxu0 %v109
    %1695 = vmatmul.mubr.bf16.gmra.mxu0 %v108
    %v1696 = vpop.f32.mrf.mxu0
    %v1697 = vadd.f32 %v1175, %v1696
    %v1698 = vpop.f32.mrf.mxu0
    %v1699 = vadd.f32 %v1179, %v1698
    %v1700 = vpop.f32.mrf.mxu0
    %v1701 = vpop.f32.mrf.mxu0
    %1702 = vdwg.mxu0
    %1703 = vmatprep.subr.bf16.mxu0 %v1517
    %1704 = vmatpush1.bf16.msra.mxu0 %v1516
    %1705 = vmatprep.subr.bf16.mxu0 %v1515
    %1706 = vmatpush1.bf16.msra.mxu0 %v1514
    %1707 = vmatprep.subr.bf16.mxu0 %v1513
    %1708 = vmatpush1.bf16.msra.mxu0 %v1512
    %1709 = vmatprep.subr.bf16.mxu0 %v1511
    %1710 = vmatpush1.bf16.msra.mxu0 %v1510
    %1711 = vmatprep.subr.bf16.mxu0 %v1509
    %1712 = vmatpush1.bf16.msra.mxu0 %v1508
    %1713 = vmatprep.subr.bf16.mxu0 %v1507
    %1714 = vmatpush1.bf16.msra.mxu0 %v1506
    %1715 = vmatprep.subr.bf16.mxu0 %v1505
    %1716 = vmatpush1.bf16.msra.mxu0 %v1504
    %1717 = vmatprep.subr.bf16.mxu0 %v1503
    %1718 = vmatpush1.bf16.msra.mxu0 %v1502
    %1719 = vmatprep.subr.bf16.mxu0 %v1533
    %1720 = vmatpush2.bf16.msra.mxu0 %v1532
    %1721 = vmatprep.subr.bf16.mxu0 %v1531
    %1722 = vmatpush2.bf16.msra.mxu0 %v1530
    %1723 = vmatprep.subr.bf16.mxu0 %v1529
    %1724 = vmatpush2.bf16.msra.mxu0 %v1528
    %1725 = vmatprep.subr.bf16.mxu0 %v1527
    %1726 = vmatpush2.bf16.msra.mxu0 %v1526
    %1727 = vmatprep.subr.bf16.mxu0 %v1525
    %1728 = vmatpush2.bf16.msra.mxu0 %v1524
    %1729 = vmatprep.subr.bf16.mxu0 %v1523
    %1730 = vmatpush2.bf16.msra.mxu0 %v1522
    %1731 = vmatprep.subr.bf16.mxu0 %v1521
    %1732 = vmatpush2.bf16.msra.mxu0 %v1520
    %1733 = vmatprep.subr.bf16.mxu0 %v1519
    %1734 = vmatpush2.bf16.msra.mxu0 %v1518
    %1735 = vmatprep.mubr.bf16.mxu0 %v111
    %1736 = vmatmul.mubr.bf16.gmra.mxu0 %v110
    %v1737 = vpop.f32.mrf.mxu0
    %v1738 = vadd.f32 %v1697, %v1737
    %v1739 = vpop.f32.mrf.mxu0
    %v1740 = vadd.f32 %v1699, %v1739
    %v1741 = vpop.f32.mrf.mxu0
    %v1742 = vpop.f32.mrf.mxu0
    %1743 = vdwg.mxu0
    %1744 = vmatprep.subr.bf16.mxu0 %v1549
    %1745 = vmatpush1.bf16.msra.mxu0 %v1548
    %1746 = vmatprep.subr.bf16.mxu0 %v1547
    %1747 = vmatpush1.bf16.msra.mxu0 %v1546
    %1748 = vmatprep.subr.bf16.mxu0 %v1545
    %1749 = vmatpush1.bf16.msra.mxu0 %v1544
    %1750 = vmatprep.subr.bf16.mxu0 %v1543
    %1751 = vmatpush1.bf16.msra.mxu0 %v1542
    %1752 = vmatprep.subr.bf16.mxu0 %v1541
    %1753 = vmatpush1.bf16.msra.mxu0 %v1540
    %1754 = vmatprep.subr.bf16.mxu0 %v1539
    %1755 = vmatpush1.bf16.msra.mxu0 %v1538
    %1756 = vmatprep.subr.bf16.mxu0 %v1537
    %1757 = vmatpush1.bf16.msra.mxu0 %v1536
    %1758 = vmatprep.subr.bf16.mxu0 %v1535
    %1759 = vmatpush1.bf16.msra.mxu0 %v1534
    %1760 = vmatprep.subr.bf16.mxu0 %v1565
    %1761 = vmatpush2.bf16.msra.mxu0 %v1564
    %1762 = vmatprep.subr.bf16.mxu0 %v1563
    %1763 = vmatpush2.bf16.msra.mxu0 %v1562
    %1764 = vmatprep.subr.bf16.mxu0 %v1561
    %1765 = vmatpush2.bf16.msra.mxu0 %v1560
    %1766 = vmatprep.subr.bf16.mxu0 %v1559
    %1767 = vmatpush2.bf16.msra.mxu0 %v1558
    %1768 = vmatprep.subr.bf16.mxu0 %v1557
    %1769 = vmatpush2.bf16.msra.mxu0 %v1556
    %1770 = vmatprep.subr.bf16.mxu0 %v1555
    %1771 = vmatpush2.bf16.msra.mxu0 %v1554
    %1772 = vmatprep.subr.bf16.mxu0 %v1553
    %1773 = vmatpush2.bf16.msra.mxu0 %v1552
    %1774 = vmatprep.subr.bf16.mxu0 %v1551
    %1775 = vmatpush2.bf16.msra.mxu0 %v1550
    %1776 = vmatprep.mubr.bf16.mxu0 %v113
    %1777 = vmatmul.mubr.bf16.gmra.mxu0 %v112
    %v1778 = vpop.f32.mrf.mxu0
    %v1779 = vadd.f32 %v1738, %v1778
    %v1780 = vpop.f32.mrf.mxu0
    %v1781 = vadd.f32 %v1740, %v1780
    %v1782 = vpop.f32.mrf.mxu0
    %v1783 = vpop.f32.mrf.mxu0
    %1784 = vdwg.mxu0
    %v1785 = vpack.c.bf16 %v1779, %v1779
    %v1786 = vpack.c.bf16 %v1781, %v1781
    %1787 = vmatprep.subr.bf16.mxu0 %v982
    %1788 = vmatpush1.bf16.msra.mxu0 %v981
    %1789 = vmatprep.subr.bf16.mxu0 %v980
    %1790 = vmatpush1.bf16.msra.mxu0 %v979
    %1791 = vmatprep.subr.bf16.mxu0 %v978
    %1792 = vmatpush1.bf16.msra.mxu0 %v977
    %1793 = vmatprep.subr.bf16.mxu0 %v976
    %1794 = vmatpush1.bf16.msra.mxu0 %v975
    %1795 = vmatprep.subr.bf16.mxu0 %v974
    %1796 = vmatpush1.bf16.msra.mxu0 %v973
    %1797 = vmatprep.subr.bf16.mxu0 %v972
    %1798 = vmatpush1.bf16.msra.mxu0 %v971
    %1799 = vmatprep.subr.bf16.mxu0 %v970
    %1800 = vmatpush1.bf16.msra.mxu0 %v969
    %1801 = vmatprep.subr.bf16.mxu0 %v968
    %1802 = vmatpush1.bf16.msra.mxu0 %v967
    %1803 = vmatprep.subr.bf16.mxu0 %v998
    %1804 = vmatpush2.bf16.msra.mxu0 %v997
    %1805 = vmatprep.subr.bf16.mxu0 %v996
    %1806 = vmatpush2.bf16.msra.mxu0 %v995
    %1807 = vmatprep.subr.bf16.mxu0 %v994
    %1808 = vmatpush2.bf16.msra.mxu0 %v993
    %1809 = vmatprep.subr.bf16.mxu0 %v992
    %1810 = vmatpush2.bf16.msra.mxu0 %v991
    %1811 = vmatprep.subr.bf16.mxu0 %v990
    %1812 = vmatpush2.bf16.msra.mxu0 %v989
    %1813 = vmatprep.subr.bf16.mxu0 %v988
    %1814 = vmatpush2.bf16.msra.mxu0 %v987
    %1815 = vmatprep.subr.bf16.mxu0 %v986
    %1816 = vmatpush2.bf16.msra.mxu0 %v985
    %1817 = vmatprep.subr.bf16.mxu0 %v984
    %1818 = vmatpush2.bf16.msra.mxu0 %v983
    %1819 = vmatprep.mubr.bf16.mxu0 %v1786
    %1820 = vmatmul.mubr.bf16.gmra.mxu0 %v1785
    %v1821 = vpop.f32.mrf.mxu0
    %v1822 = vadd.f32 %v864, %v1821
    %v1823 = vpop.f32.mrf.mxu0
    %v1824 = vadd.f32 %v868, %v1823
    %v1825 = vpop.f32.mrf.mxu0
    %v1826 = vpop.f32.mrf.mxu0
    %1827 = vdwg.mxu0
    %v1828 = vmax.f32 %v1822, 0.0
    %v1829 = vmax.f32 %v1824, 0.0
    %v1830 = vadd.f32 %v1072, %v1828
    %v1831 = vadd.f32 %v1073, %v1829
    %v1832 = vld [vmem:[#allocation2 + $0x10] sm:$0xff]
    %v1833 = vld [vmem:[#allocation2 + $0x30] sm:$0xff]
    %v1834 = vld [vmem:[#allocation2 + $0x50] sm:$0xff]
    %v1835 = vld [vmem:[#allocation2 + $0x70] sm:$0xff]
    %v1836 = vld [vmem:[#allocation2 + $0x90] sm:$0xff]
    %v1837 = vld [vmem:[#allocation2 + $0xb0] sm:$0xff]
    %v1838 = vld [vmem:[#allocation2 + $0xd0] sm:$0xff]
    %v1839 = vld [vmem:[#allocation2 + $0xf0] sm:$0xff]
    %v1840 = vld [vmem:[#allocation2 + $0x110] sm:$0xff]
    %v1841 = vld [vmem:[#allocation2 + $0x130] sm:$0xff]
    %v1842 = vld [vmem:[#allocation2 + $0x150] sm:$0xff]
    %v1843 = vld [vmem:[#allocation2 + $0x170] sm:$0xff]
    %v1844 = vld [vmem:[#allocation2 + $0x190] sm:$0xff]
    %v1845 = vld [vmem:[#allocation2 + $0x1b0] sm:$0xff]
    %v1846 = vld [vmem:[#allocation2 + $0x1d0] sm:$0xff]
    %v1847 = vld [vmem:[#allocation2 + $0x1f0] sm:$0xff]
    %v1848 = vld [vmem:[#allocation2 + $0x210] sm:$0xff]
    %v1849 = vld [vmem:[#allocation2 + $0x230] sm:$0xff]
    %v1850 = vld [vmem:[#allocation2 + $0x250] sm:$0xff]
    %v1851 = vld [vmem:[#allocation2 + $0x270] sm:$0xff]
    %v1852 = vld [vmem:[#allocation2 + $0x290] sm:$0xff]
    %v1853 = vld [vmem:[#allocation2 + $0x2b0] sm:$0xff]
    %v1854 = vld [vmem:[#allocation2 + $0x2d0] sm:$0xff]
    %v1855 = vld [vmem:[#allocation2 + $0x2f0] sm:$0xff]
    %v1856 = vld [vmem:[#allocation2 + $0x310] sm:$0xff]
    %v1857 = vld [vmem:[#allocation2 + $0x330] sm:$0xff]
    %v1858 = vld [vmem:[#allocation2 + $0x350] sm:$0xff]
    %v1859 = vld [vmem:[#allocation2 + $0x370] sm:$0xff]
    %v1860 = vld [vmem:[#allocation2 + $0x390] sm:$0xff]
    %v1861 = vld [vmem:[#allocation2 + $0x3b0] sm:$0xff]
    %v1862 = vld [vmem:[#allocation2 + $0x3d0] sm:$0xff]
    %v1863 = vld [vmem:[#allocation2 + $0x3f0] sm:$0xff]
    %v1864 = vld [vmem:[#allocation2 + $0x410] sm:$0xff]
    %v1865 = vld [vmem:[#allocation2 + $0x430] sm:$0xff]
    %v1866 = vld [vmem:[#allocation2 + $0x450] sm:$0xff]
    %v1867 = vld [vmem:[#allocation2 + $0x470] sm:$0xff]
    %v1868 = vld [vmem:[#allocation2 + $0x490] sm:$0xff]
    %v1869 = vld [vmem:[#allocation2 + $0x4b0] sm:$0xff]
    %v1870 = vld [vmem:[#allocation2 + $0x4d0] sm:$0xff]
    %v1871 = vld [vmem:[#allocation2 + $0x4f0] sm:$0xff]
    %v1872 = vld [vmem:[#allocation2 + $0x510] sm:$0xff]
    %v1873 = vld [vmem:[#allocation2 + $0x530] sm:$0xff]
    %v1874 = vld [vmem:[#allocation2 + $0x550] sm:$0xff]
    %v1875 = vld [vmem:[#allocation2 + $0x570] sm:$0xff]
    %v1876 = vld [vmem:[#allocation2 + $0x590] sm:$0xff]
    %v1877 = vld [vmem:[#allocation2 + $0x5b0] sm:$0xff]
    %v1878 = vld [vmem:[#allocation2 + $0x5d0] sm:$0xff]
    %v1879 = vld [vmem:[#allocation2 + $0x5f0] sm:$0xff]
    %v1880 = vld [vmem:[#allocation2 + $0x610] sm:$0xff]
    %v1881 = vld [vmem:[#allocation2 + $0x630] sm:$0xff]
    %v1882 = vld [vmem:[#allocation2 + $0x650] sm:$0xff]
    %v1883 = vld [vmem:[#allocation2 + $0x670] sm:$0xff]
    %v1884 = vld [vmem:[#allocation2 + $0x690] sm:$0xff]
    %v1885 = vld [vmem:[#allocation2 + $0x6b0] sm:$0xff]
    %v1886 = vld [vmem:[#allocation2 + $0x6d0] sm:$0xff]
    %v1887 = vld [vmem:[#allocation2 + $0x6f0] sm:$0xff]
    %v1888 = vld [vmem:[#allocation2 + $0x710] sm:$0xff]
    %v1889 = vld [vmem:[#allocation2 + $0x730] sm:$0xff]
    %v1890 = vld [vmem:[#allocation2 + $0x750] sm:$0xff]
    %v1891 = vld [vmem:[#allocation2 + $0x770] sm:$0xff]
    %v1892 = vld [vmem:[#allocation2 + $0x790] sm:$0xff]
    %v1893 = vld [vmem:[#allocation2 + $0x7b0] sm:$0xff]
    %v1894 = vld [vmem:[#allocation2 + $0x7d0] sm:$0xff]
    %v1895 = vld [vmem:[#allocation2 + $0x7f0] sm:$0xff]
    %v1896 = vld [vmem:[#allocation2 + $0x810] sm:$0xff]
    %v1897 = vld [vmem:[#allocation2 + $0x830] sm:$0xff]
    %v1898 = vld [vmem:[#allocation2 + $0x850] sm:$0xff]
    %v1899 = vld [vmem:[#allocation2 + $0x870] sm:$0xff]
    %v1900 = vld [vmem:[#allocation2 + $0x890] sm:$0xff]
    %v1901 = vld [vmem:[#allocation2 + $0x8b0] sm:$0xff]
    %v1902 = vld [vmem:[#allocation2 + $0x8d0] sm:$0xff]
    %v1903 = vld [vmem:[#allocation2 + $0x8f0] sm:$0xff]
    %v1904 = vld [vmem:[#allocation2 + $0x910] sm:$0xff]
    %v1905 = vld [vmem:[#allocation2 + $0x930] sm:$0xff]
    %v1906 = vld [vmem:[#allocation2 + $0x950] sm:$0xff]
    %v1907 = vld [vmem:[#allocation2 + $0x970] sm:$0xff]
    %v1908 = vld [vmem:[#allocation2 + $0x990] sm:$0xff]
    %v1909 = vld [vmem:[#allocation2 + $0x9b0] sm:$0xff]
    %v1910 = vld [vmem:[#allocation2 + $0x9d0] sm:$0xff]
    %v1911 = vld [vmem:[#allocation2 + $0x9f0] sm:$0xff]
    %v1912 = vld [vmem:[#allocation2 + $0xa10] sm:$0xff]
    %v1913 = vld [vmem:[#allocation2 + $0xa30] sm:$0xff]
    %v1914 = vld [vmem:[#allocation2 + $0xa50] sm:$0xff]
    %v1915 = vld [vmem:[#allocation2 + $0xa70] sm:$0xff]
    %v1916 = vld [vmem:[#allocation2 + $0xa90] sm:$0xff]
    %v1917 = vld [vmem:[#allocation2 + $0xab0] sm:$0xff]
    %v1918 = vld [vmem:[#allocation2 + $0xad0] sm:$0xff]
    %v1919 = vld [vmem:[#allocation2 + $0xaf0] sm:$0xff]
    %v1920 = vld [vmem:[#allocation2 + $0xb10] sm:$0xff]
    %v1921 = vld [vmem:[#allocation2 + $0xb30] sm:$0xff]
    %v1922 = vld [vmem:[#allocation2 + $0xb50] sm:$0xff]
    %v1923 = vld [vmem:[#allocation2 + $0xb70] sm:$0xff]
    %v1924 = vld [vmem:[#allocation2 + $0xb90] sm:$0xff]
    %v1925 = vld [vmem:[#allocation2 + $0xbb0] sm:$0xff]
    %v1926 = vld [vmem:[#allocation2 + $0xbd0] sm:$0xff]
    %v1927 = vld [vmem:[#allocation2 + $0xbf0] sm:$0xff]
    %v1928 = vld [vmem:[#allocation4 + $0x4] sm:$0x3]
    %v1930 = vlaneseq
    %v1931 = vshrl.u32 %v1930, 7
    %v1932 = vsub.s32 0, %v1931
    %v1933 = vrot.slane %v1928, %v1932
    %v1934 = vlaneseq
    %v1935 = vshrl.u32 %v1934, 7
    %v1936 = vsub.s32 1, %v1935
    %v1937 = vrot.slane %v1928, %v1936
    %v2036 = vunpack.c.l.b16 %v1832
    %v2037 = vunpack.c.h.b16 %v1832
    %v2038 = vunpack.c.l.b16 %v1833
    %v2039 = vunpack.c.h.b16 %v1833
    %v2040 = vunpack.c.l.b16 %v1834
    %v2041 = vunpack.c.h.b16 %v1834
    %v2042 = vunpack.c.l.b16 %v1835
    %v2043 = vunpack.c.h.b16 %v1835
    %v2044 = vunpack.c.l.b16 %v1836
    %v2045 = vunpack.c.h.b16 %v1836
    %v2046 = vunpack.c.l.b16 %v1837
    %v2047 = vunpack.c.h.b16 %v1837
    %v2048 = vunpack.c.l.b16 %v1838
    %v2049 = vunpack.c.h.b16 %v1838
    %v2050 = vunpack.c.l.b16 %v1839
    %v2051 = vunpack.c.h.b16 %v1839
    %v2052 = vunpack.c.l.b16 %v1840
    %v2053 = vunpack.c.h.b16 %v1840
    %v2054 = vunpack.c.l.b16 %v1841
    %v2055 = vunpack.c.h.b16 %v1841
    %v2056 = vunpack.c.l.b16 %v1842
    %v2057 = vunpack.c.h.b16 %v1842
    %v2058 = vunpack.c.l.b16 %v1843
    %v2059 = vunpack.c.h.b16 %v1843
    %v2060 = vunpack.c.l.b16 %v1844
    %v2061 = vunpack.c.h.b16 %v1844
    %v2062 = vunpack.c.l.b16 %v1845
    %v2063 = vunpack.c.h.b16 %v1845
    %v2064 = vunpack.c.l.b16 %v1846
    %v2065 = vunpack.c.h.b16 %v1846
    %v2066 = vunpack.c.l.b16 %v1847
    %v2067 = vunpack.c.h.b16 %v1847
    %v2068 = vunpack.c.l.b16 %v1848
    %v2069 = vunpack.c.h.b16 %v1848
    %v2070 = vunpack.c.l.b16 %v1849
    %v2071 = vunpack.c.h.b16 %v1849
    %v2072 = vunpack.c.l.b16 %v1850
    %v2073 = vunpack.c.h.b16 %v1850
    %v2074 = vunpack.c.l.b16 %v1851
    %v2075 = vunpack.c.h.b16 %v1851
    %v2076 = vunpack.c.l.b16 %v1852
    %v2077 = vunpack.c.h.b16 %v1852
    %v2078 = vunpack.c.l.b16 %v1853
    %v2079 = vunpack.c.h.b16 %v1853
    %v2080 = vunpack.c.l.b16 %v1854
    %v2081 = vunpack.c.h.b16 %v1854
    %v2082 = vunpack.c.l.b16 %v1855
    %v2083 = vunpack.c.h.b16 %v1855
    %v2084 = vunpack.c.l.b16 %v1856
    %v2085 = vunpack.c.h.b16 %v1856
    %v2086 = vunpack.c.l.b16 %v1857
    %v2087 = vunpack.c.h.b16 %v1857
    %v2088 = vunpack.c.l.b16 %v1858
    %v2089 = vunpack.c.h.b16 %v1858
    %v2090 = vunpack.c.l.b16 %v1859
    %v2091 = vunpack.c.h.b16 %v1859
    %v2092 = vunpack.c.l.b16 %v1860
    %v2093 = vunpack.c.h.b16 %v1860
    %v2094 = vunpack.c.l.b16 %v1861
    %v2095 = vunpack.c.h.b16 %v1861
    %v2096 = vunpack.c.l.b16 %v1862
    %v2097 = vunpack.c.h.b16 %v1862
    %v2098 = vunpack.c.l.b16 %v1863
    %v2099 = vunpack.c.h.b16 %v1863
    %v2100 = vunpack.c.l.b16 %v1864
    %v2101 = vunpack.c.h.b16 %v1864
    %v2102 = vunpack.c.l.b16 %v1865
    %v2103 = vunpack.c.h.b16 %v1865
    %v2104 = vunpack.c.l.b16 %v1866
    %v2105 = vunpack.c.h.b16 %v1866
    %v2106 = vunpack.c.l.b16 %v1867
    %v2107 = vunpack.c.h.b16 %v1867
    %v2108 = vunpack.c.l.b16 %v1868
    %v2109 = vunpack.c.h.b16 %v1868
    %v2110 = vunpack.c.l.b16 %v1869
    %v2111 = vunpack.c.h.b16 %v1869
    %v2112 = vunpack.c.l.b16 %v1870
    %v2113 = vunpack.c.h.b16 %v1870
    %v2114 = vunpack.c.l.b16 %v1871
    %v2115 = vunpack.c.h.b16 %v1871
    %v2116 = vunpack.c.l.b16 %v1872
    %v2117 = vunpack.c.h.b16 %v1872
    %v2118 = vunpack.c.l.b16 %v1873
    %v2119 = vunpack.c.h.b16 %v1873
    %v2120 = vunpack.c.l.b16 %v1874
    %v2121 = vunpack.c.h.b16 %v1874
    %v2122 = vunpack.c.l.b16 %v1875
    %v2123 = vunpack.c.h.b16 %v1875
    %v2124 = vunpack.c.l.b16 %v1876
    %v2125 = vunpack.c.h.b16 %v1876
    %v2126 = vunpack.c.l.b16 %v1877
    %v2127 = vunpack.c.h.b16 %v1877
    %v2128 = vunpack.c.l.b16 %v1878
    %v2129 = vunpack.c.h.b16 %v1878
    %v2130 = vunpack.c.l.b16 %v1879
    %v2131 = vunpack.c.h.b16 %v1879
    %v2132 = vunpack.c.l.b16 %v1880
    %v2133 = vunpack.c.h.b16 %v1880
    %v2134 = vunpack.c.l.b16 %v1881
    %v2135 = vunpack.c.h.b16 %v1881
    %v2136 = vunpack.c.l.b16 %v1882
    %v2137 = vunpack.c.h.b16 %v1882
    %v2138 = vunpack.c.l.b16 %v1883
    %v2139 = vunpack.c.h.b16 %v1883
    %v2140 = vunpack.c.l.b16 %v1884
    %v2141 = vunpack.c.h.b16 %v1884
    %v2142 = vunpack.c.l.b16 %v1885
    %v2143 = vunpack.c.h.b16 %v1885
    %v2144 = vunpack.c.l.b16 %v1886
    %v2145 = vunpack.c.h.b16 %v1886
    %v2146 = vunpack.c.l.b16 %v1887
    %v2147 = vunpack.c.h.b16 %v1887
    %v2148 = vunpack.c.l.b16 %v1888
    %v2149 = vunpack.c.h.b16 %v1888
    %v2150 = vunpack.c.l.b16 %v1889
    %v2151 = vunpack.c.h.b16 %v1889
    %v2152 = vunpack.c.l.b16 %v1890
    %v2153 = vunpack.c.h.b16 %v1890
    %v2154 = vunpack.c.l.b16 %v1891
    %v2155 = vunpack.c.h.b16 %v1891
    %v2156 = vunpack.c.l.b16 %v1892
    %v2157 = vunpack.c.h.b16 %v1892
    %v2158 = vunpack.c.l.b16 %v1893
    %v2159 = vunpack.c.h.b16 %v1893
    %v2160 = vunpack.c.l.b16 %v1894
    %v2161 = vunpack.c.h.b16 %v1894
    %v2162 = vunpack.c.l.b16 %v1895
    %v2163 = vunpack.c.h.b16 %v1895
    %v2164 = vunpack.c.l.b16 %v1896
    %v2165 = vunpack.c.h.b16 %v1896
    %v2166 = vunpack.c.l.b16 %v1897
    %v2167 = vunpack.c.h.b16 %v1897
    %v2168 = vunpack.c.l.b16 %v1898
    %v2169 = vunpack.c.h.b16 %v1898
    %v2170 = vunpack.c.l.b16 %v1899
    %v2171 = vunpack.c.h.b16 %v1899
    %v2172 = vunpack.c.l.b16 %v1900
    %v2173 = vunpack.c.h.b16 %v1900
    %v2174 = vunpack.c.l.b16 %v1901
    %v2175 = vunpack.c.h.b16 %v1901
    %v2176 = vunpack.c.l.b16 %v1902
    %v2177 = vunpack.c.h.b16 %v1902
    %v2178 = vunpack.c.l.b16 %v1903
    %v2179 = vunpack.c.h.b16 %v1903
    %v2180 = vunpack.c.l.b16 %v1904
    %v2181 = vunpack.c.h.b16 %v1904
    %v2182 = vunpack.c.l.b16 %v1905
    %v2183 = vunpack.c.h.b16 %v1905
    %v2184 = vunpack.c.l.b16 %v1906
    %v2185 = vunpack.c.h.b16 %v1906
    %v2186 = vunpack.c.l.b16 %v1907
    %v2187 = vunpack.c.h.b16 %v1907
    %v2188 = vunpack.c.l.b16 %v1908
    %v2189 = vunpack.c.h.b16 %v1908
    %v2190 = vunpack.c.l.b16 %v1909
    %v2191 = vunpack.c.h.b16 %v1909
    %v2192 = vunpack.c.l.b16 %v1910
    %v2193 = vunpack.c.h.b16 %v1910
    %v2194 = vunpack.c.l.b16 %v1911
    %v2195 = vunpack.c.h.b16 %v1911
    %v2196 = vunpack.c.l.b16 %v1912
    %v2197 = vunpack.c.h.b16 %v1912
    %v2198 = vunpack.c.l.b16 %v1913
    %v2199 = vunpack.c.h.b16 %v1913
    %v2200 = vunpack.c.l.b16 %v1914
    %v2201 = vunpack.c.h.b16 %v1914
    %v2202 = vunpack.c.l.b16 %v1915
    %v2203 = vunpack.c.h.b16 %v1915
    %v2204 = vunpack.c.l.b16 %v1916
    %v2205 = vunpack.c.h.b16 %v1916
    %v2206 = vunpack.c.l.b16 %v1917
    %v2207 = vunpack.c.h.b16 %v1917
    %v2208 = vunpack.c.l.b16 %v1918
    %v2209 = vunpack.c.h.b16 %v1918
    %v2210 = vunpack.c.l.b16 %v1919
    %v2211 = vunpack.c.h.b16 %v1919
    %v2212 = vunpack.c.l.b16 %v1920
    %v2213 = vunpack.c.h.b16 %v1920
    %v2214 = vunpack.c.l.b16 %v1921
    %v2215 = vunpack.c.h.b16 %v1921
    %v2216 = vunpack.c.l.b16 %v1922
    %v2217 = vunpack.c.h.b16 %v1922
    %v2218 = vunpack.c.l.b16 %v1923
    %v2219 = vunpack.c.h.b16 %v1923
    %v2220 = vunpack.c.l.b16 %v1924
    %v2221 = vunpack.c.h.b16 %v1924
    %v2222 = vunpack.c.l.b16 %v1925
    %v2223 = vunpack.c.h.b16 %v1925
    %v2224 = vunpack.c.l.b16 %v1926
    %v2225 = vunpack.c.h.b16 %v1926
    %v2226 = vunpack.c.l.b16 %v1927
    %v2227 = vunpack.c.h.b16 %v1927
    %v2228 = vpack.c.b16 %v2038, %v2036
    %v2229 = vpack.c.b16 %v2039, %v2037
    %v2230 = vpack.c.b16 %v2042, %v2040
    %v2231 = vpack.c.b16 %v2043, %v2041
    %v2232 = vpack.c.b16 %v2046, %v2044
    %v2233 = vpack.c.b16 %v2047, %v2045
    %v2234 = vpack.c.b16 %v2050, %v2048
    %v2235 = vpack.c.b16 %v2051, %v2049
    %v2236 = vpack.c.b16 %v2054, %v2052
    %v2237 = vpack.c.b16 %v2055, %v2053
    %v2238 = vpack.c.b16 %v2058, %v2056
    %v2239 = vpack.c.b16 %v2059, %v2057
    %v2240 = vpack.c.b16 %v2062, %v2060
    %v2241 = vpack.c.b16 %v2063, %v2061
    %v2242 = vpack.c.b16 %v2066, %v2064
    %v2243 = vpack.c.b16 %v2067, %v2065
    %v2244 = vpack.c.b16 %v2070, %v2068
    %v2245 = vpack.c.b16 %v2071, %v2069
    %v2246 = vpack.c.b16 %v2074, %v2072
    %v2247 = vpack.c.b16 %v2075, %v2073
    %v2248 = vpack.c.b16 %v2078, %v2076
    %v2249 = vpack.c.b16 %v2079, %v2077
    %v2250 = vpack.c.b16 %v2082, %v2080
    %v2251 = vpack.c.b16 %v2083, %v2081
    %v2252 = vpack.c.b16 %v2086, %v2084
    %v2253 = vpack.c.b16 %v2087, %v2085
    %v2254 = vpack.c.b16 %v2090, %v2088
    %v2255 = vpack.c.b16 %v2091, %v2089
    %v2256 = vpack.c.b16 %v2094, %v2092
    %v2257 = vpack.c.b16 %v2095, %v2093
    %v2258 = vpack.c.b16 %v2098, %v2096
    %v2259 = vpack.c.b16 %v2099, %v2097
    %v2260 = vpack.c.b16 %v2102, %v2100
    %v2261 = vpack.c.b16 %v2103, %v2101
    %v2262 = vpack.c.b16 %v2106, %v2104
    %v2263 = vpack.c.b16 %v2107, %v2105
    %v2264 = vpack.c.b16 %v2110, %v2108
    %v2265 = vpack.c.b16 %v2111, %v2109
    %v2266 = vpack.c.b16 %v2114, %v2112
    %v2267 = vpack.c.b16 %v2115, %v2113
    %v2268 = vpack.c.b16 %v2118, %v2116
    %v2269 = vpack.c.b16 %v2119, %v2117
    %v2270 = vpack.c.b16 %v2122, %v2120
    %v2271 = vpack.c.b16 %v2123, %v2121
    %v2272 = vpack.c.b16 %v2126, %v2124
    %v2273 = vpack.c.b16 %v2127, %v2125
    %v2274 = vpack.c.b16 %v2130, %v2128
    %v2275 = vpack.c.b16 %v2131, %v2129
    %v2276 = vpack.c.b16 %v2134, %v2132
    %v2277 = vpack.c.b16 %v2135, %v2133
    %v2278 = vpack.c.b16 %v2138, %v2136
    %v2279 = vpack.c.b16 %v2139, %v2137
    %v2280 = vpack.c.b16 %v2142, %v2140
    %v2281 = vpack.c.b16 %v2143, %v2141
    %v2282 = vpack.c.b16 %v2146, %v2144
    %v2283 = vpack.c.b16 %v2147, %v2145
    %v2284 = vpack.c.b16 %v2150, %v2148
    %v2285 = vpack.c.b16 %v2151, %v2149
    %v2286 = vpack.c.b16 %v2154, %v2152
    %v2287 = vpack.c.b16 %v2155, %v2153
    %v2288 = vpack.c.b16 %v2158, %v2156
    %v2289 = vpack.c.b16 %v2159, %v2157
    %v2290 = vpack.c.b16 %v2162, %v2160
    %v2291 = vpack.c.b16 %v2163, %v2161
    %v2292 = vpack.c.b16 %v2166, %v2164
    %v2293 = vpack.c.b16 %v2167, %v2165
    %v2294 = vpack.c.b16 %v2170, %v2168
    %v2295 = vpack.c.b16 %v2171, %v2169
    %v2296 = vpack.c.b16 %v2174, %v2172
    %v2297 = vpack.c.b16 %v2175, %v2173
    %v2298 = vpack.c.b16 %v2178, %v2176
    %v2299 = vpack.c.b16 %v2179, %v2177
    %v2300 = vpack.c.b16 %v2182, %v2180
    %v2301 = vpack.c.b16 %v2183, %v2181
    %v2302 = vpack.c.b16 %v2186, %v2184
    %v2303 = vpack.c.b16 %v2187, %v2185
    %v2304 = vpack.c.b16 %v2190, %v2188
    %v2305 = vpack.c.b16 %v2191, %v2189
    %v2306 = vpack.c.b16 %v2194, %v2192
    %v2307 = vpack.c.b16 %v2195, %v2193
    %v2308 = vpack.c.b16 %v2198, %v2196
    %v2309 = vpack.c.b16 %v2199, %v2197
    %v2310 = vpack.c.b16 %v2202, %v2200
    %v2311 = vpack.c.b16 %v2203, %v2201
    %v2312 = vpack.c.b16 %v2206, %v2204
    %v2313 = vpack.c.b16 %v2207, %v2205
    %v2314 = vpack.c.b16 %v2210, %v2208
    %v2315 = vpack.c.b16 %v2211, %v2209
    %v2316 = vpack.c.b16 %v2214, %v2212
    %v2317 = vpack.c.b16 %v2215, %v2213
    %v2318 = vpack.c.b16 %v2218, %v2216
    %v2319 = vpack.c.b16 %v2219, %v2217
    %v2320 = vpack.c.b16 %v2222, %v2220
    %v2321 = vpack.c.b16 %v2223, %v2221
    %v2322 = vpack.c.b16 %v2226, %v2224
    %v2323 = vpack.c.b16 %v2227, %v2225
    %2420 = vmatprep.subr.bf16.mxu0 %v2243
    %2421 = vmatpush1.bf16.msra.mxu0 %v2242
    %2422 = vmatprep.subr.bf16.mxu0 %v2241
    %2423 = vmatpush1.bf16.msra.mxu0 %v2240
    %2424 = vmatprep.subr.bf16.mxu0 %v2239
    %2425 = vmatpush1.bf16.msra.mxu0 %v2238
    %2426 = vmatprep.subr.bf16.mxu0 %v2237
    %2427 = vmatpush1.bf16.msra.mxu0 %v2236
    %2428 = vmatprep.subr.bf16.mxu0 %v2235
    %2429 = vmatpush1.bf16.msra.mxu0 %v2234
    %2430 = vmatprep.subr.bf16.mxu0 %v2233
    %2431 = vmatpush1.bf16.msra.mxu0 %v2232
    %2432 = vmatprep.subr.bf16.mxu0 %v2231
    %2433 = vmatpush1.bf16.msra.mxu0 %v2230
    %2434 = vmatprep.subr.bf16.mxu0 %v2229
    %2435 = vmatpush1.bf16.msra.mxu0 %v2228
    %2436 = vmatprep.subr.bf16.mxu0 %v2259
    %2437 = vmatpush2.bf16.msra.mxu0 %v2258
    %2438 = vmatprep.subr.bf16.mxu0 %v2257
    %2439 = vmatpush2.bf16.msra.mxu0 %v2256
    %2440 = vmatprep.subr.bf16.mxu0 %v2255
    %2441 = vmatpush2.bf16.msra.mxu0 %v2254
    %2442 = vmatprep.subr.bf16.mxu0 %v2253
    %2443 = vmatpush2.bf16.msra.mxu0 %v2252
    %2444 = vmatprep.subr.bf16.mxu0 %v2251
    %2445 = vmatpush2.bf16.msra.mxu0 %v2250
    %2446 = vmatprep.subr.bf16.mxu0 %v2249
    %2447 = vmatpush2.bf16.msra.mxu0 %v2248
    %2448 = vmatprep.subr.bf16.mxu0 %v2247
    %2449 = vmatpush2.bf16.msra.mxu0 %v2246
    %2450 = vmatprep.subr.bf16.mxu0 %v2245
    %2451 = vmatpush2.bf16.msra.mxu0 %v2244
    %2452 = vmatprep.mubr.bf16.mxu0 %v109
    %2453 = vmatmul.mubr.bf16.gmra.mxu0 %v108
    %v2454 = vpop.f32.mrf.mxu0
    %v2455 = vadd.f32 %v1933, %v2454
    %v2456 = vpop.f32.mrf.mxu0
    %v2457 = vadd.f32 %v1937, %v2456
    %v2458 = vpop.f32.mrf.mxu0
    %v2459 = vpop.f32.mrf.mxu0
    %2460 = vdwg.mxu0
    %2461 = vmatprep.subr.bf16.mxu0 %v2275
    %2462 = vmatpush1.bf16.msra.mxu0 %v2274
    %2463 = vmatprep.subr.bf16.mxu0 %v2273
    %2464 = vmatpush1.bf16.msra.mxu0 %v2272
    %2465 = vmatprep.subr.bf16.mxu0 %v2271
    %2466 = vmatpush1.bf16.msra.mxu0 %v2270
    %2467 = vmatprep.subr.bf16.mxu0 %v2269
    %2468 = vmatpush1.bf16.msra.mxu0 %v2268
    %2469 = vmatprep.subr.bf16.mxu0 %v2267
    %2470 = vmatpush1.bf16.msra.mxu0 %v2266
    %2471 = vmatprep.subr.bf16.mxu0 %v2265
    %2472 = vmatpush1.bf16.msra.mxu0 %v2264
    %2473 = vmatprep.subr.bf16.mxu0 %v2263
    %2474 = vmatpush1.bf16.msra.mxu0 %v2262
    %2475 = vmatprep.subr.bf16.mxu0 %v2261
    %2476 = vmatpush1.bf16.msra.mxu0 %v2260
    %2477 = vmatprep.subr.bf16.mxu0 %v2291
    %2478 = vmatpush2.bf16.msra.mxu0 %v2290
    %2479 = vmatprep.subr.bf16.mxu0 %v2289
    %2480 = vmatpush2.bf16.msra.mxu0 %v2288
    %2481 = vmatprep.subr.bf16.mxu0 %v2287
    %2482 = vmatpush2.bf16.msra.mxu0 %v2286
    %2483 = vmatprep.subr.bf16.mxu0 %v2285
    %2484 = vmatpush2.bf16.msra.mxu0 %v2284
    %2485 = vmatprep.subr.bf16.mxu0 %v2283
    %2486 = vmatpush2.bf16.msra.mxu0 %v2282
    %2487 = vmatprep.subr.bf16.mxu0 %v2281
    %2488 = vmatpush2.bf16.msra.mxu0 %v2280
    %2489 = vmatprep.subr.bf16.mxu0 %v2279
    %2490 = vmatpush2.bf16.msra.mxu0 %v2278
    %2491 = vmatprep.subr.bf16.mxu0 %v2277
    %2492 = vmatpush2.bf16.msra.mxu0 %v2276
    %2493 = vmatprep.mubr.bf16.mxu0 %v111
    %2494 = vmatmul.mubr.bf16.gmra.mxu0 %v110
    %v2495 = vpop.f32.mrf.mxu0
    %v2496 = vadd.f32 %v2455, %v2495
    %v2497 = vpop.f32.mrf.mxu0
    %v2498 = vadd.f32 %v2457, %v2497
    %v2499 = vpop.f32.mrf.mxu0
    %v2500 = vpop.f32.mrf.mxu0
    %2501 = vdwg.mxu0
    %2502 = vmatprep.subr.bf16.mxu0 %v2307
    %2503 = vmatpush1.bf16.msra.mxu0 %v2306
    %2504 = vmatprep.subr.bf16.mxu0 %v2305
    %2505 = vmatpush1.bf16.msra.mxu0 %v2304
    %2506 = vmatprep.subr.bf16.mxu0 %v2303
    %2507 = vmatpush1.bf16.msra.mxu0 %v2302
    %2508 = vmatprep.subr.bf16.mxu0 %v2301
    %2509 = vmatpush1.bf16.msra.mxu0 %v2300
    %2510 = vmatprep.subr.bf16.mxu0 %v2299
    %2511 = vmatpush1.bf16.msra.mxu0 %v2298
    %2512 = vmatprep.subr.bf16.mxu0 %v2297
    %2513 = vmatpush1.bf16.msra.mxu0 %v2296
    %2514 = vmatprep.subr.bf16.mxu0 %v2295
    %2515 = vmatpush1.bf16.msra.mxu0 %v2294
    %2516 = vmatprep.subr.bf16.mxu0 %v2293
    %2517 = vmatpush1.bf16.msra.mxu0 %v2292
    %2518 = vmatprep.subr.bf16.mxu0 %v2323
    %2519 = vmatpush2.bf16.msra.mxu0 %v2322
    %2520 = vmatprep.subr.bf16.mxu0 %v2321
    %2521 = vmatpush2.bf16.msra.mxu0 %v2320
    %2522 = vmatprep.subr.bf16.mxu0 %v2319
    %2523 = vmatpush2.bf16.msra.mxu0 %v2318
    %2524 = vmatprep.subr.bf16.mxu0 %v2317
    %2525 = vmatpush2.bf16.msra.mxu0 %v2316
    %2526 = vmatprep.subr.bf16.mxu0 %v2315
    %2527 = vmatpush2.bf16.msra.mxu0 %v2314
    %2528 = vmatprep.subr.bf16.mxu0 %v2313
    %2529 = vmatpush2.bf16.msra.mxu0 %v2312
    %2530 = vmatprep.subr.bf16.mxu0 %v2311
    %2531 = vmatpush2.bf16.msra.mxu0 %v2310
    %2532 = vmatprep.subr.bf16.mxu0 %v2309
    %2533 = vmatpush2.bf16.msra.mxu0 %v2308
    %2534 = vmatprep.mubr.bf16.mxu0 %v113
    %2535 = vmatmul.mubr.bf16.gmra.mxu0 %v112
    %v2536 = vpop.f32.mrf.mxu0
    %v2537 = vadd.f32 %v2496, %v2536
    %v2538 = vpop.f32.mrf.mxu0
    %v2539 = vadd.f32 %v2498, %v2538
    %v2540 = vpop.f32.mrf.mxu0
    %v2541 = vpop.f32.mrf.mxu0
    %2542 = vdwg.mxu0
    %v2543 = vpack.c.bf16 %v2537, %v2537
    %v2544 = vpack.c.bf16 %v2539, %v2539
    %2545 = vmatprep.subr.bf16.mxu0 %v982
    %2546 = vmatpush1.bf16.msra.mxu0 %v981
    %2547 = vmatprep.subr.bf16.mxu0 %v980
    %2548 = vmatpush1.bf16.msra.mxu0 %v979
    %2549 = vmatprep.subr.bf16.mxu0 %v978
    %2550 = vmatpush1.bf16.msra.mxu0 %v977
    %2551 = vmatprep.subr.bf16.mxu0 %v976
    %2552 = vmatpush1.bf16.msra.mxu0 %v975
    %2553 = vmatprep.subr.bf16.mxu0 %v974
    %2554 = vmatpush1.bf16.msra.mxu0 %v973
    %2555 = vmatprep.subr.bf16.mxu0 %v972
    %2556 = vmatpush1.bf16.msra.mxu0 %v971
    %2557 = vmatprep.subr.bf16.mxu0 %v970
    %2558 = vmatpush1.bf16.msra.mxu0 %v969
    %2559 = vmatprep.subr.bf16.mxu0 %v968
    %2560 = vmatpush1.bf16.msra.mxu0 %v967
    %2561 = vmatprep.subr.bf16.mxu0 %v998
    %2562 = vmatpush2.bf16.msra.mxu0 %v997
    %2563 = vmatprep.subr.bf16.mxu0 %v996
    %2564 = vmatpush2.bf16.msra.mxu0 %v995
    %2565 = vmatprep.subr.bf16.mxu0 %v994
    %2566 = vmatpush2.bf16.msra.mxu0 %v993
    %2567 = vmatprep.subr.bf16.mxu0 %v992
    %2568 = vmatpush2.bf16.msra.mxu0 %v991
    %2569 = vmatprep.subr.bf16.mxu0 %v990
    %2570 = vmatpush2.bf16.msra.mxu0 %v989
    %2571 = vmatprep.subr.bf16.mxu0 %v988
    %2572 = vmatpush2.bf16.msra.mxu0 %v987
    %2573 = vmatprep.subr.bf16.mxu0 %v986
    %2574 = vmatpush2.bf16.msra.mxu0 %v985
    %2575 = vmatprep.subr.bf16.mxu0 %v984
    %2576 = vmatpush2.bf16.msra.mxu0 %v983
    %2577 = vmatprep.mubr.bf16.mxu0 %v2544
    %2578 = vmatmul.mubr.bf16.gmra.mxu0 %v2543
    %v2579 = vpop.f32.mrf.mxu0
    %v2580 = vadd.f32 %v864, %v2579
    %v2581 = vpop.f32.mrf.mxu0
    %v2582 = vadd.f32 %v868, %v2581
    %v2583 = vpop.f32.mrf.mxu0
    %v2584 = vpop.f32.mrf.mxu0
    %2585 = vdwg.mxu0
    %v2586 = vmax.f32 %v2580, 0.0
    %v2587 = vmax.f32 %v2582, 0.0
    %v2588 = vadd.f32 %v1830, %v2586
    %v2589 = vadd.f32 %v1831, %v2587
    %v2590 = vld [vmem:[#allocation2 + $0x18] sm:$0xff]
    %v2591 = vld [vmem:[#allocation2 + $0x38] sm:$0xff]
    %v2592 = vld [vmem:[#allocation2 + $0x58] sm:$0xff]
    %v2593 = vld [vmem:[#allocation2 + $0x78] sm:$0xff]
    %v2594 = vld [vmem:[#allocation2 + $0x98] sm:$0xff]
    %v2595 = vld [vmem:[#allocation2 + $0xb8] sm:$0xff]
    %v2596 = vld [vmem:[#allocation2 + $0xd8] sm:$0xff]
    %v2597 = vld [vmem:[#allocation2 + $0xf8] sm:$0xff]
    %v2598 = vld [vmem:[#allocation2 + $0x118] sm:$0xff]
    %v2599 = vld [vmem:[#allocation2 + $0x138] sm:$0xff]
    %v2600 = vld [vmem:[#allocation2 + $0x158] sm:$0xff]
    %v2601 = vld [vmem:[#allocation2 + $0x178] sm:$0xff]
    %v2602 = vld [vmem:[#allocation2 + $0x198] sm:$0xff]
    %v2603 = vld [vmem:[#allocation2 + $0x1b8] sm:$0xff]
    %v2604 = vld [vmem:[#allocation2 + $0x1d8] sm:$0xff]
    %v2605 = vld [vmem:[#allocation2 + $0x1f8] sm:$0xff]
    %v2606 = vld [vmem:[#allocation2 + $0x218] sm:$0xff]
    %v2607 = vld [vmem:[#allocation2 + $0x238] sm:$0xff]
    %v2608 = vld [vmem:[#allocation2 + $0x258] sm:$0xff]
    %v2609 = vld [vmem:[#allocation2 + $0x278] sm:$0xff]
    %v2610 = vld [vmem:[#allocation2 + $0x298] sm:$0xff]
    %v2611 = vld [vmem:[#allocation2 + $0x2b8] sm:$0xff]
    %v2612 = vld [vmem:[#allocation2 + $0x2d8] sm:$0xff]
    %v2613 = vld [vmem:[#allocation2 + $0x2f8] sm:$0xff]
    %v2614 = vld [vmem:[#allocation2 + $0x318] sm:$0xff]
    %v2615 = vld [vmem:[#allocation2 + $0x338] sm:$0xff]
    %v2616 = vld [vmem:[#allocation2 + $0x358] sm:$0xff]
    %v2617 = vld [vmem:[#allocation2 + $0x378] sm:$0xff]
    %v2618 = vld [vmem:[#allocation2 + $0x398] sm:$0xff]
    %v2619 = vld [vmem:[#allocation2 + $0x3b8] sm:$0xff]
    %v2620 = vld [vmem:[#allocation2 + $0x3d8] sm:$0xff]
    %v2621 = vld [vmem:[#allocation2 + $0x3f8] sm:$0xff]
    %v2622 = vld [vmem:[#allocation2 + $0x418] sm:$0xff]
    %v2623 = vld [vmem:[#allocation2 + $0x438] sm:$0xff]
    %v2624 = vld [vmem:[#allocation2 + $0x458] sm:$0xff]
    %v2625 = vld [vmem:[#allocation2 + $0x478] sm:$0xff]
    %v2626 = vld [vmem:[#allocation2 + $0x498] sm:$0xff]
    %v2627 = vld [vmem:[#allocation2 + $0x4b8] sm:$0xff]
    %v2628 = vld [vmem:[#allocation2 + $0x4d8] sm:$0xff]
    %v2629 = vld [vmem:[#allocation2 + $0x4f8] sm:$0xff]
    %v2630 = vld [vmem:[#allocation2 + $0x518] sm:$0xff]
    %v2631 = vld [vmem:[#allocation2 + $0x538] sm:$0xff]
    %v2632 = vld [vmem:[#allocation2 + $0x558] sm:$0xff]
    %v2633 = vld [vmem:[#allocation2 + $0x578] sm:$0xff]
    %v2634 = vld [vmem:[#allocation2 + $0x598] sm:$0xff]
    %v2635 = vld [vmem:[#allocation2 + $0x5b8] sm:$0xff]
    %v2636 = vld [vmem:[#allocation2 + $0x5d8] sm:$0xff]
    %v2637 = vld [vmem:[#allocation2 + $0x5f8] sm:$0xff]
    %v2638 = vld [vmem:[#allocation2 + $0x618] sm:$0xff]
    %v2639 = vld [vmem:[#allocation2 + $0x638] sm:$0xff]
    %v2640 = vld [vmem:[#allocation2 + $0x658] sm:$0xff]
    %v2641 = vld [vmem:[#allocation2 + $0x678] sm:$0xff]
    %v2642 = vld [vmem:[#allocation2 + $0x698] sm:$0xff]
    %v2643 = vld [vmem:[#allocation2 + $0x6b8] sm:$0xff]
    %v2644 = vld [vmem:[#allocation2 + $0x6d8] sm:$0xff]
    %v2645 = vld [vmem:[#allocation2 + $0x6f8] sm:$0xff]
    %v2646 = vld [vmem:[#allocation2 + $0x718] sm:$0xff]
    %v2647 = vld [vmem:[#allocation2 + $0x738] sm:$0xff]
    %v2648 = vld [vmem:[#allocation2 + $0x758] sm:$0xff]
    %v2649 = vld [vmem:[#allocation2 + $0x778] sm:$0xff]
    %v2650 = vld [vmem:[#allocation2 + $0x798] sm:$0xff]
    %v2651 = vld [vmem:[#allocation2 + $0x7b8] sm:$0xff]
    %v2652 = vld [vmem:[#allocation2 + $0x7d8] sm:$0xff]
    %v2653 = vld [vmem:[#allocation2 + $0x7f8] sm:$0xff]
    %v2654 = vld [vmem:[#allocation2 + $0x818] sm:$0xff]
    %v2655 = vld [vmem:[#allocation2 + $0x838] sm:$0xff]
    %v2656 = vld [vmem:[#allocation2 + $0x858] sm:$0xff]
    %v2657 = vld [vmem:[#allocation2 + $0x878] sm:$0xff]
    %v2658 = vld [vmem:[#allocation2 + $0x898] sm:$0xff]
    %v2659 = vld [vmem:[#allocation2 + $0x8b8] sm:$0xff]
    %v2660 = vld [vmem:[#allocation2 + $0x8d8] sm:$0xff]
    %v2661 = vld [vmem:[#allocation2 + $0x8f8] sm:$0xff]
    %v2662 = vld [vmem:[#allocation2 + $0x918] sm:$0xff]
    %v2663 = vld [vmem:[#allocation2 + $0x938] sm:$0xff]
    %v2664 = vld [vmem:[#allocation2 + $0x958] sm:$0xff]
    %v2665 = vld [vmem:[#allocation2 + $0x978] sm:$0xff]
    %v2666 = vld [vmem:[#allocation2 + $0x998] sm:$0xff]
    %v2667 = vld [vmem:[#allocation2 + $0x9b8] sm:$0xff]
    %v2668 = vld [vmem:[#allocation2 + $0x9d8] sm:$0xff]
    %v2669 = vld [vmem:[#allocation2 + $0x9f8] sm:$0xff]
    %v2670 = vld [vmem:[#allocation2 + $0xa18] sm:$0xff]
    %v2671 = vld [vmem:[#allocation2 + $0xa38] sm:$0xff]
    %v2672 = vld [vmem:[#allocation2 + $0xa58] sm:$0xff]
    %v2673 = vld [vmem:[#allocation2 + $0xa78] sm:$0xff]
    %v2674 = vld [vmem:[#allocation2 + $0xa98] sm:$0xff]
    %v2675 = vld [vmem:[#allocation2 + $0xab8] sm:$0xff]
    %v2676 = vld [vmem:[#allocation2 + $0xad8] sm:$0xff]
    %v2677 = vld [vmem:[#allocation2 + $0xaf8] sm:$0xff]
    %v2678 = vld [vmem:[#allocation2 + $0xb18] sm:$0xff]
    %v2679 = vld [vmem:[#allocation2 + $0xb38] sm:$0xff]
    %v2680 = vld [vmem:[#allocation2 + $0xb58] sm:$0xff]
    %v2681 = vld [vmem:[#allocation2 + $0xb78] sm:$0xff]
    %v2682 = vld [vmem:[#allocation2 + $0xb98] sm:$0xff]
    %v2683 = vld [vmem:[#allocation2 + $0xbb8] sm:$0xff]
    %v2684 = vld [vmem:[#allocation2 + $0xbd8] sm:$0xff]
    %v2685 = vld [vmem:[#allocation2 + $0xbf8] sm:$0xff]
    %v2686 = vld [vmem:[#allocation4 + $0x6] sm:$0x3]
    %v2688 = vlaneseq
    %v2689 = vshrl.u32 %v2688, 7
    %v2690 = vsub.s32 0, %v2689
    %v2691 = vrot.slane %v2686, %v2690
    %v2692 = vlaneseq
    %v2693 = vshrl.u32 %v2692, 7
    %v2694 = vsub.s32 1, %v2693
    %v2695 = vrot.slane %v2686, %v2694
    %v2794 = vunpack.c.l.b16 %v2590
    %v2795 = vunpack.c.h.b16 %v2590
    %v2796 = vunpack.c.l.b16 %v2591
    %v2797 = vunpack.c.h.b16 %v2591
    %v2798 = vunpack.c.l.b16 %v2592
    %v2799 = vunpack.c.h.b16 %v2592
    %v2800 = vunpack.c.l.b16 %v2593
    %v2801 = vunpack.c.h.b16 %v2593
    %v2802 = vunpack.c.l.b16 %v2594
    %v2803 = vunpack.c.h.b16 %v2594
    %v2804 = vunpack.c.l.b16 %v2595
    %v2805 = vunpack.c.h.b16 %v2595
    %v2806 = vunpack.c.l.b16 %v2596
    %v2807 = vunpack.c.h.b16 %v2596
    %v2808 = vunpack.c.l.b16 %v2597
    %v2809 = vunpack.c.h.b16 %v2597
    %v2810 = vunpack.c.l.b16 %v2598
    %v2811 = vunpack.c.h.b16 %v2598
    %v2812 = vunpack.c.l.b16 %v2599
    %v2813 = vunpack.c.h.b16 %v2599
    %v2814 = vunpack.c.l.b16 %v2600
    %v2815 = vunpack.c.h.b16 %v2600
    %v2816 = vunpack.c.l.b16 %v2601
    %v2817 = vunpack.c.h.b16 %v2601
    %v2818 = vunpack.c.l.b16 %v2602
    %v2819 = vunpack.c.h.b16 %v2602
    %v2820 = vunpack.c.l.b16 %v2603
    %v2821 = vunpack.c.h.b16 %v2603
    %v2822 = vunpack.c.l.b16 %v2604
    %v2823 = vunpack.c.h.b16 %v2604
    %v2824 = vunpack.c.l.b16 %v2605
    %v2825 = vunpack.c.h.b16 %v2605
    %v2826 = vunpack.c.l.b16 %v2606
    %v2827 = vunpack.c.h.b16 %v2606
    %v2828 = vunpack.c.l.b16 %v2607
    %v2829 = vunpack.c.h.b16 %v2607
    %v2830 = vunpack.c.l.b16 %v2608
    %v2831 = vunpack.c.h.b16 %v2608
    %v2832 = vunpack.c.l.b16 %v2609
    %v2833 = vunpack.c.h.b16 %v2609
    %v2834 = vunpack.c.l.b16 %v2610
    %v2835 = vunpack.c.h.b16 %v2610
    %v2836 = vunpack.c.l.b16 %v2611
    %v2837 = vunpack.c.h.b16 %v2611
    %v2838 = vunpack.c.l.b16 %v2612
    %v2839 = vunpack.c.h.b16 %v2612
    %v2840 = vunpack.c.l.b16 %v2613
    %v2841 = vunpack.c.h.b16 %v2613
    %v2842 = vunpack.c.l.b16 %v2614
    %v2843 = vunpack.c.h.b16 %v2614
    %v2844 = vunpack.c.l.b16 %v2615
    %v2845 = vunpack.c.h.b16 %v2615
    %v2846 = vunpack.c.l.b16 %v2616
    %v2847 = vunpack.c.h.b16 %v2616
    %v2848 = vunpack.c.l.b16 %v2617
    %v2849 = vunpack.c.h.b16 %v2617
    %v2850 = vunpack.c.l.b16 %v2618
    %v2851 = vunpack.c.h.b16 %v2618
    %v2852 = vunpack.c.l.b16 %v2619
    %v2853 = vunpack.c.h.b16 %v2619
    %v2854 = vunpack.c.l.b16 %v2620
    %v2855 = vunpack.c.h.b16 %v2620
    %v2856 = vunpack.c.l.b16 %v2621
    %v2857 = vunpack.c.h.b16 %v2621
    %v2858 = vunpack.c.l.b16 %v2622
    %v2859 = vunpack.c.h.b16 %v2622
    %v2860 = vunpack.c.l.b16 %v2623
    %v2861 = vunpack.c.h.b16 %v2623
    %v2862 = vunpack.c.l.b16 %v2624
    %v2863 = vunpack.c.h.b16 %v2624
    %v2864 = vunpack.c.l.b16 %v2625
    %v2865 = vunpack.c.h.b16 %v2625
    %v2866 = vunpack.c.l.b16 %v2626
    %v2867 = vunpack.c.h.b16 %v2626
    %v2868 = vunpack.c.l.b16 %v2627
    %v2869 = vunpack.c.h.b16 %v2627
    %v2870 = vunpack.c.l.b16 %v2628
    %v2871 = vunpack.c.h.b16 %v2628
    %v2872 = vunpack.c.l.b16 %v2629
    %v2873 = vunpack.c.h.b16 %v2629
    %v2874 = vunpack.c.l.b16 %v2630
    %v2875 = vunpack.c.h.b16 %v2630
    %v2876 = vunpack.c.l.b16 %v2631
    %v2877 = vunpack.c.h.b16 %v2631
    %v2878 = vunpack.c.l.b16 %v2632
    %v2879 = vunpack.c.h.b16 %v2632
    %v2880 = vunpack.c.l.b16 %v2633
    %v2881 = vunpack.c.h.b16 %v2633
    %v2882 = vunpack.c.l.b16 %v2634
    %v2883 = vunpack.c.h.b16 %v2634
    %v2884 = vunpack.c.l.b16 %v2635
    %v2885 = vunpack.c.h.b16 %v2635
    %v2886 = vunpack.c.l.b16 %v2636
    %v2887 = vunpack.c.h.b16 %v2636
    %v2888 = vunpack.c.l.b16 %v2637
    %v2889 = vunpack.c.h.b16 %v2637
    %v2890 = vunpack.c.l.b16 %v2638
    %v2891 = vunpack.c.h.b16 %v2638
    %v2892 = vunpack.c.l.b16 %v2639
    %v2893 = vunpack.c.h.b16 %v2639
    %v2894 = vunpack.c.l.b16 %v2640
    %v2895 = vunpack.c.h.b16 %v2640
    %v2896 = vunpack.c.l.b16 %v2641
    %v2897 = vunpack.c.h.b16 %v2641
    %v2898 = vunpack.c.l.b16 %v2642
    %v2899 = vunpack.c.h.b16 %v2642
    %v2900 = vunpack.c.l.b16 %v2643
    %v2901 = vunpack.c.h.b16 %v2643
    %v2902 = vunpack.c.l.b16 %v2644
    %v2903 = vunpack.c.h.b16 %v2644
    %v2904 = vunpack.c.l.b16 %v2645
    %v2905 = vunpack.c.h.b16 %v2645
    %v2906 = vunpack.c.l.b16 %v2646
    %v2907 = vunpack.c.h.b16 %v2646
    %v2908 = vunpack.c.l.b16 %v2647
    %v2909 = vunpack.c.h.b16 %v2647
    %v2910 = vunpack.c.l.b16 %v2648
    %v2911 = vunpack.c.h.b16 %v2648
    %v2912 = vunpack.c.l.b16 %v2649
    %v2913 = vunpack.c.h.b16 %v2649
    %v2914 = vunpack.c.l.b16 %v2650
    %v2915 = vunpack.c.h.b16 %v2650
    %v2916 = vunpack.c.l.b16 %v2651
    %v2917 = vunpack.c.h.b16 %v2651
    %v2918 = vunpack.c.l.b16 %v2652
    %v2919 = vunpack.c.h.b16 %v2652
    %v2920 = vunpack.c.l.b16 %v2653
    %v2921 = vunpack.c.h.b16 %v2653
    %v2922 = vunpack.c.l.b16 %v2654
    %v2923 = vunpack.c.h.b16 %v2654
    %v2924 = vunpack.c.l.b16 %v2655
    %v2925 = vunpack.c.h.b16 %v2655
    %v2926 = vunpack.c.l.b16 %v2656
    %v2927 = vunpack.c.h.b16 %v2656
    %v2928 = vunpack.c.l.b16 %v2657
    %v2929 = vunpack.c.h.b16 %v2657
    %v2930 = vunpack.c.l.b16 %v2658
    %v2931 = vunpack.c.h.b16 %v2658
    %v2932 = vunpack.c.l.b16 %v2659
    %v2933 = vunpack.c.h.b16 %v2659
    %v2934 = vunpack.c.l.b16 %v2660
    %v2935 = vunpack.c.h.b16 %v2660
    %v2936 = vunpack.c.l.b16 %v2661
    %v2937 = vunpack.c.h.b16 %v2661
    %v2938 = vunpack.c.l.b16 %v2662
    %v2939 = vunpack.c.h.b16 %v2662
    %v2940 = vunpack.c.l.b16 %v2663
    %v2941 = vunpack.c.h.b16 %v2663
    %v2942 = vunpack.c.l.b16 %v2664
    %v2943 = vunpack.c.h.b16 %v2664
    %v2944 = vunpack.c.l.b16 %v2665
    %v2945 = vunpack.c.h.b16 %v2665
    %v2946 = vunpack.c.l.b16 %v2666
    %v2947 = vunpack.c.h.b16 %v2666
    %v2948 = vunpack.c.l.b16 %v2667
    %v2949 = vunpack.c.h.b16 %v2667
    %v2950 = vunpack.c.l.b16 %v2668
    %v2951 = vunpack.c.h.b16 %v2668
    %v2952 = vunpack.c.l.b16 %v2669
    %v2953 = vunpack.c.h.b16 %v2669
    %v2954 = vunpack.c.l.b16 %v2670
    %v2955 = vunpack.c.h.b16 %v2670
    %v2956 = vunpack.c.l.b16 %v2671
    %v2957 = vunpack.c.h.b16 %v2671
    %v2958 = vunpack.c.l.b16 %v2672
    %v2959 = vunpack.c.h.b16 %v2672
    %v2960 = vunpack.c.l.b16 %v2673
    %v2961 = vunpack.c.h.b16 %v2673
    %v2962 = vunpack.c.l.b16 %v2674
    %v2963 = vunpack.c.h.b16 %v2674
    %v2964 = vunpack.c.l.b16 %v2675
    %v2965 = vunpack.c.h.b16 %v2675
    %v2966 = vunpack.c.l.b16 %v2676
    %v2967 = vunpack.c.h.b16 %v2676
    %v2968 = vunpack.c.l.b16 %v2677
    %v2969 = vunpack.c.h.b16 %v2677
    %v2970 = vunpack.c.l.b16 %v2678
    %v2971 = vunpack.c.h.b16 %v2678
    %v2972 = vunpack.c.l.b16 %v2679
    %v2973 = vunpack.c.h.b16 %v2679
    %v2974 = vunpack.c.l.b16 %v2680
    %v2975 = vunpack.c.h.b16 %v2680
    %v2976 = vunpack.c.l.b16 %v2681
    %v2977 = vunpack.c.h.b16 %v2681
    %v2978 = vunpack.c.l.b16 %v2682
    %v2979 = vunpack.c.h.b16 %v2682
    %v2980 = vunpack.c.l.b16 %v2683
    %v2981 = vunpack.c.h.b16 %v2683
    %v2982 = vunpack.c.l.b16 %v2684
    %v2983 = vunpack.c.h.b16 %v2684
    %v2984 = vunpack.c.l.b16 %v2685
    %v2985 = vunpack.c.h.b16 %v2685
    %v2986 = vpack.c.b16 %v2796, %v2794
    %v2987 = vpack.c.b16 %v2797, %v2795
    %v2988 = vpack.c.b16 %v2800, %v2798
    %v2989 = vpack.c.b16 %v2801, %v2799
    %v2990 = vpack.c.b16 %v2804, %v2802
    %v2991 = vpack.c.b16 %v2805, %v2803
    %v2992 = vpack.c.b16 %v2808, %v2806
    %v2993 = vpack.c.b16 %v2809, %v2807
    %v2994 = vpack.c.b16 %v2812, %v2810
    %v2995 = vpack.c.b16 %v2813, %v2811
    %v2996 = vpack.c.b16 %v2816, %v2814
    %v2997 = vpack.c.b16 %v2817, %v2815
    %v2998 = vpack.c.b16 %v2820, %v2818
    %v2999 = vpack.c.b16 %v2821, %v2819
    %v3000 = vpack.c.b16 %v2824, %v2822
    %v3001 = vpack.c.b16 %v2825, %v2823
    %v3002 = vpack.c.b16 %v2828, %v2826
    %v3003 = vpack.c.b16 %v2829, %v2827
    %v3004 = vpack.c.b16 %v2832, %v2830
    %v3005 = vpack.c.b16 %v2833, %v2831
    %v3006 = vpack.c.b16 %v2836, %v2834
    %v3007 = vpack.c.b16 %v2837, %v2835
    %v3008 = vpack.c.b16 %v2840, %v2838
    %v3009 = vpack.c.b16 %v2841, %v2839
    %v3010 = vpack.c.b16 %v2844, %v2842
    %v3011 = vpack.c.b16 %v2845, %v2843
    %v3012 = vpack.c.b16 %v2848, %v2846
    %v3013 = vpack.c.b16 %v2849, %v2847
    %v3014 = vpack.c.b16 %v2852, %v2850
    %v3015 = vpack.c.b16 %v2853, %v2851
    %v3016 = vpack.c.b16 %v2856, %v2854
    %v3017 = vpack.c.b16 %v2857, %v2855
    %v3018 = vpack.c.b16 %v2860, %v2858
    %v3019 = vpack.c.b16 %v2861, %v2859
    %v3020 = vpack.c.b16 %v2864, %v2862
    %v3021 = vpack.c.b16 %v2865, %v2863
    %v3022 = vpack.c.b16 %v2868, %v2866
    %v3023 = vpack.c.b16 %v2869, %v2867
    %v3024 = vpack.c.b16 %v2872, %v2870
    %v3025 = vpack.c.b16 %v2873, %v2871
    %v3026 = vpack.c.b16 %v2876, %v2874
    %v3027 = vpack.c.b16 %v2877, %v2875
    %v3028 = vpack.c.b16 %v2880, %v2878
    %v3029 = vpack.c.b16 %v2881, %v2879
    %v3030 = vpack.c.b16 %v2884, %v2882
    %v3031 = vpack.c.b16 %v2885, %v2883
    %v3032 = vpack.c.b16 %v2888, %v2886
    %v3033 = vpack.c.b16 %v2889, %v2887
    %v3034 = vpack.c.b16 %v2892, %v2890
    %v3035 = vpack.c.b16 %v2893, %v2891
    %v3036 = vpack.c.b16 %v2896, %v2894
    %v3037 = vpack.c.b16 %v2897, %v2895
    %v3038 = vpack.c.b16 %v2900, %v2898
    %v3039 = vpack.c.b16 %v2901, %v2899
    %v3040 = vpack.c.b16 %v2904, %v2902
    %v3041 = vpack.c.b16 %v2905, %v2903
    %v3042 = vpack.c.b16 %v2908, %v2906
    %v3043 = vpack.c.b16 %v2909, %v2907
    %v3044 = vpack.c.b16 %v2912, %v2910
    %v3045 = vpack.c.b16 %v2913, %v2911
    %v3046 = vpack.c.b16 %v2916, %v2914
    %v3047 = vpack.c.b16 %v2917, %v2915
    %v3048 = vpack.c.b16 %v2920, %v2918
    %v3049 = vpack.c.b16 %v2921, %v2919
    %v3050 = vpack.c.b16 %v2924, %v2922
    %v3051 = vpack.c.b16 %v2925, %v2923
    %v3052 = vpack.c.b16 %v2928, %v2926
    %v3053 = vpack.c.b16 %v2929, %v2927
    %v3054 = vpack.c.b16 %v2932, %v2930
    %v3055 = vpack.c.b16 %v2933, %v2931
    %v3056 = vpack.c.b16 %v2936, %v2934
    %v3057 = vpack.c.b16 %v2937, %v2935
    %v3058 = vpack.c.b16 %v2940, %v2938
    %v3059 = vpack.c.b16 %v2941, %v2939
    %v3060 = vpack.c.b16 %v2944, %v2942
    %v3061 = vpack.c.b16 %v2945, %v2943
    %v3062 = vpack.c.b16 %v2948, %v2946
    %v3063 = vpack.c.b16 %v2949, %v2947
    %v3064 = vpack.c.b16 %v2952, %v2950
    %v3065 = vpack.c.b16 %v2953, %v2951
    %v3066 = vpack.c.b16 %v2956, %v2954
    %v3067 = vpack.c.b16 %v2957, %v2955
    %v3068 = vpack.c.b16 %v2960, %v2958
    %v3069 = vpack.c.b16 %v2961, %v2959
    %v3070 = vpack.c.b16 %v2964, %v2962
    %v3071 = vpack.c.b16 %v2965, %v2963
    %v3072 = vpack.c.b16 %v2968, %v2966
    %v3073 = vpack.c.b16 %v2969, %v2967
    %v3074 = vpack.c.b16 %v2972, %v2970
    %v3075 = vpack.c.b16 %v2973, %v2971
    %v3076 = vpack.c.b16 %v2976, %v2974
    %v3077 = vpack.c.b16 %v2977, %v2975
    %v3078 = vpack.c.b16 %v2980, %v2978
    %v3079 = vpack.c.b16 %v2981, %v2979
    %v3080 = vpack.c.b16 %v2984, %v2982
    %v3081 = vpack.c.b16 %v2985, %v2983
    %3178 = vmatprep.subr.bf16.mxu0 %v3001
    %3179 = vmatpush1.bf16.msra.mxu0 %v3000
    %3180 = vmatprep.subr.bf16.mxu0 %v2999
    %3181 = vmatpush1.bf16.msra.mxu0 %v2998
    %3182 = vmatprep.subr.bf16.mxu0 %v2997
    %3183 = vmatpush1.bf16.msra.mxu0 %v2996
    %3184 = vmatprep.subr.bf16.mxu0 %v2995
    %3185 = vmatpush1.bf16.msra.mxu0 %v2994
    %3186 = vmatprep.subr.bf16.mxu0 %v2993
    %3187 = vmatpush1.bf16.msra.mxu0 %v2992
    %3188 = vmatprep.subr.bf16.mxu0 %v2991
    %3189 = vmatpush1.bf16.msra.mxu0 %v2990
    %3190 = vmatprep.subr.bf16.mxu0 %v2989
    %3191 = vmatpush1.bf16.msra.mxu0 %v2988
    %3192 = vmatprep.subr.bf16.mxu0 %v2987
    %3193 = vmatpush1.bf16.msra.mxu0 %v2986
    %3194 = vmatprep.subr.bf16.mxu0 %v3017
    %3195 = vmatpush2.bf16.msra.mxu0 %v3016
    %3196 = vmatprep.subr.bf16.mxu0 %v3015
    %3197 = vmatpush2.bf16.msra.mxu0 %v3014
    %3198 = vmatprep.subr.bf16.mxu0 %v3013
    %3199 = vmatpush2.bf16.msra.mxu0 %v3012
    %3200 = vmatprep.subr.bf16.mxu0 %v3011
    %3201 = vmatpush2.bf16.msra.mxu0 %v3010
    %3202 = vmatprep.subr.bf16.mxu0 %v3009
    %3203 = vmatpush2.bf16.msra.mxu0 %v3008
    %3204 = vmatprep.subr.bf16.mxu0 %v3007
    %3205 = vmatpush2.bf16.msra.mxu0 %v3006
    %3206 = vmatprep.subr.bf16.mxu0 %v3005
    %3207 = vmatpush2.bf16.msra.mxu0 %v3004
    %3208 = vmatprep.subr.bf16.mxu0 %v3003
    %3209 = vmatpush2.bf16.msra.mxu0 %v3002
    %3210 = vmatprep.mubr.bf16.mxu0 %v109
    %3211 = vmatmul.mubr.bf16.gmra.mxu0 %v108
    %v3212 = vpop.f32.mrf.mxu0
    %v3213 = vadd.f32 %v2691, %v3212
    %v3214 = vpop.f32.mrf.mxu0
    %v3215 = vadd.f32 %v2695, %v3214
    %v3216 = vpop.f32.mrf.mxu0
    %v3217 = vpop.f32.mrf.mxu0
    %3218 = vdwg.mxu0
    %3219 = vmatprep.subr.bf16.mxu0 %v3033
    %3220 = vmatpush1.bf16.msra.mxu0 %v3032
    %3221 = vmatprep.subr.bf16.mxu0 %v3031
    %3222 = vmatpush1.bf16.msra.mxu0 %v3030
    %3223 = vmatprep.subr.bf16.mxu0 %v3029
    %3224 = vmatpush1.bf16.msra.mxu0 %v3028
    %3225 = vmatprep.subr.bf16.mxu0 %v3027
    %3226 = vmatpush1.bf16.msra.mxu0 %v3026
    %3227 = vmatprep.subr.bf16.mxu0 %v3025
    %3228 = vmatpush1.bf16.msra.mxu0 %v3024
    %3229 = vmatprep.subr.bf16.mxu0 %v3023
    %3230 = vmatpush1.bf16.msra.mxu0 %v3022
    %3231 = vmatprep.subr.bf16.mxu0 %v3021
    %3232 = vmatpush1.bf16.msra.mxu0 %v3020
    %3233 = vmatprep.subr.bf16.mxu0 %v3019
    %3234 = vmatpush1.bf16.msra.mxu0 %v3018
    %3235 = vmatprep.subr.bf16.mxu0 %v3049
    %3236 = vmatpush2.bf16.msra.mxu0 %v3048
    %3237 = vmatprep.subr.bf16.mxu0 %v3047
    %3238 = vmatpush2.bf16.msra.mxu0 %v3046
    %3239 = vmatprep.subr.bf16.mxu0 %v3045
    %3240 = vmatpush2.bf16.msra.mxu0 %v3044
    %3241 = vmatprep.subr.bf16.mxu0 %v3043
    %3242 = vmatpush2.bf16.msra.mxu0 %v3042
    %3243 = vmatprep.subr.bf16.mxu0 %v3041
    %3244 = vmatpush2.bf16.msra.mxu0 %v3040
    %3245 = vmatprep.subr.bf16.mxu0 %v3039
    %3246 = vmatpush2.bf16.msra.mxu0 %v3038
    %3247 = vmatprep.subr.bf16.mxu0 %v3037
    %3248 = vmatpush2.bf16.msra.mxu0 %v3036
    %3249 = vmatprep.subr.bf16.mxu0 %v3035
    %3250 = vmatpush2.bf16.msra.mxu0 %v3034
    %3251 = vmatprep.mubr.bf16.mxu0 %v111
    %3252 = vmatmul.mubr.bf16.gmra.mxu0 %v110
    %v3253 = vpop.f32.mrf.mxu0
    %v3254 = vadd.f32 %v3213, %v3253
    %v3255 = vpop.f32.mrf.mxu0
    %v3256 = vadd.f32 %v3215, %v3255
    %v3257 = vpop.f32.mrf.mxu0
    %v3258 = vpop.f32.mrf.mxu0
    %3259 = vdwg.mxu0
    %3260 = vmatprep.subr.bf16.mxu0 %v3065
    %3261 = vmatpush1.bf16.msra.mxu0 %v3064
    %3262 = vmatprep.subr.bf16.mxu0 %v3063
    %3263 = vmatpush1.bf16.msra.mxu0 %v3062
    %3264 = vmatprep.subr.bf16.mxu0 %v3061
    %3265 = vmatpush1.bf16.msra.mxu0 %v3060
    %3266 = vmatprep.subr.bf16.mxu0 %v3059
    %3267 = vmatpush1.bf16.msra.mxu0 %v3058
    %3268 = vmatprep.subr.bf16.mxu0 %v3057
    %3269 = vmatpush1.bf16.msra.mxu0 %v3056
    %3270 = vmatprep.subr.bf16.mxu0 %v3055
    %3271 = vmatpush1.bf16.msra.mxu0 %v3054
    %3272 = vmatprep.subr.bf16.mxu0 %v3053
    %3273 = vmatpush1.bf16.msra.mxu0 %v3052
    %3274 = vmatprep.subr.bf16.mxu0 %v3051
    %3275 = vmatpush1.bf16.msra.mxu0 %v3050
    %3276 = vmatprep.subr.bf16.mxu0 %v3081
    %3277 = vmatpush2.bf16.msra.mxu0 %v3080
    %3278 = vmatprep.subr.bf16.mxu0 %v3079
    %3279 = vmatpush2.bf16.msra.mxu0 %v3078
    %3280 = vmatprep.subr.bf16.mxu0 %v3077
    %3281 = vmatpush2.bf16.msra.mxu0 %v3076
    %3282 = vmatprep.subr.bf16.mxu0 %v3075
    %3283 = vmatpush2.bf16.msra.mxu0 %v3074
    %3284 = vmatprep.subr.bf16.mxu0 %v3073
    %3285 = vmatpush2.bf16.msra.mxu0 %v3072
    %3286 = vmatprep.subr.bf16.mxu0 %v3071
    %3287 = vmatpush2.bf16.msra.mxu0 %v3070
    %3288 = vmatprep.subr.bf16.mxu0 %v3069
    %3289 = vmatpush2.bf16.msra.mxu0 %v3068
    %3290 = vmatprep.subr.bf16.mxu0 %v3067
    %3291 = vmatpush2.bf16.msra.mxu0 %v3066
    %3292 = vmatprep.mubr.bf16.mxu0 %v113
    %3293 = vmatmul.mubr.bf16.gmra.mxu0 %v112
    %v3294 = vpop.f32.mrf.mxu0
    %v3295 = vadd.f32 %v3254, %v3294
    %v3296 = vpop.f32.mrf.mxu0
    %v3297 = vadd.f32 %v3256, %v3296
    %v3298 = vpop.f32.mrf.mxu0
    %v3299 = vpop.f32.mrf.mxu0
    %3300 = vdwg.mxu0
    %v3301 = vpack.c.bf16 %v3295, %v3295
    %v3302 = vpack.c.bf16 %v3297, %v3297
    %3303 = vmatprep.subr.bf16.mxu0 %v982
    %3304 = vmatpush1.bf16.msra.mxu0 %v981
    %3305 = vmatprep.subr.bf16.mxu0 %v980
    %3306 = vmatpush1.bf16.msra.mxu0 %v979
    %3307 = vmatprep.subr.bf16.mxu0 %v978
    %3308 = vmatpush1.bf16.msra.mxu0 %v977
    %3309 = vmatprep.subr.bf16.mxu0 %v976
    %3310 = vmatpush1.bf16.msra.mxu0 %v975
    %3311 = vmatprep.subr.bf16.mxu0 %v974
    %3312 = vmatpush1.bf16.msra.mxu0 %v973
    %3313 = vmatprep.subr.bf16.mxu0 %v972
    %3314 = vmatpush1.bf16.msra.mxu0 %v971
    %3315 = vmatprep.subr.bf16.mxu0 %v970
    %3316 = vmatpush1.bf16.msra.mxu0 %v969
    %3317 = vmatprep.subr.bf16.mxu0 %v968
    %3318 = vmatpush1.bf16.msra.mxu0 %v967
    %3319 = vmatprep.subr.bf16.mxu0 %v998
    %3320 = vmatpush2.bf16.msra.mxu0 %v997
    %3321 = vmatprep.subr.bf16.mxu0 %v996
    %3322 = vmatpush2.bf16.msra.mxu0 %v995
    %3323 = vmatprep.subr.bf16.mxu0 %v994
    %3324 = vmatpush2.bf16.msra.mxu0 %v993
    %3325 = vmatprep.subr.bf16.mxu0 %v992
    %3326 = vmatpush2.bf16.msra.mxu0 %v991
    %3327 = vmatprep.subr.bf16.mxu0 %v990
    %3328 = vmatpush2.bf16.msra.mxu0 %v989
    %3329 = vmatprep.subr.bf16.mxu0 %v988
    %3330 = vmatpush2.bf16.msra.mxu0 %v987
    %3331 = vmatprep.subr.bf16.mxu0 %v986
    %3332 = vmatpush2.bf16.msra.mxu0 %v985
    %3333 = vmatprep.subr.bf16.mxu0 %v984
    %3334 = vmatpush2.bf16.msra.mxu0 %v983
    %3335 = vmatprep.mubr.bf16.mxu0 %v3302
    %3336 = vmatmul.mubr.bf16.gmra.mxu0 %v3301
    %v3337 = vpop.f32.mrf.mxu0
    %v3338 = vadd.f32 %v864, %v3337
    %v3339 = vpop.f32.mrf.mxu0
    %v3340 = vadd.f32 %v868, %v3339
    %v3341 = vpop.f32.mrf.mxu0
    %v3342 = vpop.f32.mrf.mxu0
    %3343 = vdwg.mxu0
    %v3344 = vmax.f32 %v3338, 0.0
    %v3345 = vmax.f32 %v3340, 0.0
    %v3346 = vadd.f32 %v2588, %v3344
    %v3347 = vadd.f32 %v2589, %v3345
    %v3348 = vmul.f32 %v3346, 0.25
    %v3349 = vmul.f32 %v3347, 0.25
    %v3350 = vpack.c.bf16 %v3348, %v3348
    %v3351 = vpack.c.bf16 %v3349, %v3349
    %v3352 = vld [vmem:[#allocation9] sm:$0xff]
    %v3353 = vld [vmem:[#allocation9 + $0x8] sm:$0xff]
    %v3354 = vld [vmem:[#allocation9 + $0x10] sm:$0xff]
    %v3355 = vld [vmem:[#allocation9 + $0x18] sm:$0xff]
    %v3356 = vld [vmem:[#allocation9 + $0x20] sm:$0xff]
    %v3357 = vld [vmem:[#allocation9 + $0x28] sm:$0xff]
    %v3358 = vld [vmem:[#allocation9 + $0x30] sm:$0xff]
    %v3359 = vld [vmem:[#allocation9 + $0x38] sm:$0xff]
    %v3360 = vld [vmem:[#allocation9 + $0x40] sm:$0xff]
    %v3361 = vld [vmem:[#allocation9 + $0x48] sm:$0xff]
    %v3362 = vld [vmem:[#allocation9 + $0x50] sm:$0xff]
    %v3363 = vld [vmem:[#allocation9 + $0x58] sm:$0xff]
    %v3364 = vld [vmem:[#allocation9 + $0x60] sm:$0xff]
    %v3365 = vld [vmem:[#allocation9 + $0x68] sm:$0xff]
    %v3366 = vld [vmem:[#allocation9 + $0x70] sm:$0xff]
    %v3367 = vld [vmem:[#allocation9 + $0x78] sm:$0xff]
    %v3368 = vld [vmem:[#allocation9 + $0x80] sm:$0xff]
    %v3369 = vld [vmem:[#allocation9 + $0x88] sm:$0xff]
    %v3370 = vld [vmem:[#allocation9 + $0x90] sm:$0xff]
    %v3371 = vld [vmem:[#allocation9 + $0x98] sm:$0xff]
    %v3372 = vld [vmem:[#allocation9 + $0xa0] sm:$0xff]
    %v3373 = vld [vmem:[#allocation9 + $0xa8] sm:$0xff]
    %v3374 = vld [vmem:[#allocation9 + $0xb0] sm:$0xff]
    %v3375 = vld [vmem:[#allocation9 + $0xb8] sm:$0xff]
    %v3376 = vld [vmem:[#allocation9 + $0xc0] sm:$0xff]
    %v3377 = vld [vmem:[#allocation9 + $0xc8] sm:$0xff]
    %v3378 = vld [vmem:[#allocation9 + $0xd0] sm:$0xff]
    %v3379 = vld [vmem:[#allocation9 + $0xd8] sm:$0xff]
    %v3380 = vld [vmem:[#allocation9 + $0xe0] sm:$0xff]
    %v3381 = vld [vmem:[#allocation9 + $0xe8] sm:$0xff]
    %v3382 = vld [vmem:[#allocation9 + $0xf0] sm:$0xff]
    %v3383 = vld [vmem:[#allocation9 + $0xf8] sm:$0xff]
    %v3384 = vld [vmem:[#allocation10] sm:$0x3]
    %v3386 = vlaneseq
    %v3387 = vshrl.u32 %v3386, 7
    %v3388 = vsub.s32 0, %v3387
    %v3389 = vrot.slane %v3384, %v3388
    %v3390 = vlaneseq
    %v3391 = vshrl.u32 %v3390, 7
    %v3392 = vsub.s32 1, %v3391
    %v3393 = vrot.slane %v3384, %v3392
    %v3428 = vunpack.c.l.b16 %v3352
    %v3429 = vunpack.c.h.b16 %v3352
    %v3430 = vunpack.c.l.b16 %v3353
    %v3431 = vunpack.c.h.b16 %v3353
    %v3432 = vunpack.c.l.b16 %v3354
    %v3433 = vunpack.c.h.b16 %v3354
    %v3434 = vunpack.c.l.b16 %v3355
    %v3435 = vunpack.c.h.b16 %v3355
    %v3436 = vunpack.c.l.b16 %v3356
    %v3437 = vunpack.c.h.b16 %v3356
    %v3438 = vunpack.c.l.b16 %v3357
    %v3439 = vunpack.c.h.b16 %v3357
    %v3440 = vunpack.c.l.b16 %v3358
    %v3441 = vunpack.c.h.b16 %v3358
    %v3442 = vunpack.c.l.b16 %v3359
    %v3443 = vunpack.c.h.b16 %v3359
    %v3444 = vunpack.c.l.b16 %v3360
    %v3445 = vunpack.c.h.b16 %v3360
    %v3446 = vunpack.c.l.b16 %v3361
    %v3447 = vunpack.c.h.b16 %v3361
    %v3448 = vunpack.c.l.b16 %v3362
    %v3449 = vunpack.c.h.b16 %v3362
    %v3450 = vunpack.c.l.b16 %v3363
    %v3451 = vunpack.c.h.b16 %v3363
    %v3452 = vunpack.c.l.b16 %v3364
    %v3453 = vunpack.c.h.b16 %v3364
    %v3454 = vunpack.c.l.b16 %v3365
    %v3455 = vunpack.c.h.b16 %v3365
    %v3456 = vunpack.c.l.b16 %v3366
    %v3457 = vunpack.c.h.b16 %v3366
    %v3458 = vunpack.c.l.b16 %v3367
    %v3459 = vunpack.c.h.b16 %v3367
    %v3460 = vunpack.c.l.b16 %v3368
    %v3461 = vunpack.c.h.b16 %v3368
    %v3462 = vunpack.c.l.b16 %v3369
    %v3463 = vunpack.c.h.b16 %v3369
    %v3464 = vunpack.c.l.b16 %v3370
    %v3465 = vunpack.c.h.b16 %v3370
    %v3466 = vunpack.c.l.b16 %v3371
    %v3467 = vunpack.c.h.b16 %v3371
    %v3468 = vunpack.c.l.b16 %v3372
    %v3469 = vunpack.c.h.b16 %v3372
    %v3470 = vunpack.c.l.b16 %v3373
    %v3471 = vunpack.c.h.b16 %v3373
    %v3472 = vunpack.c.l.b16 %v3374
    %v3473 = vunpack.c.h.b16 %v3374
    %v3474 = vunpack.c.l.b16 %v3375
    %v3475 = vunpack.c.h.b16 %v3375
    %v3476 = vunpack.c.l.b16 %v3376
    %v3477 = vunpack.c.h.b16 %v3376
    %v3478 = vunpack.c.l.b16 %v3377
    %v3479 = vunpack.c.h.b16 %v3377
    %v3480 = vunpack.c.l.b16 %v3378
    %v3481 = vunpack.c.h.b16 %v3378
    %v3482 = vunpack.c.l.b16 %v3379
    %v3483 = vunpack.c.h.b16 %v3379
    %v3484 = vunpack.c.l.b16 %v3380
    %v3485 = vunpack.c.h.b16 %v3380
    %v3486 = vunpack.c.l.b16 %v3381
    %v3487 = vunpack.c.h.b16 %v3381
    %v3488 = vunpack.c.l.b16 %v3382
    %v3489 = vunpack.c.h.b16 %v3382
    %v3490 = vunpack.c.l.b16 %v3383
    %v3491 = vunpack.c.h.b16 %v3383
    %v3492 = vpack.c.b16 %v3430, %v3428
    %v3493 = vpack.c.b16 %v3431, %v3429
    %v3494 = vpack.c.b16 %v3434, %v3432
    %v3495 = vpack.c.b16 %v3435, %v3433
    %v3496 = vpack.c.b16 %v3438, %v3436
    %v3497 = vpack.c.b16 %v3439, %v3437
    %v3498 = vpack.c.b16 %v3442, %v3440
    %v3499 = vpack.c.b16 %v3443, %v3441
    %v3500 = vpack.c.b16 %v3446, %v3444
    %v3501 = vpack.c.b16 %v3447, %v3445
    %v3502 = vpack.c.b16 %v3450, %v3448
    %v3503 = vpack.c.b16 %v3451, %v3449
    %v3504 = vpack.c.b16 %v3454, %v3452
    %v3505 = vpack.c.b16 %v3455, %v3453
    %v3506 = vpack.c.b16 %v3458, %v3456
    %v3507 = vpack.c.b16 %v3459, %v3457
    %v3508 = vpack.c.b16 %v3462, %v3460
    %v3509 = vpack.c.b16 %v3463, %v3461
    %v3510 = vpack.c.b16 %v3466, %v3464
    %v3511 = vpack.c.b16 %v3467, %v3465
    %v3512 = vpack.c.b16 %v3470, %v3468
    %v3513 = vpack.c.b16 %v3471, %v3469
    %v3514 = vpack.c.b16 %v3474, %v3472
    %v3515 = vpack.c.b16 %v3475, %v3473
    %v3516 = vpack.c.b16 %v3478, %v3476
    %v3517 = vpack.c.b16 %v3479, %v3477
    %v3518 = vpack.c.b16 %v3482, %v3480
    %v3519 = vpack.c.b16 %v3483, %v3481
    %v3520 = vpack.c.b16 %v3486, %v3484
    %v3521 = vpack.c.b16 %v3487, %v3485
    %v3522 = vpack.c.b16 %v3490, %v3488
    %v3523 = vpack.c.b16 %v3491, %v3489
    %3556 = vmatprep.subr.bf16.mxu0 %v3507
    %3557 = vmatpush1.bf16.msra.mxu0 %v3506
    %3558 = vmatprep.subr.bf16.mxu0 %v3505
    %3559 = vmatpush1.bf16.msra.mxu0 %v3504
    %3560 = vmatprep.subr.bf16.mxu0 %v3503
    %3561 = vmatpush1.bf16.msra.mxu0 %v3502
    %3562 = vmatprep.subr.bf16.mxu0 %v3501
    %3563 = vmatpush1.bf16.msra.mxu0 %v3500
    %3564 = vmatprep.subr.bf16.mxu0 %v3499
    %3565 = vmatpush1.bf16.msra.mxu0 %v3498
    %3566 = vmatprep.subr.bf16.mxu0 %v3497
    %3567 = vmatpush1.bf16.msra.mxu0 %v3496
    %3568 = vmatprep.subr.bf16.mxu0 %v3495
    %3569 = vmatpush1.bf16.msra.mxu0 %v3494
    %3570 = vmatprep.subr.bf16.mxu0 %v3493
    %3571 = vmatpush1.bf16.msra.mxu0 %v3492
    %3572 = vmatprep.subr.bf16.mxu0 %v3523
    %3573 = vmatpush2.bf16.msra.mxu0 %v3522
    %3574 = vmatprep.subr.bf16.mxu0 %v3521
    %3575 = vmatpush2.bf16.msra.mxu0 %v3520
    %3576 = vmatprep.subr.bf16.mxu0 %v3519
    %3577 = vmatpush2.bf16.msra.mxu0 %v3518
    %3578 = vmatprep.subr.bf16.mxu0 %v3517
    %3579 = vmatpush2.bf16.msra.mxu0 %v3516
    %3580 = vmatprep.subr.bf16.mxu0 %v3515
    %3581 = vmatpush2.bf16.msra.mxu0 %v3514
    %3582 = vmatprep.subr.bf16.mxu0 %v3513
    %3583 = vmatpush2.bf16.msra.mxu0 %v3512
    %3584 = vmatprep.subr.bf16.mxu0 %v3511
    %3585 = vmatpush2.bf16.msra.mxu0 %v3510
    %3586 = vmatprep.subr.bf16.mxu0 %v3509
    %3587 = vmatpush2.bf16.msra.mxu0 %v3508
    %3588 = vmatprep.mubr.bf16.mxu0 %v3351
    %3589 = vmatmul.mubr.bf16.gmra.mxu0 %v3350
    %v3590 = vpop.f32.mrf.mxu0
    %v3591 = vadd.f32 %v3389, %v3590
    %v3592 = vpop.f32.mrf.mxu0
    %v3593 = vadd.f32 %v3393, %v3592
    %v3594 = vpop.f32.mrf.mxu0
    %v3595 = vpop.f32.mrf.mxu0
    %3596 = vdwg.mxu0
    %3597 = vst [vmem:[%s7] sm:$0xff] %v3591
    %3598 = vst [vmem:[%s7 + $0x8] sm:$0xff] %v3593
    // Predicated region
    $region54: #{avcl_forward.4} parent=1 // pred_check
      _
    $region55: #{avcl_forward.4} parent=1 // pred_check_branch
      %3600 = sbr.rel (0) target = $region57
    $region56: #{avcl_forward.4} parent=1 // pred_region
      _
    $region57: #{avcl_forward.4} parent=1 // pred_fallthru
      _
    // Predicated region
    $region58: #{avcl_forward.4} parent=1 // pred_check
      _
    $region59: #{avcl_forward.4} parent=1 // pred_check_branch
      %3602 = sbr.rel (0) target = $region61
    $region60: #{avcl_forward.4} parent=1 // pred_region
      _
    $region61: #{avcl_forward.4} parent=1 // pred_fallthru
      _
    %3603 = vsyncpa [#allocation3], 1
    %3604 = vsyncpa [#allocation5], 1
    %3605 = vsyncpa [#allocation8], 1
    %3606 = vsyncpa [#allocation11], 1

</llo_original>
